<compile_context>
chip_gen: v7x
topology: tpu7x:2x2x1
jax: 0.10.0
libtpu: 0.0.40
codegen_flags: <defaults>
</compile_context>

<pallas_src>
import functools

import jax
import jax.numpy as jnp
import numpy as np
from jax.experimental import pallas as pl
from jax.experimental.pallas import tpu as pltpu


# dot_general dimension numbers for A^T @ B (contract dim 0 of both operands).
_TN_DIMS = (((0,), (0,)), ((), ()))


# --------------------------------------------------------------------------------------
# Fused kernel: backbone stand-in + n x [Conv1d(k=3,pad=1)+ReLU+BN] + avg pool + Linear
# --------------------------------------------------------------------------------------
def _fused_kernel(*refs, f, n_layers):
    if n_layers > 1:
        (x_ref, pool_ref, avg_ref, bbw_ref, bbb_ref, w0_ref, b0_ref,
         wl_ref, bl_ref, bns_ref, bnb_ref, wh_ref, bh_ref, o_ref) = refs
    else:  # n_layers == 1 edge case (no extra-layer weights passed)
        (x_ref, pool_ref, avg_ref, bbw_ref, bbb_ref, w0_ref, b0_ref,
         bns_ref, bnb_ref, wh_ref, bh_ref, o_ref) = refs
        wl_ref = bl_ref = None

    n = pool_ref.shape[1]          # rows handled this step = batch_tile * frames
    bt = avg_ref.shape[0]          # sequences handled this step
    cc = w0_ref.shape[2]

    # ---- Backbone stand-in: ONE lane-dense matmul over all frames in the tile ----
    # x_ref: (Cin, n*HW), bbw: (Cf, Cin)  ->  hid: (Cf, n*HW)
    hid = jnp.dot(bbw_ref[...], x_ref[...], preferred_element_type=jnp.float32)
    hid = jnp.maximum(hid + bbb_ref[...], 0.0)

    # ---- Spatial global-average pool: ONE matmul with the block-diagonal 1/HW matrix ----
    feats_cf = jnp.dot(hid, pool_ref[...], preferred_element_type=jnp.float32)  # (Cf, n)

    # Frame-boundary masks shared by every conv layer (rows = (seq, frame) flattened).
    row = jax.lax.broadcasted_iota(jnp.int32, (n, cc), 0)
    row_mod = row if n == f else row % f
    is_first = row_mod == 0
    is_last = row_mod == f - 1

    def shift_prev(t):   # t'[r] = t[r-1], zero at frame 0 of each sequence
        return jnp.where(is_first, 0.0, pltpu.roll(t, 1, axis=0))

    def shift_next(t):   # t'[r] = t[r+1], zero at last frame of each sequence
        return jnp.where(is_last, 0.0, pltpu.roll(t, n - 1, axis=0))

    # ---- Conv layer 0: input is channels-first (Cf, n) -> three TN tap matmuls ----
    # (Fusing the taps here would require a lane-axis transpose of feats; keep the
    #  proven shifted-tap-product path for layer 0 only.)
    p0 = jax.lax.dot_general(feats_cf, w0_ref[0], _TN_DIMS,
                             preferred_element_type=jnp.float32)   # (n, Cc)
    p1 = jax.lax.dot_general(feats_cf, w0_ref[1], _TN_DIMS,
                             preferred_element_type=jnp.float32)
    p2 = jax.lax.dot_general(feats_cf, w0_ref[2], _TN_DIMS,
                             preferred_element_type=jnp.float32)
    h = jnp.maximum(shift_prev(p0) + p1 + shift_next(p2) + b0_ref[...], 0.0)
    h = h * bns_ref[0] + bnb_ref[0]                 # BatchNorm1d (eval, folded)

    # ---- Conv layers 1..n-1: channels-last, three taps fused into ONE matmul ----
    for l in range(n_layers - 1):
        cat = jnp.concatenate([shift_prev(h), h, shift_next(h)], axis=1)  # (n, 3*Cc)
        y = jnp.dot(cat, wl_ref[l], preferred_element_type=jnp.float32)   # (n, Cc)
        h = jnp.maximum(y + bl_ref[l], 0.0) * bns_ref[l + 1] + bnb_ref[l + 1]

    # ---- AdaptiveAvgPool1d(1) (per-sequence frame mean) + Dropout(eval) + Linear ----
    if bt == 1:
        pooled = jnp.mean(h, axis=0, keepdims=True)                        # (1, Cc)
    else:
        pooled = jnp.dot(avg_ref[...], h, preferred_element_type=jnp.float32)  # (bt, Cc)
    out = jnp.sum(pooled * wh_ref[...], axis=1, keepdims=True) + bh_ref[...]   # (bt, 1)
    o_ref[0] = out


def _fused_call(xT, pool, avgmat, p, *, f, n_layers, num_steps, bt):
    cin, total = xT.shape
    nw = total // num_steps        # = bt * f * HW, columns per grid step
    n = bt * f
    cf = p["bb_w"].shape[0]
    cc = p["w0"].shape[2]
    kernel = functools.partial(_fused_kernel, f=f, n_layers=n_layers)

    in_specs = [
        pl.BlockSpec((cin, nw), lambda i: (0, i)),         # per-step channel-major slab
        pl.BlockSpec((nw, n), lambda i: (0, 0)),           # spatial-pool matrix
        pl.BlockSpec((bt, n), lambda i: (0, 0)),           # per-sequence frame-average matrix
        pl.BlockSpec((cf, cin), lambda i: (0, 0)),
        pl.BlockSpec((cf, 1), lambda i: (0, 0)),
        pl.BlockSpec((3, cf, cc), lambda i: (0, 0, 0)),
        pl.BlockSpec((1, cc), lambda i: (0, 0)),
    ]
    args = [xT, pool, avgmat, p["bb_w"], p["bb_b"], p["w0"], p["b0"]]
    if n_layers > 1:
        wl_s = p["wl"].reshape(n_layers - 1, 3 * cc, cc)   # stacked-tap weights (contiguous)
        in_specs += [
            pl.BlockSpec((n_layers - 1, 3 * cc, cc), lambda i: (0, 0, 0)),
            pl.BlockSpec((n_layers - 1, 1, cc), lambda i: (0, 0, 0)),
        ]
        args += [wl_s, p["bl"]]
    in_specs += [
        pl.BlockSpec((n_layers, 1, cc), lambda i: (0, 0, 0)),
        pl.BlockSpec((n_layers, 1, cc), lambda i: (0, 0, 0)),
        pl.BlockSpec((1, cc), lambda i: (0, 0)),
        pl.BlockSpec((1, 1), lambda i: (0, 0)),
    ]
    args += [p["bn_scale"], p["bn_shift"], p["w_head"], p["b_head"]]

    out = pl.pallas_call(
        kernel,
        out_shape=jax.ShapeDtypeStruct((num_steps, bt, 1), jnp.float32),
        grid_spec=pltpu.PrefetchScalarGridSpec(
            num_scalar_prefetch=0,
            grid=(num_steps,),
            in_specs=in_specs,
            out_specs=pl.BlockSpec((1, bt, 1), lambda i: (i, 0, 0)),
        ),
        compiler_params=pltpu.CompilerParams(dimension_semantics=("parallel",)),
    )(*args)
    return out.reshape(num_steps * bt, 1)


@functools.partial(jax.jit, static_argnames=("n_layers",))
def frame_model_forward(x, params, *, n_layers):
    # x: (b, f, C, H, W) — PyTorch NCHW frames.
    b, f, c, hh, ww = x.shape
    hw = hh * ww
    # Two "parallel" grid steps when possible (keeps both v7x TensorCores busy); each
    # step processes its whole batch tile at once (amortizes per-step overhead on the
    # single-TC v5e/v6e chips).
    num_steps = 2 if (b % 2 == 0 and b >= 2) else 1
    bt = b // num_steps
    n = bt * f
    nw = n * hw

    # Channel-major slab: column index = ((seq*f + frame)*hw + pixel).  ~64 KiB transpose.
    xT = jnp.transpose(x.reshape(b, f, c, hw), (2, 0, 1, 3)).reshape(c, b * f * hw)

    # Host-built constants: block-diagonal spatial mean and per-sequence frame mean.
    pool = (jnp.arange(nw, dtype=jnp.int32)[:, None] // hw ==
            jnp.arange(n, dtype=jnp.int32)[None, :]).astype(jnp.float32) / hw       # (nw, n)
    avgmat = (jnp.arange(n, dtype=jnp.int32)[None, :] // f ==
              jnp.arange(bt, dtype=jnp.int32)[:, None]).astype(jnp.float32) / f     # (bt, n)

    return _fused_call(xT, pool, avgmat, params, f=f, n_layers=n_layers,
                       num_steps=num_steps, bt=bt)                                   # (b, 1)


# --------------------------------------------------------------------------------------
# Deterministic parameter init (BN folded to eval-mode scale/shift)
# --------------------------------------------------------------------------------------
def init_params(key, c_in, c_feat, c_conv, n_layers):
    ks = jax.random.split(key, 12)
    eps = 1e-5
    p = {}
    p["bb_w"] = 0.3 * jax.random.normal(ks[0], (c_feat, c_in), jnp.float32)
    p["bb_b"] = 0.1 * jax.random.normal(ks[1], (c_feat, 1), jnp.float32)
    p["w0"] = jax.random.normal(ks[2], (3, c_feat, c_conv), jnp.float32) / np.sqrt(3 * c_feat)
    p["b0"] = 0.05 * jax.random.normal(ks[3], (1, c_conv), jnp.float32)
    p["wl"] = jax.random.normal(ks[4], (n_layers - 1, 3, c_conv, c_conv), jnp.float32) / np.sqrt(3 * c_conv)
    p["bl"] = 0.05 * jax.random.normal(ks[5], (n_layers - 1, 1, c_conv), jnp.float32)
    gamma = 1.0 + 0.1 * jax.random.normal(ks[6], (n_layers, 1, c_conv), jnp.float32)
    beta = 0.1 * jax.random.normal(ks[7], (n_layers, 1, c_conv), jnp.float32)
    rmean = 0.05 * jax.random.normal(ks[8], (n_layers, 1, c_conv), jnp.float32)
    rvar = 1.0 + 0.1 * jax.random.uniform(ks[9], (n_layers, 1, c_conv), jnp.float32)
    scale = gamma / jnp.sqrt(rvar + eps)
    p["bn_scale"] = scale
    p["bn_shift"] = beta - scale * rmean
    p["w_head"] = jax.random.normal(ks[10], (1, c_conv), jnp.float32) / np.sqrt(c_conv)
    p["b_head"] = jnp.full((1, 1), 0.02, jnp.float32)
    return p


# --------------------------------------------------------------------------------------
# Pure-JAX reference (same math) for a correctness check
# --------------------------------------------------------------------------------------
def reference_forward(x, p, *, n_layers):
    b, f, C, H, W = x.shape
    xf = x.reshape(b * f, C, H * W)                                      # (N, Cin, HW)
    h = jnp.maximum(jnp.einsum("dc,nch->ndh", p["bb_w"], xf) + p["bb_b"][None], 0.0)
    y = h.mean(axis=2).reshape(b, f, -1)                                 # (b, f, Cf)

    def conv1d(y, taps, bias):
        yp = jnp.pad(y, ((0, 0), (1, 1), (0, 0)))
        return (yp[:, :-2] @ taps[0] + yp[:, 1:-1] @ taps[1] + yp[:, 2:] @ taps[2]
                + bias[None])

    y = conv1d(y, p["w0"], p["b0"])
    y = jnp.maximum(y, 0.0) * p["bn_scale"][0][None] + p["bn_shift"][0][None]
    for l in range(n_layers - 1):
        y = conv1d(y, p["wl"][l], p["bl"][l])
        y = jnp.maximum(y, 0.0) * p["bn_scale"][l + 1][None] + p["bn_shift"][l + 1][None]
    pooled = y.mean(axis=1)                                              # (b, Cc)
    return jnp.sum(pooled * p["w_head"], axis=1, keepdims=True) + p["b_head"]


if __name__ == "__main__":
    B, F, C, H, W = 2, 8, 4, 16, 16          # batch=2, frames=8, NCHW frame = (4,16,16)
    C_FEAT, C_CONV, N_LAYERS = 48, 32, 4     # backbone conv-head channels / conv_channels

    key = jax.random.PRNGKey(0)
    kx, kp = jax.random.split(key)
    x = jax.random.normal(kx, (B, F, C, H, W), jnp.float32)
    params = init_params(kp, C, C_FEAT, C_CONV, N_LAYERS)

    out = frame_model_forward(x, params, n_layers=N_LAYERS)
    out = jax.block_until_ready(out)
    assert out.shape == (B, 1), out.shape

    ref = reference_forward(x, params, n_layers=N_LAYERS)
    np.testing.assert_allclose(np.asarray(out), np.asarray(ref), rtol=2e-3, atol=2e-3)

    print("KERNEL_OK")
</pallas_src>

<mosaic_0001>
module attributes {stable_mosaic.version = 11 : i64} {
  func.func @_fused_kernel(%arg0: i32, %arg1: memref<4x2048xf32, #tpu.memory_space<vmem>>, %arg2: memref<2048x8xf32, #tpu.memory_space<vmem>>, %arg3: memref<1x8xf32, #tpu.memory_space<vmem>>, %arg4: memref<48x4xf32, #tpu.memory_space<vmem>>, %arg5: memref<48x1xf32, #tpu.memory_space<vmem>>, %arg6: memref<3x48x32xf32, #tpu.memory_space<vmem>>, %arg7: memref<1x32xf32, #tpu.memory_space<vmem>>, %arg8: memref<3x96x32xf32, #tpu.memory_space<vmem>>, %arg9: memref<3x1x32xf32, #tpu.memory_space<vmem>>, %arg10: memref<4x1x32xf32, #tpu.memory_space<vmem>>, %arg11: memref<4x1x32xf32, #tpu.memory_space<vmem>>, %arg12: memref<1x32xf32, #tpu.memory_space<vmem>>, %arg13: memref<1x1xf32, #tpu.memory_space<vmem>>, %arg14: memref<1x1x1xf32, #tpu.memory_space<vmem>>) attributes {dimension_semantics = [#tpu.dimension_semantics<parallel>], iteration_bounds = array<i64: 2>, scalar_prefetch = 0 : i64, scratch_operands = 0 : i64, tpu.core_type = #tpu.core_type<tc>, window_params = [{transform_indices = @transform_0, window_bounds = array<i64: 4, 2048>}, {pipeline_mode = #tpu.pipeline_mode<synchronous>, transform_indices = @transform_1, window_bounds = array<i64: 2048, 8>}, {pipeline_mode = #tpu.pipeline_mode<synchronous>, transform_indices = @transform_2, window_bounds = array<i64: 1, 8>}, {pipeline_mode = #tpu.pipeline_mode<synchronous>, transform_indices = @transform_3, window_bounds = array<i64: 48, 4>}, {pipeline_mode = #tpu.pipeline_mode<synchronous>, transform_indices = @transform_4, window_bounds = array<i64: 48, 1>}, {pipeline_mode = #tpu.pipeline_mode<synchronous>, transform_indices = @transform_5, window_bounds = array<i64: 3, 48, 32>}, {pipeline_mode = #tpu.pipeline_mode<synchronous>, transform_indices = @transform_6, window_bounds = array<i64: 1, 32>}, {pipeline_mode = #tpu.pipeline_mode<synchronous>, transform_indices = @transform_7, window_bounds = array<i64: 3, 96, 32>}, {pipeline_mode = #tpu.pipeline_mode<synchronous>, transform_indices = @transform_8, window_bounds = array<i64: 3, 1, 32>}, {pipeline_mode = #tpu.pipeline_mode<synchronous>, transform_indices = @transform_9, window_bounds = array<i64: 4, 1, 32>}, {pipeline_mode = #tpu.pipeline_mode<synchronous>, transform_indices = @transform_10, window_bounds = array<i64: 4, 1, 32>}, {pipeline_mode = #tpu.pipeline_mode<synchronous>, transform_indices = @transform_11, window_bounds = array<i64: 1, 32>}, {pipeline_mode = #tpu.pipeline_mode<synchronous>, transform_indices = @transform_12, window_bounds = array<i64: 1, 1>}, {transform_indices = @transform_13, window_bounds = array<i64: 1, 1, 1>}]} {
    %c0 = arith.constant 0 : index
    %c0_0 = arith.constant 0 : index
    %0 = vector.load %arg4[%c0, %c0_0] : memref<48x4xf32, #tpu.memory_space<vmem>>, vector<48x4xf32>
    %c0_1 = arith.constant 0 : index
    %c0_2 = arith.constant 0 : index
    %1 = vector.load %arg1[%c0_1, %c0_2] : memref<4x2048xf32, #tpu.memory_space<vmem>>, vector<4x2048xf32>
    %cst = arith.constant dense<0.000000e+00> : vector<48x2048xf32>
    %2 = tpu.matmul %0, %1, %cst {dimension_numbers = #tpu.dot_dimension_numbers<[1], [0], [0], [1], [0, 0, 1, 1], [], []>} : vector<48x4xf32>, vector<4x2048xf32>, vector<48x2048xf32> -> vector<48x2048xf32>
    %c0_3 = arith.constant 0 : index
    %c0_4 = arith.constant 0 : index
    %3 = vector.load %arg5[%c0_3, %c0_4] : memref<48x1xf32, #tpu.memory_space<vmem>>, vector<48x1xf32>
    %4 = vector.broadcast %3 : vector<48x1xf32> to vector<48x2048xf32>
    %5 = arith.addf %2, %4 : vector<48x2048xf32>
    %cst_5 = arith.constant 0.000000e+00 : f32
    %6 = vector.broadcast %cst_5 : f32 to vector<48x2048xf32>
    %7 = arith.maximumf %5, %6 : vector<48x2048xf32>
    %c0_6 = arith.constant 0 : index
    %c0_7 = arith.constant 0 : index
    %8 = vector.load %arg2[%c0_6, %c0_7] : memref<2048x8xf32, #tpu.memory_space<vmem>>, vector<2048x8xf32>
    %cst_8 = arith.constant dense<0.000000e+00> : vector<48x8xf32>
    %9 = tpu.matmul %7, %8, %cst_8 {dimension_numbers = #tpu.dot_dimension_numbers<[1], [0], [0], [1], [0, 0, 1, 1], [], []>} : vector<48x2048xf32>, vector<2048x8xf32>, vector<48x8xf32> -> vector<48x8xf32>
    %10 = tpu.iota {dimensions = array<i32: 0>} : vector<8x32xi32>
    %c0_i32 = arith.constant 0 : i32
    %11 = vector.broadcast %c0_i32 : i32 to vector<8x32xi32>
    %12 = arith.cmpi eq, %10, %11 : vector<8x32xi32>
    %c7_i32 = arith.constant 7 : i32
    %13 = vector.broadcast %c7_i32 : i32 to vector<8x32xi32>
    %14 = arith.cmpi eq, %10, %13 : vector<8x32xi32>
    %c0_9 = arith.constant 0 : index
    %c0_10 = arith.constant 0 : index
    %c0_11 = arith.constant 0 : index
    %15 = vector.load %arg6[%c0_9, %c0_10, %c0_11] : memref<3x48x32xf32, #tpu.memory_space<vmem>>, vector<1x48x32xf32>
    %16 = vector.shape_cast %15 : vector<1x48x32xf32> to vector<48x32xf32>
    %cst_12 = arith.constant dense<0.000000e+00> : vector<8x32xf32>
    %17 = tpu.matmul %9, %16, %cst_12 {dimension_numbers = #tpu.dot_dimension_numbers<[0], [0], [1], [1], [0, 1, 1, 1], [], []>} : vector<48x8xf32>, vector<48x32xf32>, vector<8x32xf32> -> vector<8x32xf32>
    %c1 = arith.constant 1 : index
    %c0_13 = arith.constant 0 : index
    %c0_14 = arith.constant 0 : index
    %18 = vector.load %arg6[%c1, %c0_13, %c0_14] : memref<3x48x32xf32, #tpu.memory_space<vmem>>, vector<1x48x32xf32>
    %19 = vector.shape_cast %18 : vector<1x48x32xf32> to vector<48x32xf32>
    %cst_15 = arith.constant dense<0.000000e+00> : vector<8x32xf32>
    %20 = tpu.matmul %9, %19, %cst_15 {dimension_numbers = #tpu.dot_dimension_numbers<[0], [0], [1], [1], [0, 1, 1, 1], [], []>} : vector<48x8xf32>, vector<48x32xf32>, vector<8x32xf32> -> vector<8x32xf32>
    %c2 = arith.constant 2 : index
    %c0_16 = arith.constant 0 : index
    %c0_17 = arith.constant 0 : index
    %21 = vector.load %arg6[%c2, %c0_16, %c0_17] : memref<3x48x32xf32, #tpu.memory_space<vmem>>, vector<1x48x32xf32>
    %22 = vector.shape_cast %21 : vector<1x48x32xf32> to vector<48x32xf32>
    %cst_18 = arith.constant dense<0.000000e+00> : vector<8x32xf32>
    %23 = tpu.matmul %9, %22, %cst_18 {dimension_numbers = #tpu.dot_dimension_numbers<[0], [0], [1], [1], [0, 1, 1, 1], [], []>} : vector<48x8xf32>, vector<48x32xf32>, vector<8x32xf32> -> vector<8x32xf32>
    %c1_i32 = arith.constant 1 : i32
    %24 = tpu.dynamic_rotate %17 by %c1_i32 dim 0 : vector<8x32xf32>, i32 -> vector<8x32xf32>
    %cst_19 = arith.constant 0.000000e+00 : f32
    %25 = vector.broadcast %cst_19 : f32 to vector<8x32xf32>
    %26 = arith.select %12, %25, %24 : vector<8x32xi1>, vector<8x32xf32>
    %27 = arith.addf %26, %20 : vector<8x32xf32>
    %c7_i32_20 = arith.constant 7 : i32
    %28 = tpu.dynamic_rotate %23 by %c7_i32_20 dim 0 : vector<8x32xf32>, i32 -> vector<8x32xf32>
    %cst_21 = arith.constant 0.000000e+00 : f32
    %29 = vector.broadcast %cst_21 : f32 to vector<8x32xf32>
    %30 = arith.select %14, %29, %28 : vector<8x32xi1>, vector<8x32xf32>
    %31 = arith.addf %27, %30 : vector<8x32xf32>
    %c0_22 = arith.constant 0 : index
    %c0_23 = arith.constant 0 : index
    %32 = vector.load %arg7[%c0_22, %c0_23] : memref<1x32xf32, #tpu.memory_space<vmem>>, vector<1x32xf32>
    %33 = vector.broadcast %32 : vector<1x32xf32> to vector<8x32xf32>
    %34 = arith.addf %31, %33 : vector<8x32xf32>
    %cst_24 = arith.constant 0.000000e+00 : f32
    %35 = vector.broadcast %cst_24 : f32 to vector<8x32xf32>
    %36 = arith.maximumf %34, %35 : vector<8x32xf32>
    %c0_25 = arith.constant 0 : index
    %c0_26 = arith.constant 0 : index
    %c0_27 = arith.constant 0 : index
    %37 = vector.load %arg10[%c0_25, %c0_26, %c0_27] : memref<4x1x32xf32, #tpu.memory_space<vmem>>, vector<1x1x32xf32>
    %38 = vector.shape_cast %37 : vector<1x1x32xf32> to vector<1x32xf32>
    %39 = vector.broadcast %38 : vector<1x32xf32> to vector<8x32xf32>
    %40 = arith.mulf %36, %39 : vector<8x32xf32>
    %c0_28 = arith.constant 0 : index
    %c0_29 = arith.constant 0 : index
    %c0_30 = arith.constant 0 : index
    %41 = vector.load %arg11[%c0_28, %c0_29, %c0_30] : memref<4x1x32xf32, #tpu.memory_space<vmem>>, vector<1x1x32xf32>
    %42 = vector.shape_cast %41 : vector<1x1x32xf32> to vector<1x32xf32>
    %43 = vector.broadcast %42 : vector<1x32xf32> to vector<8x32xf32>
    %44 = arith.addf %40, %43 : vector<8x32xf32>
    %c1_i32_31 = arith.constant 1 : i32
    %45 = tpu.dynamic_rotate %44 by %c1_i32_31 dim 0 : vector<8x32xf32>, i32 -> vector<8x32xf32>
    %cst_32 = arith.constant 0.000000e+00 : f32
    %46 = vector.broadcast %cst_32 : f32 to vector<8x32xf32>
    %47 = arith.select %12, %46, %45 : vector<8x32xi1>, vector<8x32xf32>
    %c7_i32_33 = arith.constant 7 : i32
    %48 = tpu.dynamic_rotate %44 by %c7_i32_33 dim 0 : vector<8x32xf32>, i32 -> vector<8x32xf32>
    %cst_34 = arith.constant 0.000000e+00 : f32
    %49 = vector.broadcast %cst_34 : f32 to vector<8x32xf32>
    %50 = arith.select %14, %49, %48 : vector<8x32xi1>, vector<8x32xf32>
    %51 = tpu.concatenate %47, %44, %50 in 1 : vector<8x32xf32>, vector<8x32xf32>, vector<8x32xf32> -> vector<8x96xf32>
    %c0_35 = arith.constant 0 : index
    %c0_36 = arith.constant 0 : index
    %c0_37 = arith.constant 0 : index
    %52 = vector.load %arg8[%c0_35, %c0_36, %c0_37] : memref<3x96x32xf32, #tpu.memory_space<vmem>>, vector<1x96x32xf32>
    %53 = vector.shape_cast %52 : vector<1x96x32xf32> to vector<96x32xf32>
    %cst_38 = arith.constant dense<0.000000e+00> : vector<8x32xf32>
    %54 = tpu.matmul %51, %53, %cst_38 {dimension_numbers = #tpu.dot_dimension_numbers<[1], [0], [0], [1], [0, 0, 1, 1], [], []>} : vector<8x96xf32>, vector<96x32xf32>, vector<8x32xf32> -> vector<8x32xf32>
    %c0_39 = arith.constant 0 : index
    %c0_40 = arith.constant 0 : index
    %c0_41 = arith.constant 0 : index
    %55 = vector.load %arg9[%c0_39, %c0_40, %c0_41] : memref<3x1x32xf32, #tpu.memory_space<vmem>>, vector<1x1x32xf32>
    %56 = vector.shape_cast %55 : vector<1x1x32xf32> to vector<1x32xf32>
    %57 = vector.broadcast %56 : vector<1x32xf32> to vector<8x32xf32>
    %58 = arith.addf %54, %57 : vector<8x32xf32>
    %cst_42 = arith.constant 0.000000e+00 : f32
    %59 = vector.broadcast %cst_42 : f32 to vector<8x32xf32>
    %60 = arith.maximumf %58, %59 : vector<8x32xf32>
    %c1_43 = arith.constant 1 : index
    %c0_44 = arith.constant 0 : index
    %c0_45 = arith.constant 0 : index
    %61 = vector.load %arg10[%c1_43, %c0_44, %c0_45] : memref<4x1x32xf32, #tpu.memory_space<vmem>>, vector<1x1x32xf32>
    %62 = vector.shape_cast %61 : vector<1x1x32xf32> to vector<1x32xf32>
    %63 = vector.broadcast %62 : vector<1x32xf32> to vector<8x32xf32>
    %64 = arith.mulf %60, %63 : vector<8x32xf32>
    %c1_46 = arith.constant 1 : index
    %c0_47 = arith.constant 0 : index
    %c0_48 = arith.constant 0 : index
    %65 = vector.load %arg11[%c1_46, %c0_47, %c0_48] : memref<4x1x32xf32, #tpu.memory_space<vmem>>, vector<1x1x32xf32>
    %66 = vector.shape_cast %65 : vector<1x1x32xf32> to vector<1x32xf32>
    %67 = vector.broadcast %66 : vector<1x32xf32> to vector<8x32xf32>
    %68 = arith.addf %64, %67 : vector<8x32xf32>
    %c1_i32_49 = arith.constant 1 : i32
    %69 = tpu.dynamic_rotate %68 by %c1_i32_49 dim 0 : vector<8x32xf32>, i32 -> vector<8x32xf32>
    %cst_50 = arith.constant 0.000000e+00 : f32
    %70 = vector.broadcast %cst_50 : f32 to vector<8x32xf32>
    %71 = arith.select %12, %70, %69 : vector<8x32xi1>, vector<8x32xf32>
    %c7_i32_51 = arith.constant 7 : i32
    %72 = tpu.dynamic_rotate %68 by %c7_i32_51 dim 0 : vector<8x32xf32>, i32 -> vector<8x32xf32>
    %cst_52 = arith.constant 0.000000e+00 : f32
    %73 = vector.broadcast %cst_52 : f32 to vector<8x32xf32>
    %74 = arith.select %14, %73, %72 : vector<8x32xi1>, vector<8x32xf32>
    %75 = tpu.concatenate %71, %68, %74 in 1 : vector<8x32xf32>, vector<8x32xf32>, vector<8x32xf32> -> vector<8x96xf32>
    %c1_53 = arith.constant 1 : index
    %c0_54 = arith.constant 0 : index
    %c0_55 = arith.constant 0 : index
    %76 = vector.load %arg8[%c1_53, %c0_54, %c0_55] : memref<3x96x32xf32, #tpu.memory_space<vmem>>, vector<1x96x32xf32>
    %77 = vector.shape_cast %76 : vector<1x96x32xf32> to vector<96x32xf32>
    %cst_56 = arith.constant dense<0.000000e+00> : vector<8x32xf32>
    %78 = tpu.matmul %75, %77, %cst_56 {dimension_numbers = #tpu.dot_dimension_numbers<[1], [0], [0], [1], [0, 0, 1, 1], [], []>} : vector<8x96xf32>, vector<96x32xf32>, vector<8x32xf32> -> vector<8x32xf32>
    %c1_57 = arith.constant 1 : index
    %c0_58 = arith.constant 0 : index
    %c0_59 = arith.constant 0 : index
    %79 = vector.load %arg9[%c1_57, %c0_58, %c0_59] : memref<3x1x32xf32, #tpu.memory_space<vmem>>, vector<1x1x32xf32>
    %80 = vector.shape_cast %79 : vector<1x1x32xf32> to vector<1x32xf32>
    %81 = vector.broadcast %80 : vector<1x32xf32> to vector<8x32xf32>
    %82 = arith.addf %78, %81 : vector<8x32xf32>
    %cst_60 = arith.constant 0.000000e+00 : f32
    %83 = vector.broadcast %cst_60 : f32 to vector<8x32xf32>
    %84 = arith.maximumf %82, %83 : vector<8x32xf32>
    %c2_61 = arith.constant 2 : index
    %c0_62 = arith.constant 0 : index
    %c0_63 = arith.constant 0 : index
    %85 = vector.load %arg10[%c2_61, %c0_62, %c0_63] : memref<4x1x32xf32, #tpu.memory_space<vmem>>, vector<1x1x32xf32>
    %86 = vector.shape_cast %85 : vector<1x1x32xf32> to vector<1x32xf32>
    %87 = vector.broadcast %86 : vector<1x32xf32> to vector<8x32xf32>
    %88 = arith.mulf %84, %87 : vector<8x32xf32>
    %c2_64 = arith.constant 2 : index
    %c0_65 = arith.constant 0 : index
    %c0_66 = arith.constant 0 : index
    %89 = vector.load %arg11[%c2_64, %c0_65, %c0_66] : memref<4x1x32xf32, #tpu.memory_space<vmem>>, vector<1x1x32xf32>
    %90 = vector.shape_cast %89 : vector<1x1x32xf32> to vector<1x32xf32>
    %91 = vector.broadcast %90 : vector<1x32xf32> to vector<8x32xf32>
    %92 = arith.addf %88, %91 : vector<8x32xf32>
    %c1_i32_67 = arith.constant 1 : i32
    %93 = tpu.dynamic_rotate %92 by %c1_i32_67 dim 0 : vector<8x32xf32>, i32 -> vector<8x32xf32>
    %cst_68 = arith.constant 0.000000e+00 : f32
    %94 = vector.broadcast %cst_68 : f32 to vector<8x32xf32>
    %95 = arith.select %12, %94, %93 : vector<8x32xi1>, vector<8x32xf32>
    %c7_i32_69 = arith.constant 7 : i32
    %96 = tpu.dynamic_rotate %92 by %c7_i32_69 dim 0 : vector<8x32xf32>, i32 -> vector<8x32xf32>
    %cst_70 = arith.constant 0.000000e+00 : f32
    %97 = vector.broadcast %cst_70 : f32 to vector<8x32xf32>
    %98 = arith.select %14, %97, %96 : vector<8x32xi1>, vector<8x32xf32>
    %99 = tpu.concatenate %95, %92, %98 in 1 : vector<8x32xf32>, vector<8x32xf32>, vector<8x32xf32> -> vector<8x96xf32>
    %c2_71 = arith.constant 2 : index
    %c0_72 = arith.constant 0 : index
    %c0_73 = arith.constant 0 : index
    %100 = vector.load %arg8[%c2_71, %c0_72, %c0_73] : memref<3x96x32xf32, #tpu.memory_space<vmem>>, vector<1x96x32xf32>
    %101 = vector.shape_cast %100 : vector<1x96x32xf32> to vector<96x32xf32>
    %cst_74 = arith.constant dense<0.000000e+00> : vector<8x32xf32>
    %102 = tpu.matmul %99, %101, %cst_74 {dimension_numbers = #tpu.dot_dimension_numbers<[1], [0], [0], [1], [0, 0, 1, 1], [], []>} : vector<8x96xf32>, vector<96x32xf32>, vector<8x32xf32> -> vector<8x32xf32>
    %c2_75 = arith.constant 2 : index
    %c0_76 = arith.constant 0 : index
    %c0_77 = arith.constant 0 : index
    %103 = vector.load %arg9[%c2_75, %c0_76, %c0_77] : memref<3x1x32xf32, #tpu.memory_space<vmem>>, vector<1x1x32xf32>
    %104 = vector.shape_cast %103 : vector<1x1x32xf32> to vector<1x32xf32>
    %105 = vector.broadcast %104 : vector<1x32xf32> to vector<8x32xf32>
    %106 = arith.addf %102, %105 : vector<8x32xf32>
    %cst_78 = arith.constant 0.000000e+00 : f32
    %107 = vector.broadcast %cst_78 : f32 to vector<8x32xf32>
    %108 = arith.maximumf %106, %107 : vector<8x32xf32>
    %c3 = arith.constant 3 : index
    %c0_79 = arith.constant 0 : index
    %c0_80 = arith.constant 0 : index
    %109 = vector.load %arg10[%c3, %c0_79, %c0_80] : memref<4x1x32xf32, #tpu.memory_space<vmem>>, vector<1x1x32xf32>
    %110 = vector.shape_cast %109 : vector<1x1x32xf32> to vector<1x32xf32>
    %111 = vector.broadcast %110 : vector<1x32xf32> to vector<8x32xf32>
    %112 = arith.mulf %108, %111 : vector<8x32xf32>
    %c3_81 = arith.constant 3 : index
    %c0_82 = arith.constant 0 : index
    %c0_83 = arith.constant 0 : index
    %113 = vector.load %arg11[%c3_81, %c0_82, %c0_83] : memref<4x1x32xf32, #tpu.memory_space<vmem>>, vector<1x1x32xf32>
    %114 = vector.shape_cast %113 : vector<1x1x32xf32> to vector<1x32xf32>
    %115 = vector.broadcast %114 : vector<1x32xf32> to vector<8x32xf32>
    %116 = arith.addf %112, %115 : vector<8x32xf32>
    %cst_84 = arith.constant dense<0.000000e+00> : vector<32xf32>
    %117 = vector.multi_reduction <add>, %116, %cst_84 [0] : vector<8x32xf32> to vector<32xf32>
    %118 = vector.shape_cast %117 : vector<32xf32> to vector<1x32xf32>
    %cst_85 = arith.constant 8.000000e+00 : f32
    %119 = vector.broadcast %cst_85 : f32 to vector<1x32xf32>
    %120 = arith.divf %118, %119 : vector<1x32xf32>
    %c0_86 = arith.constant 0 : index
    %c0_87 = arith.constant 0 : index
    %121 = vector.load %arg12[%c0_86, %c0_87] : memref<1x32xf32, #tpu.memory_space<vmem>>, vector<1x32xf32>
    %122 = arith.mulf %120, %121 : vector<1x32xf32>
    %cst_88 = arith.constant dense<0.000000e+00> : vector<1xf32>
    %123 = vector.multi_reduction <add>, %122, %cst_88 [1] : vector<1x32xf32> to vector<1xf32>
    %124 = vector.shape_cast %123 : vector<1xf32> to vector<1x1xf32>
    %c0_89 = arith.constant 0 : index
    %c0_90 = arith.constant 0 : index
    %125 = vector.load %arg13[%c0_89, %c0_90] : memref<1x1xf32, #tpu.memory_space<vmem>>, vector<1x1xf32>
    %126 = arith.addf %124, %125 : vector<1x1xf32>
    %c0_91 = arith.constant 0 : index
    %c0_92 = arith.constant 0 : index
    %c0_93 = arith.constant 0 : index
    %127 = vector.load %arg14[%c0_91, %c0_92, %c0_93] : memref<1x1x1xf32, #tpu.memory_space<vmem>>, vector<1x1x1xf32>
    %128 = vector.shape_cast %127 : vector<1x1x1xf32> to vector<1x1xf32>
    %129 = vector.shape_cast %126 : vector<1x1xf32> to vector<1x1x1xf32>
    tpu.vector_store %arg14[%c0_91, %c0_92, %c0_93], %129 {strides = array<i32>} : memref<1x1x1xf32, #tpu.memory_space<vmem>>, vector<1x1x1xf32>,
    return
  }
  func.func @transform_0(%arg0: i32) -> (i32, i32) {
    %c0_i32 = arith.constant 0 : i32
    %c0_i32_0 = arith.constant 0 : i32
    return %c0_i32, %arg0 : i32, i32
  }
  func.func @transform_1(%arg0: i32) -> (i32, i32) {
    %c0_i32 = arith.constant 0 : i32
    %c0_i32_0 = arith.constant 0 : i32
    %c0_i32_1 = arith.constant 0 : i32
    return %c0_i32, %c0_i32_0 : i32, i32
  }
  func.func @transform_2(%arg0: i32) -> (i32, i32) {
    %c0_i32 = arith.constant 0 : i32
    %c0_i32_0 = arith.constant 0 : i32
    %c0_i32_1 = arith.constant 0 : i32
    return %c0_i32, %c0_i32_0 : i32, i32
  }
  func.func @transform_3(%arg0: i32) -> (i32, i32) {
    %c0_i32 = arith.constant 0 : i32
    %c0_i32_0 = arith.constant 0 : i32
    %c0_i32_1 = arith.constant 0 : i32
    return %c0_i32, %c0_i32_0 : i32, i32
  }
  func.func @transform_4(%arg0: i32) -> (i32, i32) {
    %c0_i32 = arith.constant 0 : i32
    %c0_i32_0 = arith.constant 0 : i32
    %c0_i32_1 = arith.constant 0 : i32
    return %c0_i32, %c0_i32_0 : i32, i32
  }
  func.func @transform_5(%arg0: i32) -> (i32, i32, i32) {
    %c0_i32 = arith.constant 0 : i32
    %c0_i32_0 = arith.constant 0 : i32
    %c0_i32_1 = arith.constant 0 : i32
    %c0_i32_2 = arith.constant 0 : i32
    return %c0_i32, %c0_i32_0, %c0_i32_1 : i32, i32, i32
  }
  func.func @transform_6(%arg0: i32) -> (i32, i32) {
    %c0_i32 = arith.constant 0 : i32
    %c0_i32_0 = arith.constant 0 : i32
    %c0_i32_1 = arith.constant 0 : i32
    return %c0_i32, %c0_i32_0 : i32, i32
  }
  func.func @transform_7(%arg0: i32) -> (i32, i32, i32) {
    %c0_i32 = arith.constant 0 : i32
    %c0_i32_0 = arith.constant 0 : i32
    %c0_i32_1 = arith.constant 0 : i32
    %c0_i32_2 = arith.constant 0 : i32
    return %c0_i32, %c0_i32_0, %c0_i32_1 : i32, i32, i32
  }
  func.func @transform_8(%arg0: i32) -> (i32, i32, i32) {
    %c0_i32 = arith.constant 0 : i32
    %c0_i32_0 = arith.constant 0 : i32
    %c0_i32_1 = arith.constant 0 : i32
    %c0_i32_2 = arith.constant 0 : i32
    return %c0_i32, %c0_i32_0, %c0_i32_1 : i32, i32, i32
  }
  func.func @transform_9(%arg0: i32) -> (i32, i32, i32) {
    %c0_i32 = arith.constant 0 : i32
    %c0_i32_0 = arith.constant 0 : i32
    %c0_i32_1 = arith.constant 0 : i32
    %c0_i32_2 = arith.constant 0 : i32
    return %c0_i32, %c0_i32_0, %c0_i32_1 : i32, i32, i32
  }
  func.func @transform_10(%arg0: i32) -> (i32, i32, i32) {
    %c0_i32 = arith.constant 0 : i32
    %c0_i32_0 = arith.constant 0 : i32
    %c0_i32_1 = arith.constant 0 : i32
    %c0_i32_2 = arith.constant 0 : i32
    return %c0_i32, %c0_i32_0, %c0_i32_1 : i32, i32, i32
  }
  func.func @transform_11(%arg0: i32) -> (i32, i32) {
    %c0_i32 = arith.constant 0 : i32
    %c0_i32_0 = arith.constant 0 : i32
    %c0_i32_1 = arith.constant 0 : i32
    return %c0_i32, %c0_i32_0 : i32, i32
  }
  func.func @transform_12(%arg0: i32) -> (i32, i32) {
    %c0_i32 = arith.constant 0 : i32
    %c0_i32_0 = arith.constant 0 : i32
    %c0_i32_1 = arith.constant 0 : i32
    return %c0_i32, %c0_i32_0 : i32, i32
  }
  func.func @transform_13(%arg0: i32) -> (i32, i32, i32) {
    %c0_i32 = arith.constant 0 : i32
    %c0_i32_0 = arith.constant 0 : i32
    %c0_i32_1 = arith.constant 0 : i32
    return %arg0, %c0_i32, %c0_i32_0 : i32, i32, i32
  }
}

</mosaic_0001>

<llo_original>
// kernel: frame_model_forward.1
$region0: #{frame_model_forward.1}
  #allocation0 [shape = 'u32[]', space=smem, size = 0x4, offset = 0x4, fixed_abs, tag = 'smem constant byte address 0x4 - core index']
  #allocation1 [shape = 'u32[144,128]{1,0:T(1,128)}', space=vmem, size = 0x12000, scoped, tag = 'internal scratch']
  #allocation2 [shape = 'f32[1,1]{1,0:T(1,128)S(1)}', space=vmem, size = 0x200, scoped, tag = 'scoped memory for frame_model_forward.1']
  %s0 = inlined_call_operand.vmem [shape: f32[4,4096], index: 0, kind: input, shape index: {}]
  %s1 = inlined_call_operand.vmem [shape: f32[2048,8], index: 1, kind: input, shape index: {}]
  %s2 = inlined_call_operand.vmem [shape: f32[1,8], index: 2, kind: input, shape index: {}]
  %s3 = inlined_call_operand.vmem [shape: f32[48,4], index: 3, kind: input, shape index: {}]
  %s4 = inlined_call_operand.vmem [shape: f32[48,1], index: 4, kind: input, shape index: {}]
  %s5 = inlined_call_operand.vmem [shape: f32[3,48,32], index: 5, kind: input, shape index: {}]
  %s6 = inlined_call_operand.vmem [shape: f32[1,32], index: 6, kind: input, shape index: {}]
  %s7 = inlined_call_operand.vmem [shape: f32[3,96,32], index: 7, kind: input, shape index: {}]
  %s8 = inlined_call_operand.vmem [shape: f32[3,1,32], index: 8, kind: input, shape index: {}]
  %s9 = inlined_call_operand.vmem [shape: f32[4,1,32], index: 9, kind: input, shape index: {}]
  %s10 = inlined_call_operand.vmem [shape: f32[4,1,32], index: 10, kind: input, shape index: {}]
  %s11 = inlined_call_operand.vmem [shape: f32[1,32], index: 11, kind: input, shape index: {}]
  %s12 = inlined_call_operand.<no memory space> [shape: f32[1,1], index: 12, kind: input, shape index: {}]
  %s13 = inlined_call_operand.vmem [shape: f32[2,1,1], index: 13, kind: output, shape index: {}]
  %s14 = sld [smem:[#allocation0]]
  $region85: #{frame_model_forward.1} parent=0
    _
  %s16 = ssub.s32 1, %s14
  %s17 = scalar_select 0, %s16, %s14
  %v18 = vstv %s12
  %19 = vst [vmem:[#allocation2] sm:$0x1] %v18
  loop: start=0, step=1, limit=4
  $region2: #{frame_model_forward.1} parent=0 // loop_pre_header
    _
  $region3: #{frame_model_forward.1} parent=0 // loop_header
    %s21 = sphi 0, %s25
    %p22 = scmp.ge.s32.totalorder %s21, 4
    %s31 = sphi 0, %s33
    %s34 = sphi 0, %s31
    %s35 = sphi 0, %s34
    %s51 = sphi 0, %s35
    %s55 = sphi 0, %s55
    %s57 = sphi 0, %s55
    %s58 = sphi 0, %s57
    %s72 = sphi 0, %s58
    %s76 = sphi 0, %s76
    %s78 = sphi 0, %s76
    %s79 = sphi 0, %s78
    %s93 = sphi 0, %s79
    %s97 = sphi 0, %s97
    %s99 = sphi 0, %s97
    %s100 = sphi 0, %s99
    %s114 = sphi 0, %s100
    %s118 = sphi 0, %s118
    %s120 = sphi 0, %s118
    %s121 = sphi 0, %s120
    %s135 = sphi 0, %s121
    %s139 = sphi 0, %s139
    %s141 = sphi 0, %s139
    %s142 = sphi 0, %s141
    %s156 = sphi 0, %s142
    %s160 = sphi 0, %s160
    %s162 = sphi 0, %s160
    %s163 = sphi 0, %s162
    %s177 = sphi 0, %s163
    %s181 = sphi 0, %s181
    %s183 = sphi 0, %s181
    %s184 = sphi 0, %s183
    %s198 = sphi 0, %s184
    %s202 = sphi 0, %s202
    %s204 = sphi 0, %s202
    %s205 = sphi 0, %s204
    %s219 = sphi 0, %s205
    %s223 = sphi 0, %s223
    %s225 = sphi 0, %s223
    %s226 = sphi 0, %s225
    %s240 = sphi 0, %s226
    %s244 = sphi 0, %s244
    %s246 = sphi 0, %s244
    %s247 = sphi 0, %s246
    %s261 = sphi 0, %s247
    %s265 = sphi 0, %s265
    %s267 = sphi 0, %s265
    %s268 = sphi 0, %s267
    %s282 = sphi 0, %s268
    %s286 = sphi 0, %s286
    %s288 = sphi 0, %s286
    %s289 = sphi 0, %s288
    %s303 = sphi 0, %s289
    %s309 = sphi 0, %s311
    %s312 = sphi 0, %s309
    %s313 = sphi 0, %s312
    %s329 = sphi 0, %s313
  $region4: #{frame_model_forward.1} parent=0 // loop_header_branch
    %24 = sbr.rel (%p22) target = $region8
  $region5: #{frame_model_forward.1} parent=0 // loop_body
    %s26 = ssub.s32 %s21, 1
    %s27 = ssub.s32 %s21, 2
    %s28 = sadd.s32 %s21, 1
    %s29 = ssub.s32 %s21, %s28
    %p30 = scmp.eq.s32.totalorder %s29, 0
    %s32 = sadd.s32 %s31, 1
    %s33 = scalar_select %p30, %s31, %s32
    %p36 = pneg %p30
    %p37 = scmp.eq.s32.totalorder %s21, 1
    %p38 = por %p36, %p37
    %p39 = scmp.ne.s32.totalorder %s31, %s34
    %p40 = scmp.eq.s32.totalorder %s21, 0
    %p41 = por %p39, %p40
    %p42 = scmp.ne.s32.totalorder %s31, %s34
    %p43 = scmp.eq.s32.totalorder %s26, 1
    %p44 = por %p42, %p43
    %p45 = scmp.ne.s32.totalorder %s34, %s35
    %p46 = scmp.eq.s32.totalorder %s26, 0
    %p47 = por %p45, %p46
    %p48 = scmp.ne.s32.totalorder %s34, %s35
    %p49 = scmp.eq.s32.totalorder %s27, 1
    %p50 = por %p48, %p49
    %p52 = scmp.ne.s32.totalorder %s35, %s51
    %p53 = scmp.eq.s32.totalorder %s27, 0
    %p54 = por %p52, %p53
    %s56 = sadd.s32 %s55, 1
    %p59 = scmp.eq.s32.totalorder %s21, 1
    %p60 = scmp.ne.s32.totalorder %s55, %s57
    %p61 = scmp.eq.s32.totalorder %s21, 0
    %p62 = por %p60, %p61
    %p63 = scmp.ne.s32.totalorder %s55, %s57
    %p64 = scmp.eq.s32.totalorder %s26, 1
    %p65 = por %p63, %p64
    %p66 = scmp.ne.s32.totalorder %s57, %s58
    %p67 = scmp.eq.s32.totalorder %s26, 0
    %p68 = por %p66, %p67
    %p69 = scmp.ne.s32.totalorder %s57, %s58
    %p70 = scmp.eq.s32.totalorder %s27, 1
    %p71 = por %p69, %p70
    %p73 = scmp.ne.s32.totalorder %s58, %s72
    %p74 = scmp.eq.s32.totalorder %s27, 0
    %p75 = por %p73, %p74
    %s77 = sadd.s32 %s76, 1
    %p80 = scmp.eq.s32.totalorder %s21, 1
    %p81 = scmp.ne.s32.totalorder %s76, %s78
    %p82 = scmp.eq.s32.totalorder %s21, 0
    %p83 = por %p81, %p82
    %p84 = scmp.ne.s32.totalorder %s76, %s78
    %p85 = scmp.eq.s32.totalorder %s26, 1
    %p86 = por %p84, %p85
    %p87 = scmp.ne.s32.totalorder %s78, %s79
    %p88 = scmp.eq.s32.totalorder %s26, 0
    %p89 = por %p87, %p88
    %p90 = scmp.ne.s32.totalorder %s78, %s79
    %p91 = scmp.eq.s32.totalorder %s27, 1
    %p92 = por %p90, %p91
    %p94 = scmp.ne.s32.totalorder %s79, %s93
    %p95 = scmp.eq.s32.totalorder %s27, 0
    %p96 = por %p94, %p95
    %s98 = sadd.s32 %s97, 1
    %p101 = scmp.eq.s32.totalorder %s21, 1
    %p102 = scmp.ne.s32.totalorder %s97, %s99
    %p103 = scmp.eq.s32.totalorder %s21, 0
    %p104 = por %p102, %p103
    %p105 = scmp.ne.s32.totalorder %s97, %s99
    %p106 = scmp.eq.s32.totalorder %s26, 1
    %p107 = por %p105, %p106
    %p108 = scmp.ne.s32.totalorder %s99, %s100
    %p109 = scmp.eq.s32.totalorder %s26, 0
    %p110 = por %p108, %p109
    %p111 = scmp.ne.s32.totalorder %s99, %s100
    %p112 = scmp.eq.s32.totalorder %s27, 1
    %p113 = por %p111, %p112
    %p115 = scmp.ne.s32.totalorder %s100, %s114
    %p116 = scmp.eq.s32.totalorder %s27, 0
    %p117 = por %p115, %p116
    %s119 = sadd.s32 %s118, 1
    %p122 = scmp.eq.s32.totalorder %s21, 1
    %p123 = scmp.ne.s32.totalorder %s118, %s120
    %p124 = scmp.eq.s32.totalorder %s21, 0
    %p125 = por %p123, %p124
    %p126 = scmp.ne.s32.totalorder %s118, %s120
    %p127 = scmp.eq.s32.totalorder %s26, 1
    %p128 = por %p126, %p127
    %p129 = scmp.ne.s32.totalorder %s120, %s121
    %p130 = scmp.eq.s32.totalorder %s26, 0
    %p131 = por %p129, %p130
    %p132 = scmp.ne.s32.totalorder %s120, %s121
    %p133 = scmp.eq.s32.totalorder %s27, 1
    %p134 = por %p132, %p133
    %p136 = scmp.ne.s32.totalorder %s121, %s135
    %p137 = scmp.eq.s32.totalorder %s27, 0
    %p138 = por %p136, %p137
    %s140 = sadd.s32 %s139, 1
    %p143 = scmp.eq.s32.totalorder %s21, 1
    %p144 = scmp.ne.s32.totalorder %s139, %s141
    %p145 = scmp.eq.s32.totalorder %s21, 0
    %p146 = por %p144, %p145
    %p147 = scmp.ne.s32.totalorder %s139, %s141
    %p148 = scmp.eq.s32.totalorder %s26, 1
    %p149 = por %p147, %p148
    %p150 = scmp.ne.s32.totalorder %s141, %s142
    %p151 = scmp.eq.s32.totalorder %s26, 0
    %p152 = por %p150, %p151
    %p153 = scmp.ne.s32.totalorder %s141, %s142
    %p154 = scmp.eq.s32.totalorder %s27, 1
    %p155 = por %p153, %p154
    %p157 = scmp.ne.s32.totalorder %s142, %s156
    %p158 = scmp.eq.s32.totalorder %s27, 0
    %p159 = por %p157, %p158
    %s161 = sadd.s32 %s160, 1
    %p164 = scmp.eq.s32.totalorder %s21, 1
    %p165 = scmp.ne.s32.totalorder %s160, %s162
    %p166 = scmp.eq.s32.totalorder %s21, 0
    %p167 = por %p165, %p166
    %p168 = scmp.ne.s32.totalorder %s160, %s162
    %p169 = scmp.eq.s32.totalorder %s26, 1
    %p170 = por %p168, %p169
    %p171 = scmp.ne.s32.totalorder %s162, %s163
    %p172 = scmp.eq.s32.totalorder %s26, 0
    %p173 = por %p171, %p172
    %p174 = scmp.ne.s32.totalorder %s162, %s163
    %p175 = scmp.eq.s32.totalorder %s27, 1
    %p176 = por %p174, %p175
    %p178 = scmp.ne.s32.totalorder %s163, %s177
    %p179 = scmp.eq.s32.totalorder %s27, 0
    %p180 = por %p178, %p179
    %s182 = sadd.s32 %s181, 1
    %p185 = scmp.eq.s32.totalorder %s21, 1
    %p186 = scmp.ne.s32.totalorder %s181, %s183
    %p187 = scmp.eq.s32.totalorder %s21, 0
    %p188 = por %p186, %p187
    %p189 = scmp.ne.s32.totalorder %s181, %s183
    %p190 = scmp.eq.s32.totalorder %s26, 1
    %p191 = por %p189, %p190
    %p192 = scmp.ne.s32.totalorder %s183, %s184
    %p193 = scmp.eq.s32.totalorder %s26, 0
    %p194 = por %p192, %p193
    %p195 = scmp.ne.s32.totalorder %s183, %s184
    %p196 = scmp.eq.s32.totalorder %s27, 1
    %p197 = por %p195, %p196
    %p199 = scmp.ne.s32.totalorder %s184, %s198
    %p200 = scmp.eq.s32.totalorder %s27, 0
    %p201 = por %p199, %p200
    %s203 = sadd.s32 %s202, 1
    %p206 = scmp.eq.s32.totalorder %s21, 1
    %p207 = scmp.ne.s32.totalorder %s202, %s204
    %p208 = scmp.eq.s32.totalorder %s21, 0
    %p209 = por %p207, %p208
    %p210 = scmp.ne.s32.totalorder %s202, %s204
    %p211 = scmp.eq.s32.totalorder %s26, 1
    %p212 = por %p210, %p211
    %p213 = scmp.ne.s32.totalorder %s204, %s205
    %p214 = scmp.eq.s32.totalorder %s26, 0
    %p215 = por %p213, %p214
    %p216 = scmp.ne.s32.totalorder %s204, %s205
    %p217 = scmp.eq.s32.totalorder %s27, 1
    %p218 = por %p216, %p217
    %p220 = scmp.ne.s32.totalorder %s205, %s219
    %p221 = scmp.eq.s32.totalorder %s27, 0
    %p222 = por %p220, %p221
    %s224 = sadd.s32 %s223, 1
    %p227 = scmp.eq.s32.totalorder %s21, 1
    %p228 = scmp.ne.s32.totalorder %s223, %s225
    %p229 = scmp.eq.s32.totalorder %s21, 0
    %p230 = por %p228, %p229
    %p231 = scmp.ne.s32.totalorder %s223, %s225
    %p232 = scmp.eq.s32.totalorder %s26, 1
    %p233 = por %p231, %p232
    %p234 = scmp.ne.s32.totalorder %s225, %s226
    %p235 = scmp.eq.s32.totalorder %s26, 0
    %p236 = por %p234, %p235
    %p237 = scmp.ne.s32.totalorder %s225, %s226
    %p238 = scmp.eq.s32.totalorder %s27, 1
    %p239 = por %p237, %p238
    %p241 = scmp.ne.s32.totalorder %s226, %s240
    %p242 = scmp.eq.s32.totalorder %s27, 0
    %p243 = por %p241, %p242
    %s245 = sadd.s32 %s244, 1
    %p248 = scmp.eq.s32.totalorder %s21, 1
    %p249 = scmp.ne.s32.totalorder %s244, %s246
    %p250 = scmp.eq.s32.totalorder %s21, 0
    %p251 = por %p249, %p250
    %p252 = scmp.ne.s32.totalorder %s244, %s246
    %p253 = scmp.eq.s32.totalorder %s26, 1
    %p254 = por %p252, %p253
    %p255 = scmp.ne.s32.totalorder %s246, %s247
    %p256 = scmp.eq.s32.totalorder %s26, 0
    %p257 = por %p255, %p256
    %p258 = scmp.ne.s32.totalorder %s246, %s247
    %p259 = scmp.eq.s32.totalorder %s27, 1
    %p260 = por %p258, %p259
    %p262 = scmp.ne.s32.totalorder %s247, %s261
    %p263 = scmp.eq.s32.totalorder %s27, 0
    %p264 = por %p262, %p263
    %s266 = sadd.s32 %s265, 1
    %p269 = scmp.eq.s32.totalorder %s21, 1
    %p270 = scmp.ne.s32.totalorder %s265, %s267
    %p271 = scmp.eq.s32.totalorder %s21, 0
    %p272 = por %p270, %p271
    %p273 = scmp.ne.s32.totalorder %s265, %s267
    %p274 = scmp.eq.s32.totalorder %s26, 1
    %p275 = por %p273, %p274
    %p276 = scmp.ne.s32.totalorder %s267, %s268
    %p277 = scmp.eq.s32.totalorder %s26, 0
    %p278 = por %p276, %p277
    %p279 = scmp.ne.s32.totalorder %s267, %s268
    %p280 = scmp.eq.s32.totalorder %s27, 1
    %p281 = por %p279, %p280
    %p283 = scmp.ne.s32.totalorder %s268, %s282
    %p284 = scmp.eq.s32.totalorder %s27, 0
    %p285 = por %p283, %p284
    %s287 = sadd.s32 %s286, 1
    %p290 = scmp.eq.s32.totalorder %s21, 1
    %p291 = scmp.ne.s32.totalorder %s286, %s288
    %p292 = scmp.eq.s32.totalorder %s21, 0
    %p293 = por %p291, %p292
    %p294 = scmp.ne.s32.totalorder %s286, %s288
    %p295 = scmp.eq.s32.totalorder %s26, 1
    %p296 = por %p294, %p295
    %p297 = scmp.ne.s32.totalorder %s288, %s289
    %p298 = scmp.eq.s32.totalorder %s26, 0
    %p299 = por %p297, %p298
    %p300 = scmp.ne.s32.totalorder %s288, %s289
    %p301 = scmp.eq.s32.totalorder %s27, 1
    %p302 = por %p300, %p301
    %p304 = scmp.ne.s32.totalorder %s289, %s303
    %p305 = scmp.eq.s32.totalorder %s27, 0
    %p306 = por %p304, %p305
    %s307 = ssub.s32 %s21, %s28
    %p308 = scmp.eq.s32.totalorder %s307, 0
    %s310 = sadd.s32 %s309, 1
    %s311 = scalar_select %p308, %s309, %s310
    %p314 = pneg %p308
    %p315 = scmp.eq.s32.totalorder %s21, 1
    %p316 = por %p314, %p315
    %p317 = scmp.ne.s32.totalorder %s309, %s312
    %p318 = scmp.eq.s32.totalorder %s21, 0
    %p319 = por %p317, %p318
    %p320 = scmp.ne.s32.totalorder %s309, %s312
    %p321 = scmp.eq.s32.totalorder %s26, 1
    %p322 = por %p320, %p321
    %p323 = scmp.ne.s32.totalorder %s312, %s313
    %p324 = scmp.eq.s32.totalorder %s26, 0
    %p325 = por %p323, %p324
    %p326 = scmp.ne.s32.totalorder %s312, %s313
    %p327 = scmp.eq.s32.totalorder %s27, 1
    %p328 = por %p326, %p327
    %p330 = scmp.ne.s32.totalorder %s313, %s329
    %p331 = scmp.eq.s32.totalorder %s27, 0
    %p332 = por %p330, %p331
    %p333 = scmp.le.s32.totalorder 1, %s21
    %p334 = scmp.lt.s32.totalorder %s21, 3
    %p335 = pnand %p333, %p334
    %p336 = pneg %p335
    // Predicated region
    $region9: #{frame_model_forward.1} parent=5 // pred_check
      _
    $region10: #{frame_model_forward.1} parent=5 // pred_check_branch
      %338 = sbr.rel (%p335) target = $region12
    $region11: #{frame_model_forward.1} parent=5 // pred_region
      %s339 = ssub.s32 %s21, 1
      // Predicated region
      $region13: #{frame_model_forward.1} parent=11 // pred_check
        %p340 = pneg %p68
      $region14: #{frame_model_forward.1} parent=11 // pred_check_branch
        %342 = sbr.rel (%p340) target = $region16
      $region15: #{frame_model_forward.1} parent=11 // pred_region
        _
      $region16: #{frame_model_forward.1} parent=11 // pred_fallthru
        _
      // Predicated region
      $region17: #{frame_model_forward.1} parent=11 // pred_check
        %p343 = pneg %p89
      $region18: #{frame_model_forward.1} parent=11 // pred_check_branch
        %345 = sbr.rel (%p343) target = $region20
      $region19: #{frame_model_forward.1} parent=11 // pred_region
        _
      $region20: #{frame_model_forward.1} parent=11 // pred_fallthru
        _
      // Predicated region
      $region21: #{frame_model_forward.1} parent=11 // pred_check
        %p346 = pneg %p110
      $region22: #{frame_model_forward.1} parent=11 // pred_check_branch
        %348 = sbr.rel (%p346) target = $region24
      $region23: #{frame_model_forward.1} parent=11 // pred_region
        _
      $region24: #{frame_model_forward.1} parent=11 // pred_fallthru
        _
      // Predicated region
      $region25: #{frame_model_forward.1} parent=11 // pred_check
        %p349 = pneg %p131
      $region26: #{frame_model_forward.1} parent=11 // pred_check_branch
        %351 = sbr.rel (%p349) target = $region28
      $region27: #{frame_model_forward.1} parent=11 // pred_region
        _
      $region28: #{frame_model_forward.1} parent=11 // pred_fallthru
        _
      // Predicated region
      $region29: #{frame_model_forward.1} parent=11 // pred_check
        %p352 = pneg %p152
      $region30: #{frame_model_forward.1} parent=11 // pred_check_branch
        %354 = sbr.rel (%p352) target = $region32
      $region31: #{frame_model_forward.1} parent=11 // pred_region
        _
      $region32: #{frame_model_forward.1} parent=11 // pred_fallthru
        _
      // Predicated region
      $region33: #{frame_model_forward.1} parent=11 // pred_check
        %p355 = pneg %p173
      $region34: #{frame_model_forward.1} parent=11 // pred_check_branch
        %357 = sbr.rel (%p355) target = $region36
      $region35: #{frame_model_forward.1} parent=11 // pred_region
        _
      $region36: #{frame_model_forward.1} parent=11 // pred_fallthru
        _
      // Predicated region
      $region37: #{frame_model_forward.1} parent=11 // pred_check
        %p358 = pneg %p194
      $region38: #{frame_model_forward.1} parent=11 // pred_check_branch
        %360 = sbr.rel (%p358) target = $region40
      $region39: #{frame_model_forward.1} parent=11 // pred_region
        _
      $region40: #{frame_model_forward.1} parent=11 // pred_fallthru
        _
      // Predicated region
      $region41: #{frame_model_forward.1} parent=11 // pred_check
        %p361 = pneg %p215
      $region42: #{frame_model_forward.1} parent=11 // pred_check_branch
        %363 = sbr.rel (%p361) target = $region44
      $region43: #{frame_model_forward.1} parent=11 // pred_region
        _
      $region44: #{frame_model_forward.1} parent=11 // pred_fallthru
        _
      // Predicated region
      $region45: #{frame_model_forward.1} parent=11 // pred_check
        %p364 = pneg %p236
      $region46: #{frame_model_forward.1} parent=11 // pred_check_branch
        %366 = sbr.rel (%p364) target = $region48
      $region47: #{frame_model_forward.1} parent=11 // pred_region
        _
      $region48: #{frame_model_forward.1} parent=11 // pred_fallthru
        _
      // Predicated region
      $region49: #{frame_model_forward.1} parent=11 // pred_check
        %p367 = pneg %p257
      $region50: #{frame_model_forward.1} parent=11 // pred_check_branch
        %369 = sbr.rel (%p367) target = $region52
      $region51: #{frame_model_forward.1} parent=11 // pred_region
        _
      $region52: #{frame_model_forward.1} parent=11 // pred_fallthru
        _
      // Predicated region
      $region53: #{frame_model_forward.1} parent=11 // pred_check
        %p370 = pneg %p278
      $region54: #{frame_model_forward.1} parent=11 // pred_check_branch
        %372 = sbr.rel (%p370) target = $region56
      $region55: #{frame_model_forward.1} parent=11 // pred_region
        _
      $region56: #{frame_model_forward.1} parent=11 // pred_fallthru
        _
      // Predicated region
      $region57: #{frame_model_forward.1} parent=11 // pred_check
        %p373 = pneg %p299
      $region58: #{frame_model_forward.1} parent=11 // pred_check_branch
        %375 = sbr.rel (%p373) target = $region60
      $region59: #{frame_model_forward.1} parent=11 // pred_region
        _
      $region60: #{frame_model_forward.1} parent=11 // pred_fallthru
        _
    $region12: #{frame_model_forward.1} parent=5 // pred_fallthru
      _
    %p376 = scmp.lt.s32.totalorder %s21, 2
    // Predicated region
    $region61: #{frame_model_forward.1} parent=5 // pred_check
      %p377 = pneg %p376
    $region62: #{frame_model_forward.1} parent=5 // pred_check_branch
      %379 = sbr.rel (%p377) target = $region64
    $region63: #{frame_model_forward.1} parent=5 // pred_region
      // Predicated region
      $region65: #{frame_model_forward.1} parent=63 // pred_check
        %p380 = pneg %p41
      $region66: #{frame_model_forward.1} parent=63 // pred_check_branch
        %382 = sbr.rel (%p380) target = $region68
      $region67: #{frame_model_forward.1} parent=63 // pred_region
        %s383 = smul.u32 16, %s21
        %p384 = scmp.lt.s32.totalorder %s383, 31
        %s385 = scalar_select %p384, %s383, 31
        %s386 = smul.addr %s385, 4
        %s387 = scalar_lea.vmem %s0, %s386
        %s388 = smul.u32 16, %s21
      $region68: #{frame_model_forward.1} parent=63 // pred_fallthru
        _
    $region64: #{frame_model_forward.1} parent=5 // pred_fallthru
      _
    %p389 = scmp.le.s32.totalorder 1, %s21
    %p390 = scmp.lt.s32.totalorder %s21, 3
    %p391 = pnand %p389, %p390
    %p392 = pneg %p391
    // Predicated region
    $region69: #{frame_model_forward.1} parent=5 // pred_check
      _
    $region70: #{frame_model_forward.1} parent=5 // pred_check_branch
      %394 = sbr.rel (%p391) target = $region72
    $region71: #{frame_model_forward.1} parent=5 // pred_region
      %s395 = ssub.s32 %s21, 1
      %s396 = smul.u32 16, %s26
      %p397 = scmp.lt.s32.totalorder %s396, 31
      %s398 = scalar_select %p397, %s396, 31
      %s399 = smul.addr %s398, 4
      %s400 = scalar_lea.vmem %s0, %s399
      %p401 = pneg %p47
      %p402 = pneg %p44
      %p403 = pneg %p68
      %p404 = pneg %p65
      %p405 = pneg %p89
      %p406 = pneg %p86
      %p407 = pneg %p110
      %p408 = pneg %p107
      %p409 = pneg %p131
      %p410 = pneg %p128
      %p411 = pneg %p152
      %p412 = pneg %p149
      %p413 = pneg %p173
      %p414 = pneg %p170
      %p415 = pneg %p194
      %p416 = pneg %p191
      %p417 = pneg %p215
      %p418 = pneg %p212
      %p419 = pneg %p236
      %p420 = pneg %p233
      %p421 = pneg %p257
      %p422 = pneg %p254
      %p423 = pneg %p278
      %p424 = pneg %p275
      %p425 = pneg %p299
      %p426 = pneg %p296
      %p427 = pneg %p325
      %p428 = pneg %p322
      %p429 = scmp.lt.s32.totalorder %s26, 1
      %s430 = scalar_select %p429, %s26, 1
      %s431 = scalar_lea.vmem %s13, %s430
      %s432 = smul.u32 16, %s26
      %p433 = scmp.lt.s32.totalorder %s432, 31
      %s434 = scalar_select %p433, %s432, 31
      %s435 = smul.addr %s434, 4
      %s436 = scalar_lea.vmem %s0, %s435
      %s437 = smul.u32 16, %s26
      %p438 = scmp.lt.s32.totalorder %s26, 1
      %s439 = scalar_select %p438, %s26, 1
      %s440 = scalar_lea.vmem %s13, %s439
      %v441 = vld [vmem:[%s3] sm:$0xff]
      %v442 = vld [vmem:[%s3 + $0x8] sm:$0xff]
      %v443 = vld [vmem:[%s3 + $0x10] sm:$0xff]
      %v444 = vld [vmem:[%s3 + $0x18] sm:$0xff]
      %v445 = vld [vmem:[%s3 + $0x20] sm:$0xff]
      %v446 = vld [vmem:[%s3 + $0x28] sm:$0xff]
      %v447 = vld [vmem:[%s436] sm:$0xff]
      %v448 = vld [vmem:[%s436 + $0x8] sm:$0xff]
      %v449 = vld [vmem:[%s436 + $0x10] sm:$0xff]
      %v450 = vld [vmem:[%s436 + $0x18] sm:$0xff]
      %v451 = vld [vmem:[%s436 + $0x20] sm:$0xff]
      %v452 = vld [vmem:[%s436 + $0x28] sm:$0xff]
      %v453 = vld [vmem:[%s436 + $0x30] sm:$0xff]
      %v454 = vld [vmem:[%s436 + $0x38] sm:$0xff]
      %v455 = vld [vmem:[%s4] sm:$0xff]
      %v456 = vld [vmem:[%s4 + $0x8] sm:$0xff]
      %v457 = vld [vmem:[%s4 + $0x10] sm:$0xff]
      %v458 = vld [vmem:[%s4 + $0x18] sm:$0xff]
      %v459 = vld [vmem:[%s4 + $0x20] sm:$0xff]
      %v460 = vld [vmem:[%s4 + $0x28] sm:$0xff]
      %462 = vset.pattern.permute.xlu0 0
      %463 = vperm.xlu0 %462, %v455
      %v464 = vpop.permute.xlu0 %463
      %467 = vset.pattern.permute.xlu0 0
      %468 = vperm.xlu0 %467, %v456
      %v469 = vpop.permute.xlu0 %468
      %472 = vset.pattern.permute.xlu0 0
      %473 = vperm.xlu0 %472, %v457
      %v474 = vpop.permute.xlu0 %473
      %477 = vset.pattern.permute.xlu0 0
      %478 = vperm.xlu0 %477, %v458
      %v479 = vpop.permute.xlu0 %478
      %482 = vset.pattern.permute.xlu0 0
      %483 = vperm.xlu0 %482, %v459
      %v484 = vpop.permute.xlu0 %483
      %487 = vset.pattern.permute.xlu0 0
      %488 = vperm.xlu0 %487, %v460
      %v489 = vpop.permute.xlu0 %488
      %v499 = vcombine.high %v447, %v447
      %v500 = vcombine.high %v448, %v448
      %v501 = vcombine.high %v449, %v449
      %v502 = vcombine.high %v450, %v450
      %v503 = vcombine.high %v451, %v451
      %v504 = vcombine.high %v452, %v452
      %v505 = vcombine.high %v453, %v453
      %v506 = vcombine.high %v454, %v454
      %vm507 = vcmask 31744
      %v509 = vsel %vm507, %v441, 0
      %v512 = vsel %vm507, %v442, 0
      %v515 = vsel %vm507, %v443, 0
      %v518 = vsel %vm507, %v444, 0
      %v521 = vsel %vm507, %v445, 0
      %v524 = vsel %vm507, %v446, 0
      %vm526 = vcmask 1043456
      %v527 = vsel %vm526, %v447, 0
      %v529 = vsel %vm526, %v499, 0
      %v531 = vsel %vm526, %v448, 0
      %v533 = vsel %vm526, %v500, 0
      %v535 = vsel %vm526, %v449, 0
      %v537 = vsel %vm526, %v501, 0
      %v539 = vsel %vm526, %v450, 0
      %v541 = vsel %vm526, %v502, 0
      %v543 = vsel %vm526, %v451, 0
      %v545 = vsel %vm526, %v503, 0
      %v547 = vsel %vm526, %v452, 0
      %v549 = vsel %vm526, %v504, 0
      %v551 = vsel %vm526, %v453, 0
      %v553 = vsel %vm526, %v505, 0
      %v555 = vsel %vm526, %v454, 0
      %v557 = vsel %vm526, %v506, 0
      %559 = vmatprep.subr.mxu0 %v529
      %560 = vmatpush1.msra.mxu0 %v527
      %561 = vmatprep.subr.mxu0 0.0
      %562 = vmatpush1.msra.mxu0 0.0
      %563 = vmatprep.subr.mxu0 0.0
      %564 = vmatpush1.msra.mxu0 0.0
      %565 = vmatprep.subr.mxu0 0.0
      %566 = vmatpush1.msra.mxu0 0.0
      %567 = vmatprep.subr.mxu0 0.0
      %568 = vmatpush1.msra.mxu0 0.0
      %569 = vmatprep.subr.mxu0 0.0
      %570 = vmatpush1.msra.mxu0 0.0
      %571 = vmatprep.subr.mxu0 0.0
      %572 = vmatpush1.msra.mxu0 0.0
      %573 = vmatprep.subr.mxu0 0.0
      %574 = vmatpush1.msra.mxu0 0.0
      %575 = vmatprep.subr.mxu0 0.0
      %576 = vmatpush1.msra.mxu0 0.0
      %577 = vmatprep.subr.mxu0 0.0
      %578 = vmatpush1.msra.mxu0 0.0
      %579 = vmatprep.subr.mxu0 0.0
      %580 = vmatpush1.msra.mxu0 0.0
      %581 = vmatprep.subr.mxu0 0.0
      %582 = vmatpush1.msra.mxu0 0.0
      %583 = vmatprep.subr.mxu0 0.0
      %584 = vmatpush1.msra.mxu0 0.0
      %585 = vmatprep.subr.mxu0 0.0
      %586 = vmatpush1.msra.mxu0 0.0
      %587 = vmatprep.subr.mxu0 0.0
      %588 = vmatpush1.msra.mxu0 0.0
      %589 = vmatprep.subr.mxu0 0.0
      %590 = vmatpush1.msra.mxu0 0.0
      %591 = vmatprep.subr.mxu0 0.0
      %592 = vmatpush1.msra.mxu0 0.0
      %593 = vmatprep.subr.mxu0 0.0
      %594 = vmatpush1.msra.mxu0 0.0
      %595 = vmatprep.subr.mxu0 0.0
      %596 = vmatpush1.msra.mxu0 0.0
      %597 = vmatprep.subr.mxu0 0.0
      %598 = vmatpush1.msra.mxu0 0.0
      %599 = vmatprep.subr.mxu0 0.0
      %600 = vmatpush1.msra.mxu0 0.0
      %601 = vmatprep.subr.mxu0 0.0
      %602 = vmatpush1.msra.mxu0 0.0
      %603 = vmatprep.subr.mxu0 0.0
      %604 = vmatpush1.msra.mxu0 0.0
      %605 = vmatprep.subr.mxu0 0.0
      %606 = vmatpush1.msra.mxu0 0.0
      %607 = vmatprep.subr.mxu0 0.0
      %608 = vmatpush1.msra.mxu0 0.0
      %609 = vmatprep.subr.mxu0 0.0
      %610 = vmatpush1.msra.mxu0 0.0
      %611 = vmatprep.subr.mxu0 0.0
      %612 = vmatpush1.msra.mxu0 0.0
      %613 = vmatprep.subr.mxu0 0.0
      %614 = vmatpush1.msra.mxu0 0.0
      %615 = vmatprep.subr.mxu0 0.0
      %616 = vmatpush1.msra.mxu0 0.0
      %617 = vmatprep.subr.mxu0 0.0
      %618 = vmatpush1.msra.mxu0 0.0
      %619 = vmatprep.subr.mxu0 0.0
      %620 = vmatpush1.msra.mxu0 0.0
      %621 = vmatprep.subr.mxu0 0.0
      %622 = vmatpush1.msra.mxu0 0.0
      %623 = vmatprep.mubr.f32.mxu0 0.0
      %624 = vmatmul.mubr.f32.gmra.mrb[0].mxu0 %v509
      %v625 = vpop.f32.mrb[0].mxu0
      %v626 = vadd.f32 %v464, %v625
      %v627 = vpop.f32.mrb[0].mxu0
      %v628 = vadd.f32 %v464, %v627
      %629 = vmatprep.mubr.f32.mxu0 0.0
      %630 = vmatmul.mubr.f32.gmra.mrb[0].mxu0 %v512
      %v631 = vpop.f32.mrb[0].mxu0
      %v632 = vadd.f32 %v469, %v631
      %v633 = vpop.f32.mrb[0].mxu0
      %v634 = vadd.f32 %v469, %v633
      %635 = vmatprep.mubr.f32.mxu0 0.0
      %636 = vmatmul.mubr.f32.gmra.mrb[0].mxu0 %v515
      %v637 = vpop.f32.mrb[0].mxu0
      %v638 = vadd.f32 %v474, %v637
      %v639 = vpop.f32.mrb[0].mxu0
      %v640 = vadd.f32 %v474, %v639
      %641 = vmatprep.mubr.f32.mxu0 0.0
      %642 = vmatmul.mubr.f32.gmra.mrb[0].mxu0 %v518
      %v643 = vpop.f32.mrb[0].mxu0
      %v644 = vadd.f32 %v479, %v643
      %v645 = vpop.f32.mrb[0].mxu0
      %v646 = vadd.f32 %v479, %v645
      %647 = vmatprep.mubr.f32.mxu0 0.0
      %648 = vmatmul.mubr.f32.gmra.mrb[0].mxu0 %v521
      %v649 = vpop.f32.mrb[0].mxu0
      %v650 = vadd.f32 %v484, %v649
      %v651 = vpop.f32.mrb[0].mxu0
      %v652 = vadd.f32 %v484, %v651
      %653 = vmatprep.mubr.f32.mxu0 0.0
      %654 = vmatmul.mubr.f32.gmra.mrb[0].mxu0 %v524
      %v655 = vpop.f32.mrb[0].mxu0
      %v656 = vadd.f32 %v489, %v655
      %v657 = vpop.f32.mrb[0].mxu0
      %v658 = vadd.f32 %v489, %v657
      %659 = vdwg.mxu0
      %660 = vmatprep.subr.mxu0 %v533
      %661 = vmatpush1.msra.mxu0 %v531
      %662 = vmatprep.subr.mxu0 0.0
      %663 = vmatpush1.msra.mxu0 0.0
      %664 = vmatprep.subr.mxu0 0.0
      %665 = vmatpush1.msra.mxu0 0.0
      %666 = vmatprep.subr.mxu0 0.0
      %667 = vmatpush1.msra.mxu0 0.0
      %668 = vmatprep.subr.mxu0 0.0
      %669 = vmatpush1.msra.mxu0 0.0
      %670 = vmatprep.subr.mxu0 0.0
      %671 = vmatpush1.msra.mxu0 0.0
      %672 = vmatprep.subr.mxu0 0.0
      %673 = vmatpush1.msra.mxu0 0.0
      %674 = vmatprep.subr.mxu0 0.0
      %675 = vmatpush1.msra.mxu0 0.0
      %676 = vmatprep.subr.mxu0 0.0
      %677 = vmatpush1.msra.mxu0 0.0
      %678 = vmatprep.subr.mxu0 0.0
      %679 = vmatpush1.msra.mxu0 0.0
      %680 = vmatprep.subr.mxu0 0.0
      %681 = vmatpush1.msra.mxu0 0.0
      %682 = vmatprep.subr.mxu0 0.0
      %683 = vmatpush1.msra.mxu0 0.0
      %684 = vmatprep.subr.mxu0 0.0
      %685 = vmatpush1.msra.mxu0 0.0
      %686 = vmatprep.subr.mxu0 0.0
      %687 = vmatpush1.msra.mxu0 0.0
      %688 = vmatprep.subr.mxu0 0.0
      %689 = vmatpush1.msra.mxu0 0.0
      %690 = vmatprep.subr.mxu0 0.0
      %691 = vmatpush1.msra.mxu0 0.0
      %692 = vmatprep.subr.mxu0 0.0
      %693 = vmatpush1.msra.mxu0 0.0
      %694 = vmatprep.subr.mxu0 0.0
      %695 = vmatpush1.msra.mxu0 0.0
      %696 = vmatprep.subr.mxu0 0.0
      %697 = vmatpush1.msra.mxu0 0.0
      %698 = vmatprep.subr.mxu0 0.0
      %699 = vmatpush1.msra.mxu0 0.0
      %700 = vmatprep.subr.mxu0 0.0
      %701 = vmatpush1.msra.mxu0 0.0
      %702 = vmatprep.subr.mxu0 0.0
      %703 = vmatpush1.msra.mxu0 0.0
      %704 = vmatprep.subr.mxu0 0.0
      %705 = vmatpush1.msra.mxu0 0.0
      %706 = vmatprep.subr.mxu0 0.0
      %707 = vmatpush1.msra.mxu0 0.0
      %708 = vmatprep.subr.mxu0 0.0
      %709 = vmatpush1.msra.mxu0 0.0
      %710 = vmatprep.subr.mxu0 0.0
      %711 = vmatpush1.msra.mxu0 0.0
      %712 = vmatprep.subr.mxu0 0.0
      %713 = vmatpush1.msra.mxu0 0.0
      %714 = vmatprep.subr.mxu0 0.0
      %715 = vmatpush1.msra.mxu0 0.0
      %716 = vmatprep.subr.mxu0 0.0
      %717 = vmatpush1.msra.mxu0 0.0
      %718 = vmatprep.subr.mxu0 0.0
      %719 = vmatpush1.msra.mxu0 0.0
      %720 = vmatprep.subr.mxu0 0.0
      %721 = vmatpush1.msra.mxu0 0.0
      %722 = vmatprep.subr.mxu0 0.0
      %723 = vmatpush1.msra.mxu0 0.0
      %724 = vmatprep.mubr.f32.mxu0 0.0
      %725 = vmatmul.mubr.f32.gmra.mrb[0].mxu0 %v509
      %v726 = vpop.f32.mrb[0].mxu0
      %v727 = vadd.f32 %v464, %v726
      %v728 = vpop.f32.mrb[0].mxu0
      %v729 = vadd.f32 %v464, %v728
      %730 = vmatprep.mubr.f32.mxu0 0.0
      %731 = vmatmul.mubr.f32.gmra.mrb[0].mxu0 %v512
      %v732 = vpop.f32.mrb[0].mxu0
      %v733 = vadd.f32 %v469, %v732
      %v734 = vpop.f32.mrb[0].mxu0
      %v735 = vadd.f32 %v469, %v734
      %736 = vmatprep.mubr.f32.mxu0 0.0
      %737 = vmatmul.mubr.f32.gmra.mrb[0].mxu0 %v515
      %v738 = vpop.f32.mrb[0].mxu0
      %v739 = vadd.f32 %v474, %v738
      %v740 = vpop.f32.mrb[0].mxu0
      %v741 = vadd.f32 %v474, %v740
      %742 = vmatprep.mubr.f32.mxu0 0.0
      %743 = vmatmul.mubr.f32.gmra.mrb[0].mxu0 %v518
      %v744 = vpop.f32.mrb[0].mxu0
      %v745 = vadd.f32 %v479, %v744
      %v746 = vpop.f32.mrb[0].mxu0
      %v747 = vadd.f32 %v479, %v746
      %748 = vmatprep.mubr.f32.mxu0 0.0
      %749 = vmatmul.mubr.f32.gmra.mrb[0].mxu0 %v521
      %v750 = vpop.f32.mrb[0].mxu0
      %v751 = vadd.f32 %v484, %v750
      %v752 = vpop.f32.mrb[0].mxu0
      %v753 = vadd.f32 %v484, %v752
      %754 = vmatprep.mubr.f32.mxu0 0.0
      %755 = vmatmul.mubr.f32.gmra.mrb[0].mxu0 %v524
      %v756 = vpop.f32.mrb[0].mxu0
      %v757 = vadd.f32 %v489, %v756
      %v758 = vpop.f32.mrb[0].mxu0
      %v759 = vadd.f32 %v489, %v758
      %760 = vdwg.mxu0
      %761 = vmatprep.subr.mxu0 %v537
      %762 = vmatpush1.msra.mxu0 %v535
      %763 = vmatprep.subr.mxu0 0.0
      %764 = vmatpush1.msra.mxu0 0.0
      %765 = vmatprep.subr.mxu0 0.0
      %766 = vmatpush1.msra.mxu0 0.0
      %767 = vmatprep.subr.mxu0 0.0
      %768 = vmatpush1.msra.mxu0 0.0
      %769 = vmatprep.subr.mxu0 0.0
      %770 = vmatpush1.msra.mxu0 0.0
      %771 = vmatprep.subr.mxu0 0.0
      %772 = vmatpush1.msra.mxu0 0.0
      %773 = vmatprep.subr.mxu0 0.0
      %774 = vmatpush1.msra.mxu0 0.0
      %775 = vmatprep.subr.mxu0 0.0
      %776 = vmatpush1.msra.mxu0 0.0
      %777 = vmatprep.subr.mxu0 0.0
      %778 = vmatpush1.msra.mxu0 0.0
      %779 = vmatprep.subr.mxu0 0.0
      %780 = vmatpush1.msra.mxu0 0.0
      %781 = vmatprep.subr.mxu0 0.0
      %782 = vmatpush1.msra.mxu0 0.0
      %783 = vmatprep.subr.mxu0 0.0
      %784 = vmatpush1.msra.mxu0 0.0
      %785 = vmatprep.subr.mxu0 0.0
      %786 = vmatpush1.msra.mxu0 0.0
      %787 = vmatprep.subr.mxu0 0.0
      %788 = vmatpush1.msra.mxu0 0.0
      %789 = vmatprep.subr.mxu0 0.0
      %790 = vmatpush1.msra.mxu0 0.0
      %791 = vmatprep.subr.mxu0 0.0
      %792 = vmatpush1.msra.mxu0 0.0
      %793 = vmatprep.subr.mxu0 0.0
      %794 = vmatpush1.msra.mxu0 0.0
      %795 = vmatprep.subr.mxu0 0.0
      %796 = vmatpush1.msra.mxu0 0.0
      %797 = vmatprep.subr.mxu0 0.0
      %798 = vmatpush1.msra.mxu0 0.0
      %799 = vmatprep.subr.mxu0 0.0
      %800 = vmatpush1.msra.mxu0 0.0
      %801 = vmatprep.subr.mxu0 0.0
      %802 = vmatpush1.msra.mxu0 0.0
      %803 = vmatprep.subr.mxu0 0.0
      %804 = vmatpush1.msra.mxu0 0.0
      %805 = vmatprep.subr.mxu0 0.0
      %806 = vmatpush1.msra.mxu0 0.0
      %807 = vmatprep.subr.mxu0 0.0
      %808 = vmatpush1.msra.mxu0 0.0
      %809 = vmatprep.subr.mxu0 0.0
      %810 = vmatpush1.msra.mxu0 0.0
      %811 = vmatprep.subr.mxu0 0.0
      %812 = vmatpush1.msra.mxu0 0.0
      %813 = vmatprep.subr.mxu0 0.0
      %814 = vmatpush1.msra.mxu0 0.0
      %815 = vmatprep.subr.mxu0 0.0
      %816 = vmatpush1.msra.mxu0 0.0
      %817 = vmatprep.subr.mxu0 0.0
      %818 = vmatpush1.msra.mxu0 0.0
      %819 = vmatprep.subr.mxu0 0.0
      %820 = vmatpush1.msra.mxu0 0.0
      %821 = vmatprep.subr.mxu0 0.0
      %822 = vmatpush1.msra.mxu0 0.0
      %823 = vmatprep.subr.mxu0 0.0
      %824 = vmatpush1.msra.mxu0 0.0
      %825 = vmatprep.mubr.f32.mxu0 0.0
      %826 = vmatmul.mubr.f32.gmra.mrb[0].mxu0 %v509
      %v827 = vpop.f32.mrb[0].mxu0
      %v828 = vadd.f32 %v464, %v827
      %v829 = vpop.f32.mrb[0].mxu0
      %v830 = vadd.f32 %v464, %v829
      %831 = vmatprep.mubr.f32.mxu0 0.0
      %832 = vmatmul.mubr.f32.gmra.mrb[0].mxu0 %v512
      %v833 = vpop.f32.mrb[0].mxu0
      %v834 = vadd.f32 %v469, %v833
      %v835 = vpop.f32.mrb[0].mxu0
      %v836 = vadd.f32 %v469, %v835
      %837 = vmatprep.mubr.f32.mxu0 0.0
      %838 = vmatmul.mubr.f32.gmra.mrb[0].mxu0 %v515
      %v839 = vpop.f32.mrb[0].mxu0
      %v840 = vadd.f32 %v474, %v839
      %v841 = vpop.f32.mrb[0].mxu0
      %v842 = vadd.f32 %v474, %v841
      %843 = vmatprep.mubr.f32.mxu0 0.0
      %844 = vmatmul.mubr.f32.gmra.mrb[0].mxu0 %v518
      %v845 = vpop.f32.mrb[0].mxu0
      %v846 = vadd.f32 %v479, %v845
      %v847 = vpop.f32.mrb[0].mxu0
      %v848 = vadd.f32 %v479, %v847
      %849 = vmatprep.mubr.f32.mxu0 0.0
      %850 = vmatmul.mubr.f32.gmra.mrb[0].mxu0 %v521
      %v851 = vpop.f32.mrb[0].mxu0
      %v852 = vadd.f32 %v484, %v851
      %v853 = vpop.f32.mrb[0].mxu0
      %v854 = vadd.f32 %v484, %v853
      %855 = vmatprep.mubr.f32.mxu0 0.0
      %856 = vmatmul.mubr.f32.gmra.mrb[0].mxu0 %v524
      %v857 = vpop.f32.mrb[0].mxu0
      %v858 = vadd.f32 %v489, %v857
      %v859 = vpop.f32.mrb[0].mxu0
      %v860 = vadd.f32 %v489, %v859
      %861 = vdwg.mxu0
      %862 = vmatprep.subr.mxu0 %v541
      %863 = vmatpush1.msra.mxu0 %v539
      %864 = vmatprep.subr.mxu0 0.0
      %865 = vmatpush1.msra.mxu0 0.0
      %866 = vmatprep.subr.mxu0 0.0
      %867 = vmatpush1.msra.mxu0 0.0
      %868 = vmatprep.subr.mxu0 0.0
      %869 = vmatpush1.msra.mxu0 0.0
      %870 = vmatprep.subr.mxu0 0.0
      %871 = vmatpush1.msra.mxu0 0.0
      %872 = vmatprep.subr.mxu0 0.0
      %873 = vmatpush1.msra.mxu0 0.0
      %874 = vmatprep.subr.mxu0 0.0
      %875 = vmatpush1.msra.mxu0 0.0
      %876 = vmatprep.subr.mxu0 0.0
      %877 = vmatpush1.msra.mxu0 0.0
      %878 = vmatprep.subr.mxu0 0.0
      %879 = vmatpush1.msra.mxu0 0.0
      %880 = vmatprep.subr.mxu0 0.0
      %881 = vmatpush1.msra.mxu0 0.0
      %882 = vmatprep.subr.mxu0 0.0
      %883 = vmatpush1.msra.mxu0 0.0
      %884 = vmatprep.subr.mxu0 0.0
      %885 = vmatpush1.msra.mxu0 0.0
      %886 = vmatprep.subr.mxu0 0.0
      %887 = vmatpush1.msra.mxu0 0.0
      %888 = vmatprep.subr.mxu0 0.0
      %889 = vmatpush1.msra.mxu0 0.0
      %890 = vmatprep.subr.mxu0 0.0
      %891 = vmatpush1.msra.mxu0 0.0
      %892 = vmatprep.subr.mxu0 0.0
      %893 = vmatpush1.msra.mxu0 0.0
      %894 = vmatprep.subr.mxu0 0.0
      %895 = vmatpush1.msra.mxu0 0.0
      %896 = vmatprep.subr.mxu0 0.0
      %897 = vmatpush1.msra.mxu0 0.0
      %898 = vmatprep.subr.mxu0 0.0
      %899 = vmatpush1.msra.mxu0 0.0
      %900 = vmatprep.subr.mxu0 0.0
      %901 = vmatpush1.msra.mxu0 0.0
      %902 = vmatprep.subr.mxu0 0.0
      %903 = vmatpush1.msra.mxu0 0.0
      %904 = vmatprep.subr.mxu0 0.0
      %905 = vmatpush1.msra.mxu0 0.0
      %906 = vmatprep.subr.mxu0 0.0
      %907 = vmatpush1.msra.mxu0 0.0
      %908 = vmatprep.subr.mxu0 0.0
      %909 = vmatpush1.msra.mxu0 0.0
      %910 = vmatprep.subr.mxu0 0.0
      %911 = vmatpush1.msra.mxu0 0.0
      %912 = vmatprep.subr.mxu0 0.0
      %913 = vmatpush1.msra.mxu0 0.0
      %914 = vmatprep.subr.mxu0 0.0
      %915 = vmatpush1.msra.mxu0 0.0
      %916 = vmatprep.subr.mxu0 0.0
      %917 = vmatpush1.msra.mxu0 0.0
      %918 = vmatprep.subr.mxu0 0.0
      %919 = vmatpush1.msra.mxu0 0.0
      %920 = vmatprep.subr.mxu0 0.0
      %921 = vmatpush1.msra.mxu0 0.0
      %922 = vmatprep.subr.mxu0 0.0
      %923 = vmatpush1.msra.mxu0 0.0
      %924 = vmatprep.subr.mxu0 0.0
      %925 = vmatpush1.msra.mxu0 0.0
      %926 = vmatprep.mubr.f32.mxu0 0.0
      %927 = vmatmul.mubr.f32.gmra.mrb[0].mxu0 %v509
      %v928 = vpop.f32.mrb[0].mxu0
      %v929 = vadd.f32 %v464, %v928
      %v930 = vpop.f32.mrb[0].mxu0
      %v931 = vadd.f32 %v464, %v930
      %932 = vmatprep.mubr.f32.mxu0 0.0
      %933 = vmatmul.mubr.f32.gmra.mrb[0].mxu0 %v512
      %v934 = vpop.f32.mrb[0].mxu0
      %v935 = vadd.f32 %v469, %v934
      %v936 = vpop.f32.mrb[0].mxu0
      %v937 = vadd.f32 %v469, %v936
      %938 = vmatprep.mubr.f32.mxu0 0.0
      %939 = vmatmul.mubr.f32.gmra.mrb[0].mxu0 %v515
      %v940 = vpop.f32.mrb[0].mxu0
      %v941 = vadd.f32 %v474, %v940
      %v942 = vpop.f32.mrb[0].mxu0
      %v943 = vadd.f32 %v474, %v942
      %944 = vmatprep.mubr.f32.mxu0 0.0
      %945 = vmatmul.mubr.f32.gmra.mrb[0].mxu0 %v518
      %v946 = vpop.f32.mrb[0].mxu0
      %v947 = vadd.f32 %v479, %v946
      %v948 = vpop.f32.mrb[0].mxu0
      %v949 = vadd.f32 %v479, %v948
      %950 = vmatprep.mubr.f32.mxu0 0.0
      %951 = vmatmul.mubr.f32.gmra.mrb[0].mxu0 %v521
      %v952 = vpop.f32.mrb[0].mxu0
      %v953 = vadd.f32 %v484, %v952
      %v954 = vpop.f32.mrb[0].mxu0
      %v955 = vadd.f32 %v484, %v954
      %956 = vmatprep.mubr.f32.mxu0 0.0
      %957 = vmatmul.mubr.f32.gmra.mrb[0].mxu0 %v524
      %v958 = vpop.f32.mrb[0].mxu0
      %v959 = vadd.f32 %v489, %v958
      %v960 = vpop.f32.mrb[0].mxu0
      %v961 = vadd.f32 %v489, %v960
      %962 = vdwg.mxu0
      %963 = vmatprep.subr.mxu0 %v545
      %964 = vmatpush1.msra.mxu0 %v543
      %965 = vmatprep.subr.mxu0 0.0
      %966 = vmatpush1.msra.mxu0 0.0
      %967 = vmatprep.subr.mxu0 0.0
      %968 = vmatpush1.msra.mxu0 0.0
      %969 = vmatprep.subr.mxu0 0.0
      %970 = vmatpush1.msra.mxu0 0.0
      %971 = vmatprep.subr.mxu0 0.0
      %972 = vmatpush1.msra.mxu0 0.0
      %973 = vmatprep.subr.mxu0 0.0
      %974 = vmatpush1.msra.mxu0 0.0
      %975 = vmatprep.subr.mxu0 0.0
      %976 = vmatpush1.msra.mxu0 0.0
      %977 = vmatprep.subr.mxu0 0.0
      %978 = vmatpush1.msra.mxu0 0.0
      %979 = vmatprep.subr.mxu0 0.0
      %980 = vmatpush1.msra.mxu0 0.0
      %981 = vmatprep.subr.mxu0 0.0
      %982 = vmatpush1.msra.mxu0 0.0
      %983 = vmatprep.subr.mxu0 0.0
      %984 = vmatpush1.msra.mxu0 0.0
      %985 = vmatprep.subr.mxu0 0.0
      %986 = vmatpush1.msra.mxu0 0.0
      %987 = vmatprep.subr.mxu0 0.0
      %988 = vmatpush1.msra.mxu0 0.0
      %989 = vmatprep.subr.mxu0 0.0
      %990 = vmatpush1.msra.mxu0 0.0
      %991 = vmatprep.subr.mxu0 0.0
      %992 = vmatpush1.msra.mxu0 0.0
      %993 = vmatprep.subr.mxu0 0.0
      %994 = vmatpush1.msra.mxu0 0.0
      %995 = vmatprep.subr.mxu0 0.0
      %996 = vmatpush1.msra.mxu0 0.0
      %997 = vmatprep.subr.mxu0 0.0
      %998 = vmatpush1.msra.mxu0 0.0
      %999 = vmatprep.subr.mxu0 0.0
      %1000 = vmatpush1.msra.mxu0 0.0
      %1001 = vmatprep.subr.mxu0 0.0
      %1002 = vmatpush1.msra.mxu0 0.0
      %1003 = vmatprep.subr.mxu0 0.0
      %1004 = vmatpush1.msra.mxu0 0.0
      %1005 = vmatprep.subr.mxu0 0.0
      %1006 = vmatpush1.msra.mxu0 0.0
      %1007 = vmatprep.subr.mxu0 0.0
      %1008 = vmatpush1.msra.mxu0 0.0
      %1009 = vmatprep.subr.mxu0 0.0
      %1010 = vmatpush1.msra.mxu0 0.0
      %1011 = vmatprep.subr.mxu0 0.0
      %1012 = vmatpush1.msra.mxu0 0.0
      %1013 = vmatprep.subr.mxu0 0.0
      %1014 = vmatpush1.msra.mxu0 0.0
      %1015 = vmatprep.subr.mxu0 0.0
      %1016 = vmatpush1.msra.mxu0 0.0
      %1017 = vmatprep.subr.mxu0 0.0
      %1018 = vmatpush1.msra.mxu0 0.0
      %1019 = vmatprep.subr.mxu0 0.0
      %1020 = vmatpush1.msra.mxu0 0.0
      %1021 = vmatprep.subr.mxu0 0.0
      %1022 = vmatpush1.msra.mxu0 0.0
      %1023 = vmatprep.subr.mxu0 0.0
      %1024 = vmatpush1.msra.mxu0 0.0
      %1025 = vmatprep.subr.mxu0 0.0
      %1026 = vmatpush1.msra.mxu0 0.0
      %1027 = vmatprep.mubr.f32.mxu0 0.0
      %1028 = vmatmul.mubr.f32.gmra.mrb[0].mxu0 %v509
      %v1029 = vpop.f32.mrb[0].mxu0
      %v1030 = vadd.f32 %v464, %v1029
      %v1031 = vpop.f32.mrb[0].mxu0
      %v1032 = vadd.f32 %v464, %v1031
      %1033 = vmatprep.mubr.f32.mxu0 0.0
      %1034 = vmatmul.mubr.f32.gmra.mrb[0].mxu0 %v512
      %v1035 = vpop.f32.mrb[0].mxu0
      %v1036 = vadd.f32 %v469, %v1035
      %v1037 = vpop.f32.mrb[0].mxu0
      %v1038 = vadd.f32 %v469, %v1037
      %1039 = vmatprep.mubr.f32.mxu0 0.0
      %1040 = vmatmul.mubr.f32.gmra.mrb[0].mxu0 %v515
      %v1041 = vpop.f32.mrb[0].mxu0
      %v1042 = vadd.f32 %v474, %v1041
      %v1043 = vpop.f32.mrb[0].mxu0
      %v1044 = vadd.f32 %v474, %v1043
      %1045 = vmatprep.mubr.f32.mxu0 0.0
      %1046 = vmatmul.mubr.f32.gmra.mrb[0].mxu0 %v518
      %v1047 = vpop.f32.mrb[0].mxu0
      %v1048 = vadd.f32 %v479, %v1047
      %v1049 = vpop.f32.mrb[0].mxu0
      %v1050 = vadd.f32 %v479, %v1049
      %1051 = vmatprep.mubr.f32.mxu0 0.0
      %1052 = vmatmul.mubr.f32.gmra.mrb[0].mxu0 %v521
      %v1053 = vpop.f32.mrb[0].mxu0
      %v1054 = vadd.f32 %v484, %v1053
      %v1055 = vpop.f32.mrb[0].mxu0
      %v1056 = vadd.f32 %v484, %v1055
      %1057 = vmatprep.mubr.f32.mxu0 0.0
      %1058 = vmatmul.mubr.f32.gmra.mrb[0].mxu0 %v524
      %v1059 = vpop.f32.mrb[0].mxu0
      %v1060 = vadd.f32 %v489, %v1059
      %v1061 = vpop.f32.mrb[0].mxu0
      %v1062 = vadd.f32 %v489, %v1061
      %1063 = vdwg.mxu0
      %1064 = vmatprep.subr.mxu0 %v549
      %1065 = vmatpush1.msra.mxu0 %v547
      %1066 = vmatprep.subr.mxu0 0.0
      %1067 = vmatpush1.msra.mxu0 0.0
      %1068 = vmatprep.subr.mxu0 0.0
      %1069 = vmatpush1.msra.mxu0 0.0
      %1070 = vmatprep.subr.mxu0 0.0
      %1071 = vmatpush1.msra.mxu0 0.0
      %1072 = vmatprep.subr.mxu0 0.0
      %1073 = vmatpush1.msra.mxu0 0.0
      %1074 = vmatprep.subr.mxu0 0.0
      %1075 = vmatpush1.msra.mxu0 0.0
      %1076 = vmatprep.subr.mxu0 0.0
      %1077 = vmatpush1.msra.mxu0 0.0
      %1078 = vmatprep.subr.mxu0 0.0
      %1079 = vmatpush1.msra.mxu0 0.0
      %1080 = vmatprep.subr.mxu0 0.0
      %1081 = vmatpush1.msra.mxu0 0.0
      %1082 = vmatprep.subr.mxu0 0.0
      %1083 = vmatpush1.msra.mxu0 0.0
      %1084 = vmatprep.subr.mxu0 0.0
      %1085 = vmatpush1.msra.mxu0 0.0
      %1086 = vmatprep.subr.mxu0 0.0
      %1087 = vmatpush1.msra.mxu0 0.0
      %1088 = vmatprep.subr.mxu0 0.0
      %1089 = vmatpush1.msra.mxu0 0.0
      %1090 = vmatprep.subr.mxu0 0.0
      %1091 = vmatpush1.msra.mxu0 0.0
      %1092 = vmatprep.subr.mxu0 0.0
      %1093 = vmatpush1.msra.mxu0 0.0
      %1094 = vmatprep.subr.mxu0 0.0
      %1095 = vmatpush1.msra.mxu0 0.0
      %1096 = vmatprep.subr.mxu0 0.0
      %1097 = vmatpush1.msra.mxu0 0.0
      %1098 = vmatprep.subr.mxu0 0.0
      %1099 = vmatpush1.msra.mxu0 0.0
      %1100 = vmatprep.subr.mxu0 0.0
      %1101 = vmatpush1.msra.mxu0 0.0
      %1102 = vmatprep.subr.mxu0 0.0
      %1103 = vmatpush1.msra.mxu0 0.0
      %1104 = vmatprep.subr.mxu0 0.0
      %1105 = vmatpush1.msra.mxu0 0.0
      %1106 = vmatprep.subr.mxu0 0.0
      %1107 = vmatpush1.msra.mxu0 0.0
      %1108 = vmatprep.subr.mxu0 0.0
      %1109 = vmatpush1.msra.mxu0 0.0
      %1110 = vmatprep.subr.mxu0 0.0
      %1111 = vmatpush1.msra.mxu0 0.0
      %1112 = vmatprep.subr.mxu0 0.0
      %1113 = vmatpush1.msra.mxu0 0.0
      %1114 = vmatprep.subr.mxu0 0.0
      %1115 = vmatpush1.msra.mxu0 0.0
      %1116 = vmatprep.subr.mxu0 0.0
      %1117 = vmatpush1.msra.mxu0 0.0
      %1118 = vmatprep.subr.mxu0 0.0
      %1119 = vmatpush1.msra.mxu0 0.0
      %1120 = vmatprep.subr.mxu0 0.0
      %1121 = vmatpush1.msra.mxu0 0.0
      %1122 = vmatprep.subr.mxu0 0.0
      %1123 = vmatpush1.msra.mxu0 0.0
      %1124 = vmatprep.subr.mxu0 0.0
      %1125 = vmatpush1.msra.mxu0 0.0
      %1126 = vmatprep.subr.mxu0 0.0
      %1127 = vmatpush1.msra.mxu0 0.0
      %1128 = vmatprep.mubr.f32.mxu0 0.0
      %1129 = vmatmul.mubr.f32.gmra.mrb[0].mxu0 %v509
      %v1130 = vpop.f32.mrb[0].mxu0
      %v1131 = vadd.f32 %v464, %v1130
      %v1132 = vpop.f32.mrb[0].mxu0
      %v1133 = vadd.f32 %v464, %v1132
      %1134 = vmatprep.mubr.f32.mxu0 0.0
      %1135 = vmatmul.mubr.f32.gmra.mrb[0].mxu0 %v512
      %v1136 = vpop.f32.mrb[0].mxu0
      %v1137 = vadd.f32 %v469, %v1136
      %v1138 = vpop.f32.mrb[0].mxu0
      %v1139 = vadd.f32 %v469, %v1138
      %1140 = vmatprep.mubr.f32.mxu0 0.0
      %1141 = vmatmul.mubr.f32.gmra.mrb[0].mxu0 %v515
      %v1142 = vpop.f32.mrb[0].mxu0
      %v1143 = vadd.f32 %v474, %v1142
      %v1144 = vpop.f32.mrb[0].mxu0
      %v1145 = vadd.f32 %v474, %v1144
      %1146 = vmatprep.mubr.f32.mxu0 0.0
      %1147 = vmatmul.mubr.f32.gmra.mrb[0].mxu0 %v518
      %v1148 = vpop.f32.mrb[0].mxu0
      %v1149 = vadd.f32 %v479, %v1148
      %v1150 = vpop.f32.mrb[0].mxu0
      %v1151 = vadd.f32 %v479, %v1150
      %1152 = vmatprep.mubr.f32.mxu0 0.0
      %1153 = vmatmul.mubr.f32.gmra.mrb[0].mxu0 %v521
      %v1154 = vpop.f32.mrb[0].mxu0
      %v1155 = vadd.f32 %v484, %v1154
      %v1156 = vpop.f32.mrb[0].mxu0
      %v1157 = vadd.f32 %v484, %v1156
      %1158 = vmatprep.mubr.f32.mxu0 0.0
      %1159 = vmatmul.mubr.f32.gmra.mrb[0].mxu0 %v524
      %v1160 = vpop.f32.mrb[0].mxu0
      %v1161 = vadd.f32 %v489, %v1160
      %v1162 = vpop.f32.mrb[0].mxu0
      %v1163 = vadd.f32 %v489, %v1162
      %1164 = vdwg.mxu0
      %1165 = vmatprep.subr.mxu0 %v553
      %1166 = vmatpush1.msra.mxu0 %v551
      %1167 = vmatprep.subr.mxu0 0.0
      %1168 = vmatpush1.msra.mxu0 0.0
      %1169 = vmatprep.subr.mxu0 0.0
      %1170 = vmatpush1.msra.mxu0 0.0
      %1171 = vmatprep.subr.mxu0 0.0
      %1172 = vmatpush1.msra.mxu0 0.0
      %1173 = vmatprep.subr.mxu0 0.0
      %1174 = vmatpush1.msra.mxu0 0.0
      %1175 = vmatprep.subr.mxu0 0.0
      %1176 = vmatpush1.msra.mxu0 0.0
      %1177 = vmatprep.subr.mxu0 0.0
      %1178 = vmatpush1.msra.mxu0 0.0
      %1179 = vmatprep.subr.mxu0 0.0
      %1180 = vmatpush1.msra.mxu0 0.0
      %1181 = vmatprep.subr.mxu0 0.0
      %1182 = vmatpush1.msra.mxu0 0.0
      %1183 = vmatprep.subr.mxu0 0.0
      %1184 = vmatpush1.msra.mxu0 0.0
      %1185 = vmatprep.subr.mxu0 0.0
      %1186 = vmatpush1.msra.mxu0 0.0
      %1187 = vmatprep.subr.mxu0 0.0
      %1188 = vmatpush1.msra.mxu0 0.0
      %1189 = vmatprep.subr.mxu0 0.0
      %1190 = vmatpush1.msra.mxu0 0.0
      %1191 = vmatprep.subr.mxu0 0.0
      %1192 = vmatpush1.msra.mxu0 0.0
      %1193 = vmatprep.subr.mxu0 0.0
      %1194 = vmatpush1.msra.mxu0 0.0
      %1195 = vmatprep.subr.mxu0 0.0
      %1196 = vmatpush1.msra.mxu0 0.0
      %1197 = vmatprep.subr.mxu0 0.0
      %1198 = vmatpush1.msra.mxu0 0.0
      %1199 = vmatprep.subr.mxu0 0.0
      %1200 = vmatpush1.msra.mxu0 0.0
      %1201 = vmatprep.subr.mxu0 0.0
      %1202 = vmatpush1.msra.mxu0 0.0
      %1203 = vmatprep.subr.mxu0 0.0
      %1204 = vmatpush1.msra.mxu0 0.0
      %1205 = vmatprep.subr.mxu0 0.0
      %1206 = vmatpush1.msra.mxu0 0.0
      %1207 = vmatprep.subr.mxu0 0.0
      %1208 = vmatpush1.msra.mxu0 0.0
      %1209 = vmatprep.subr.mxu0 0.0
      %1210 = vmatpush1.msra.mxu0 0.0
      %1211 = vmatprep.subr.mxu0 0.0
      %1212 = vmatpush1.msra.mxu0 0.0
      %1213 = vmatprep.subr.mxu0 0.0
      %1214 = vmatpush1.msra.mxu0 0.0
      %1215 = vmatprep.subr.mxu0 0.0
      %1216 = vmatpush1.msra.mxu0 0.0
      %1217 = vmatprep.subr.mxu0 0.0
      %1218 = vmatpush1.msra.mxu0 0.0
      %1219 = vmatprep.subr.mxu0 0.0
      %1220 = vmatpush1.msra.mxu0 0.0
      %1221 = vmatprep.subr.mxu0 0.0
      %1222 = vmatpush1.msra.mxu0 0.0
      %1223 = vmatprep.subr.mxu0 0.0
      %1224 = vmatpush1.msra.mxu0 0.0
      %1225 = vmatprep.subr.mxu0 0.0
      %1226 = vmatpush1.msra.mxu0 0.0
      %1227 = vmatprep.subr.mxu0 0.0
      %1228 = vmatpush1.msra.mxu0 0.0
      %1229 = vmatprep.mubr.f32.mxu0 0.0
      %1230 = vmatmul.mubr.f32.gmra.mrb[0].mxu0 %v509
      %v1231 = vpop.f32.mrb[0].mxu0
      %v1232 = vadd.f32 %v464, %v1231
      %v1233 = vpop.f32.mrb[0].mxu0
      %v1234 = vadd.f32 %v464, %v1233
      %1235 = vmatprep.mubr.f32.mxu0 0.0
      %1236 = vmatmul.mubr.f32.gmra.mrb[0].mxu0 %v512
      %v1237 = vpop.f32.mrb[0].mxu0
      %v1238 = vadd.f32 %v469, %v1237
      %v1239 = vpop.f32.mrb[0].mxu0
      %v1240 = vadd.f32 %v469, %v1239
      %1241 = vmatprep.mubr.f32.mxu0 0.0
      %1242 = vmatmul.mubr.f32.gmra.mrb[0].mxu0 %v515
      %v1243 = vpop.f32.mrb[0].mxu0
      %v1244 = vadd.f32 %v474, %v1243
      %v1245 = vpop.f32.mrb[0].mxu0
      %v1246 = vadd.f32 %v474, %v1245
      %1247 = vmatprep.mubr.f32.mxu0 0.0
      %1248 = vmatmul.mubr.f32.gmra.mrb[0].mxu0 %v518
      %v1249 = vpop.f32.mrb[0].mxu0
      %v1250 = vadd.f32 %v479, %v1249
      %v1251 = vpop.f32.mrb[0].mxu0
      %v1252 = vadd.f32 %v479, %v1251
      %1253 = vmatprep.mubr.f32.mxu0 0.0
      %1254 = vmatmul.mubr.f32.gmra.mrb[0].mxu0 %v521
      %v1255 = vpop.f32.mrb[0].mxu0
      %v1256 = vadd.f32 %v484, %v1255
      %v1257 = vpop.f32.mrb[0].mxu0
      %v1258 = vadd.f32 %v484, %v1257
      %1259 = vmatprep.mubr.f32.mxu0 0.0
      %1260 = vmatmul.mubr.f32.gmra.mrb[0].mxu0 %v524
      %v1261 = vpop.f32.mrb[0].mxu0
      %v1262 = vadd.f32 %v489, %v1261
      %v1263 = vpop.f32.mrb[0].mxu0
      %v1264 = vadd.f32 %v489, %v1263
      %1265 = vdwg.mxu0
      %1266 = vmatprep.subr.mxu0 %v557
      %1267 = vmatpush1.msra.mxu0 %v555
      %1268 = vmatprep.subr.mxu0 0.0
      %1269 = vmatpush1.msra.mxu0 0.0
      %1270 = vmatprep.subr.mxu0 0.0
      %1271 = vmatpush1.msra.mxu0 0.0
      %1272 = vmatprep.subr.mxu0 0.0
      %1273 = vmatpush1.msra.mxu0 0.0
      %1274 = vmatprep.subr.mxu0 0.0
      %1275 = vmatpush1.msra.mxu0 0.0
      %1276 = vmatprep.subr.mxu0 0.0
      %1277 = vmatpush1.msra.mxu0 0.0
      %1278 = vmatprep.subr.mxu0 0.0
      %1279 = vmatpush1.msra.mxu0 0.0
      %1280 = vmatprep.subr.mxu0 0.0
      %1281 = vmatpush1.msra.mxu0 0.0
      %1282 = vmatprep.subr.mxu0 0.0
      %1283 = vmatpush1.msra.mxu0 0.0
      %1284 = vmatprep.subr.mxu0 0.0
      %1285 = vmatpush1.msra.mxu0 0.0
      %1286 = vmatprep.subr.mxu0 0.0
      %1287 = vmatpush1.msra.mxu0 0.0
      %1288 = vmatprep.subr.mxu0 0.0
      %1289 = vmatpush1.msra.mxu0 0.0
      %1290 = vmatprep.subr.mxu0 0.0
      %1291 = vmatpush1.msra.mxu0 0.0
      %1292 = vmatprep.subr.mxu0 0.0
      %1293 = vmatpush1.msra.mxu0 0.0
      %1294 = vmatprep.subr.mxu0 0.0
      %1295 = vmatpush1.msra.mxu0 0.0
      %1296 = vmatprep.subr.mxu0 0.0
      %1297 = vmatpush1.msra.mxu0 0.0
      %1298 = vmatprep.subr.mxu0 0.0
      %1299 = vmatpush1.msra.mxu0 0.0
      %1300 = vmatprep.subr.mxu0 0.0
      %1301 = vmatpush1.msra.mxu0 0.0
      %1302 = vmatprep.subr.mxu0 0.0
      %1303 = vmatpush1.msra.mxu0 0.0
      %1304 = vmatprep.subr.mxu0 0.0
      %1305 = vmatpush1.msra.mxu0 0.0
      %1306 = vmatprep.subr.mxu0 0.0
      %1307 = vmatpush1.msra.mxu0 0.0
      %1308 = vmatprep.subr.mxu0 0.0
      %1309 = vmatpush1.msra.mxu0 0.0
      %1310 = vmatprep.subr.mxu0 0.0
      %1311 = vmatpush1.msra.mxu0 0.0
      %1312 = vmatprep.subr.mxu0 0.0
      %1313 = vmatpush1.msra.mxu0 0.0
      %1314 = vmatprep.subr.mxu0 0.0
      %1315 = vmatpush1.msra.mxu0 0.0
      %1316 = vmatprep.subr.mxu0 0.0
      %1317 = vmatpush1.msra.mxu0 0.0
      %1318 = vmatprep.subr.mxu0 0.0
      %1319 = vmatpush1.msra.mxu0 0.0
      %1320 = vmatprep.subr.mxu0 0.0
      %1321 = vmatpush1.msra.mxu0 0.0
      %1322 = vmatprep.subr.mxu0 0.0
      %1323 = vmatpush1.msra.mxu0 0.0
      %1324 = vmatprep.subr.mxu0 0.0
      %1325 = vmatpush1.msra.mxu0 0.0
      %1326 = vmatprep.subr.mxu0 0.0
      %1327 = vmatpush1.msra.mxu0 0.0
      %1328 = vmatprep.subr.mxu0 0.0
      %1329 = vmatpush1.msra.mxu0 0.0
      %1330 = vmatprep.mubr.f32.mxu0 0.0
      %1331 = vmatmul.mubr.f32.gmra.mrb[0].mxu0 %v509
      %v1332 = vpop.f32.mrb[0].mxu0
      %v1333 = vadd.f32 %v464, %v1332
      %v1334 = vpop.f32.mrb[0].mxu0
      %v1335 = vadd.f32 %v464, %v1334
      %1336 = vmatprep.mubr.f32.mxu0 0.0
      %1337 = vmatmul.mubr.f32.gmra.mrb[0].mxu0 %v512
      %v1338 = vpop.f32.mrb[0].mxu0
      %v1339 = vadd.f32 %v469, %v1338
      %v1340 = vpop.f32.mrb[0].mxu0
      %v1341 = vadd.f32 %v469, %v1340
      %1342 = vmatprep.mubr.f32.mxu0 0.0
      %1343 = vmatmul.mubr.f32.gmra.mrb[0].mxu0 %v515
      %v1344 = vpop.f32.mrb[0].mxu0
      %v1345 = vadd.f32 %v474, %v1344
      %v1346 = vpop.f32.mrb[0].mxu0
      %v1347 = vadd.f32 %v474, %v1346
      %1348 = vmatprep.mubr.f32.mxu0 0.0
      %1349 = vmatmul.mubr.f32.gmra.mrb[0].mxu0 %v518
      %v1350 = vpop.f32.mrb[0].mxu0
      %v1351 = vadd.f32 %v479, %v1350
      %v1352 = vpop.f32.mrb[0].mxu0
      %v1353 = vadd.f32 %v479, %v1352
      %1354 = vmatprep.mubr.f32.mxu0 0.0
      %1355 = vmatmul.mubr.f32.gmra.mrb[0].mxu0 %v521
      %v1356 = vpop.f32.mrb[0].mxu0
      %v1357 = vadd.f32 %v484, %v1356
      %v1358 = vpop.f32.mrb[0].mxu0
      %v1359 = vadd.f32 %v484, %v1358
      %1360 = vmatprep.mubr.f32.mxu0 0.0
      %1361 = vmatmul.mubr.f32.gmra.mrb[0].mxu0 %v524
      %v1362 = vpop.f32.mrb[0].mxu0
      %v1363 = vadd.f32 %v489, %v1362
      %v1364 = vpop.f32.mrb[0].mxu0
      %v1365 = vadd.f32 %v489, %v1364
      %1366 = vdwg.mxu0
      %v1367 = vmax.f32 %v626, 0.0
      %v1368 = vmax.f32 %v628, 0.0
      %v1369 = vmax.f32 %v727, 0.0
      %v1370 = vmax.f32 %v729, 0.0
      %v1371 = vmax.f32 %v828, 0.0
      %v1372 = vmax.f32 %v830, 0.0
      %v1373 = vmax.f32 %v929, 0.0
      %v1374 = vmax.f32 %v931, 0.0
      %v1375 = vmax.f32 %v1030, 0.0
      %v1376 = vmax.f32 %v1032, 0.0
      %v1377 = vmax.f32 %v1131, 0.0
      %v1378 = vmax.f32 %v1133, 0.0
      %v1379 = vmax.f32 %v1232, 0.0
      %v1380 = vmax.f32 %v1234, 0.0
      %v1381 = vmax.f32 %v1333, 0.0
      %v1382 = vmax.f32 %v1335, 0.0
      %v1383 = vmax.f32 %v632, 0.0
      %v1384 = vmax.f32 %v634, 0.0
      %v1385 = vmax.f32 %v733, 0.0
      %v1386 = vmax.f32 %v735, 0.0
      %v1387 = vmax.f32 %v834, 0.0
      %v1388 = vmax.f32 %v836, 0.0
      %v1389 = vmax.f32 %v935, 0.0
      %v1390 = vmax.f32 %v937, 0.0
      %v1391 = vmax.f32 %v1036, 0.0
      %v1392 = vmax.f32 %v1038, 0.0
      %v1393 = vmax.f32 %v1137, 0.0
      %v1394 = vmax.f32 %v1139, 0.0
      %v1395 = vmax.f32 %v1238, 0.0
      %v1396 = vmax.f32 %v1240, 0.0
      %v1397 = vmax.f32 %v1339, 0.0
      %v1398 = vmax.f32 %v1341, 0.0
      %v1399 = vmax.f32 %v638, 0.0
      %v1400 = vmax.f32 %v640, 0.0
      %v1401 = vmax.f32 %v739, 0.0
      %v1402 = vmax.f32 %v741, 0.0
      %v1403 = vmax.f32 %v840, 0.0
      %v1404 = vmax.f32 %v842, 0.0
      %v1405 = vmax.f32 %v941, 0.0
      %v1406 = vmax.f32 %v943, 0.0
      %v1407 = vmax.f32 %v1042, 0.0
      %v1408 = vmax.f32 %v1044, 0.0
      %v1409 = vmax.f32 %v1143, 0.0
      %v1410 = vmax.f32 %v1145, 0.0
      %v1411 = vmax.f32 %v1244, 0.0
      %v1412 = vmax.f32 %v1246, 0.0
      %v1413 = vmax.f32 %v1345, 0.0
      %v1414 = vmax.f32 %v1347, 0.0
      %v1415 = vmax.f32 %v644, 0.0
      %v1416 = vmax.f32 %v646, 0.0
      %v1417 = vmax.f32 %v745, 0.0
      %v1418 = vmax.f32 %v747, 0.0
      %v1419 = vmax.f32 %v846, 0.0
      %v1420 = vmax.f32 %v848, 0.0
      %v1421 = vmax.f32 %v947, 0.0
      %v1422 = vmax.f32 %v949, 0.0
      %v1423 = vmax.f32 %v1048, 0.0
      %v1424 = vmax.f32 %v1050, 0.0
      %v1425 = vmax.f32 %v1149, 0.0
      %v1426 = vmax.f32 %v1151, 0.0
      %v1427 = vmax.f32 %v1250, 0.0
      %v1428 = vmax.f32 %v1252, 0.0
      %v1429 = vmax.f32 %v1351, 0.0
      %v1430 = vmax.f32 %v1353, 0.0
      %v1431 = vmax.f32 %v650, 0.0
      %v1432 = vmax.f32 %v652, 0.0
      %v1433 = vmax.f32 %v751, 0.0
      %v1434 = vmax.f32 %v753, 0.0
      %v1435 = vmax.f32 %v852, 0.0
      %v1436 = vmax.f32 %v854, 0.0
      %v1437 = vmax.f32 %v953, 0.0
      %v1438 = vmax.f32 %v955, 0.0
      %v1439 = vmax.f32 %v1054, 0.0
      %v1440 = vmax.f32 %v1056, 0.0
      %v1441 = vmax.f32 %v1155, 0.0
      %v1442 = vmax.f32 %v1157, 0.0
      %v1443 = vmax.f32 %v1256, 0.0
      %v1444 = vmax.f32 %v1258, 0.0
      %v1445 = vmax.f32 %v1357, 0.0
      %v1446 = vmax.f32 %v1359, 0.0
      %v1447 = vmax.f32 %v656, 0.0
      %v1448 = vmax.f32 %v658, 0.0
      %v1449 = vmax.f32 %v757, 0.0
      %v1450 = vmax.f32 %v759, 0.0
      %v1451 = vmax.f32 %v858, 0.0
      %v1452 = vmax.f32 %v860, 0.0
      %v1453 = vmax.f32 %v959, 0.0
      %v1454 = vmax.f32 %v961, 0.0
      %v1455 = vmax.f32 %v1060, 0.0
      %v1456 = vmax.f32 %v1062, 0.0
      %v1457 = vmax.f32 %v1161, 0.0
      %v1458 = vmax.f32 %v1163, 0.0
      %v1459 = vmax.f32 %v1262, 0.0
      %v1460 = vmax.f32 %v1264, 0.0
      %v1461 = vmax.f32 %v1363, 0.0
      %v1462 = vmax.f32 %v1365, 0.0
      %v1463 = vld [vmem:[%s1] sm:$0xff]
      %v1464 = vld [vmem:[%s1 + $0x8] sm:$0xff]
      %v1465 = vld [vmem:[%s1 + $0x10] sm:$0xff]
      %v1466 = vld [vmem:[%s1 + $0x18] sm:$0xff]
      %v1467 = vld [vmem:[%s1 + $0x20] sm:$0xff]
      %v1468 = vld [vmem:[%s1 + $0x28] sm:$0xff]
      %v1469 = vld [vmem:[%s1 + $0x30] sm:$0xff]
      %v1470 = vld [vmem:[%s1 + $0x38] sm:$0xff]
      %v1471 = vld [vmem:[%s1 + $0x40] sm:$0xff]
      %v1472 = vld [vmem:[%s1 + $0x48] sm:$0xff]
      %v1473 = vld [vmem:[%s1 + $0x50] sm:$0xff]
      %v1474 = vld [vmem:[%s1 + $0x58] sm:$0xff]
      %v1475 = vld [vmem:[%s1 + $0x60] sm:$0xff]
      %v1476 = vld [vmem:[%s1 + $0x68] sm:$0xff]
      %v1477 = vld [vmem:[%s1 + $0x70] sm:$0xff]
      %v1478 = vld [vmem:[%s1 + $0x78] sm:$0xff]
      %v1479 = vld [vmem:[%s1 + $0x80] sm:$0xff]
      %v1480 = vld [vmem:[%s1 + $0x88] sm:$0xff]
      %v1481 = vld [vmem:[%s1 + $0x90] sm:$0xff]
      %v1482 = vld [vmem:[%s1 + $0x98] sm:$0xff]
      %v1483 = vld [vmem:[%s1 + $0xa0] sm:$0xff]
      %v1484 = vld [vmem:[%s1 + $0xa8] sm:$0xff]
      %v1485 = vld [vmem:[%s1 + $0xb0] sm:$0xff]
      %v1486 = vld [vmem:[%s1 + $0xb8] sm:$0xff]
      %v1487 = vld [vmem:[%s1 + $0xc0] sm:$0xff]
      %v1488 = vld [vmem:[%s1 + $0xc8] sm:$0xff]
      %v1489 = vld [vmem:[%s1 + $0xd0] sm:$0xff]
      %v1490 = vld [vmem:[%s1 + $0xd8] sm:$0xff]
      %v1491 = vld [vmem:[%s1 + $0xe0] sm:$0xff]
      %v1492 = vld [vmem:[%s1 + $0xe8] sm:$0xff]
      %v1493 = vld [vmem:[%s1 + $0xf0] sm:$0xff]
      %v1494 = vld [vmem:[%s1 + $0xf8] sm:$0xff]
      %v1495 = vld [vmem:[%s1 + $0x100] sm:$0xff]
      %v1496 = vld [vmem:[%s1 + $0x108] sm:$0xff]
      %v1497 = vld [vmem:[%s1 + $0x110] sm:$0xff]
      %v1498 = vld [vmem:[%s1 + $0x118] sm:$0xff]
      %v1499 = vld [vmem:[%s1 + $0x120] sm:$0xff]
      %v1500 = vld [vmem:[%s1 + $0x128] sm:$0xff]
      %v1501 = vld [vmem:[%s1 + $0x130] sm:$0xff]
      %v1502 = vld [vmem:[%s1 + $0x138] sm:$0xff]
      %v1503 = vld [vmem:[%s1 + $0x140] sm:$0xff]
      %v1504 = vld [vmem:[%s1 + $0x148] sm:$0xff]
      %v1505 = vld [vmem:[%s1 + $0x150] sm:$0xff]
      %v1506 = vld [vmem:[%s1 + $0x158] sm:$0xff]
      %v1507 = vld [vmem:[%s1 + $0x160] sm:$0xff]
      %v1508 = vld [vmem:[%s1 + $0x168] sm:$0xff]
      %v1509 = vld [vmem:[%s1 + $0x170] sm:$0xff]
      %v1510 = vld [vmem:[%s1 + $0x178] sm:$0xff]
      %v1511 = vld [vmem:[%s1 + $0x180] sm:$0xff]
      %v1512 = vld [vmem:[%s1 + $0x188] sm:$0xff]
      %v1513 = vld [vmem:[%s1 + $0x190] sm:$0xff]
      %v1514 = vld [vmem:[%s1 + $0x198] sm:$0xff]
      %v1515 = vld [vmem:[%s1 + $0x1a0] sm:$0xff]
      %v1516 = vld [vmem:[%s1 + $0x1a8] sm:$0xff]
      %v1517 = vld [vmem:[%s1 + $0x1b0] sm:$0xff]
      %v1518 = vld [vmem:[%s1 + $0x1b8] sm:$0xff]
      %v1519 = vld [vmem:[%s1 + $0x1c0] sm:$0xff]
      %v1520 = vld [vmem:[%s1 + $0x1c8] sm:$0xff]
      %v1521 = vld [vmem:[%s1 + $0x1d0] sm:$0xff]
      %v1522 = vld [vmem:[%s1 + $0x1d8] sm:$0xff]
      %v1523 = vld [vmem:[%s1 + $0x1e0] sm:$0xff]
      %v1524 = vld [vmem:[%s1 + $0x1e8] sm:$0xff]
      %v1525 = vld [vmem:[%s1 + $0x1f0] sm:$0xff]
      %v1526 = vld [vmem:[%s1 + $0x1f8] sm:$0xff]
      %v1527 = vld [vmem:[%s1 + $0x200] sm:$0xff]
      %v1528 = vld [vmem:[%s1 + $0x208] sm:$0xff]
      %v1529 = vld [vmem:[%s1 + $0x210] sm:$0xff]
      %v1530 = vld [vmem:[%s1 + $0x218] sm:$0xff]
      %v1531 = vld [vmem:[%s1 + $0x220] sm:$0xff]
      %v1532 = vld [vmem:[%s1 + $0x228] sm:$0xff]
      %v1533 = vld [vmem:[%s1 + $0x230] sm:$0xff]
      %v1534 = vld [vmem:[%s1 + $0x238] sm:$0xff]
      %v1535 = vld [vmem:[%s1 + $0x240] sm:$0xff]
      %v1536 = vld [vmem:[%s1 + $0x248] sm:$0xff]
      %v1537 = vld [vmem:[%s1 + $0x250] sm:$0xff]
      %v1538 = vld [vmem:[%s1 + $0x258] sm:$0xff]
      %v1539 = vld [vmem:[%s1 + $0x260] sm:$0xff]
      %v1540 = vld [vmem:[%s1 + $0x268] sm:$0xff]
      %v1541 = vld [vmem:[%s1 + $0x270] sm:$0xff]
      %v1542 = vld [vmem:[%s1 + $0x278] sm:$0xff]
      %v1543 = vld [vmem:[%s1 + $0x280] sm:$0xff]
      %v1544 = vld [vmem:[%s1 + $0x288] sm:$0xff]
      %v1545 = vld [vmem:[%s1 + $0x290] sm:$0xff]
      %v1546 = vld [vmem:[%s1 + $0x298] sm:$0xff]
      %v1547 = vld [vmem:[%s1 + $0x2a0] sm:$0xff]
      %v1548 = vld [vmem:[%s1 + $0x2a8] sm:$0xff]
      %v1549 = vld [vmem:[%s1 + $0x2b0] sm:$0xff]
      %v1550 = vld [vmem:[%s1 + $0x2b8] sm:$0xff]
      %v1551 = vld [vmem:[%s1 + $0x2c0] sm:$0xff]
      %v1552 = vld [vmem:[%s1 + $0x2c8] sm:$0xff]
      %v1553 = vld [vmem:[%s1 + $0x2d0] sm:$0xff]
      %v1554 = vld [vmem:[%s1 + $0x2d8] sm:$0xff]
      %v1555 = vld [vmem:[%s1 + $0x2e0] sm:$0xff]
      %v1556 = vld [vmem:[%s1 + $0x2e8] sm:$0xff]
      %v1557 = vld [vmem:[%s1 + $0x2f0] sm:$0xff]
      %v1558 = vld [vmem:[%s1 + $0x2f8] sm:$0xff]
      %v1559 = vld [vmem:[%s1 + $0x300] sm:$0xff]
      %v1560 = vld [vmem:[%s1 + $0x308] sm:$0xff]
      %v1561 = vld [vmem:[%s1 + $0x310] sm:$0xff]
      %v1562 = vld [vmem:[%s1 + $0x318] sm:$0xff]
      %v1563 = vld [vmem:[%s1 + $0x320] sm:$0xff]
      %v1564 = vld [vmem:[%s1 + $0x328] sm:$0xff]
      %v1565 = vld [vmem:[%s1 + $0x330] sm:$0xff]
      %v1566 = vld [vmem:[%s1 + $0x338] sm:$0xff]
      %v1567 = vld [vmem:[%s1 + $0x340] sm:$0xff]
      %v1568 = vld [vmem:[%s1 + $0x348] sm:$0xff]
      %v1569 = vld [vmem:[%s1 + $0x350] sm:$0xff]
      %v1570 = vld [vmem:[%s1 + $0x358] sm:$0xff]
      %v1571 = vld [vmem:[%s1 + $0x360] sm:$0xff]
      %v1572 = vld [vmem:[%s1 + $0x368] sm:$0xff]
      %v1573 = vld [vmem:[%s1 + $0x370] sm:$0xff]
      %v1574 = vld [vmem:[%s1 + $0x378] sm:$0xff]
      %v1575 = vld [vmem:[%s1 + $0x380] sm:$0xff]
      %v1576 = vld [vmem:[%s1 + $0x388] sm:$0xff]
      %v1577 = vld [vmem:[%s1 + $0x390] sm:$0xff]
      %v1578 = vld [vmem:[%s1 + $0x398] sm:$0xff]
      %v1579 = vld [vmem:[%s1 + $0x3a0] sm:$0xff]
      %v1580 = vld [vmem:[%s1 + $0x3a8] sm:$0xff]
      %v1581 = vld [vmem:[%s1 + $0x3b0] sm:$0xff]
      %v1582 = vld [vmem:[%s1 + $0x3b8] sm:$0xff]
      %v1583 = vld [vmem:[%s1 + $0x3c0] sm:$0xff]
      %v1584 = vld [vmem:[%s1 + $0x3c8] sm:$0xff]
      %v1585 = vld [vmem:[%s1 + $0x3d0] sm:$0xff]
      %v1586 = vld [vmem:[%s1 + $0x3d8] sm:$0xff]
      %v1587 = vld [vmem:[%s1 + $0x3e0] sm:$0xff]
      %v1588 = vld [vmem:[%s1 + $0x3e8] sm:$0xff]
      %v1589 = vld [vmem:[%s1 + $0x3f0] sm:$0xff]
      %v1590 = vld [vmem:[%s1 + $0x3f8] sm:$0xff]
      %v1591 = vld [vmem:[%s1 + $0x400] sm:$0xff]
      %v1592 = vld [vmem:[%s1 + $0x408] sm:$0xff]
      %v1593 = vld [vmem:[%s1 + $0x410] sm:$0xff]
      %v1594 = vld [vmem:[%s1 + $0x418] sm:$0xff]
      %v1595 = vld [vmem:[%s1 + $0x420] sm:$0xff]
      %v1596 = vld [vmem:[%s1 + $0x428] sm:$0xff]
      %v1597 = vld [vmem:[%s1 + $0x430] sm:$0xff]
      %v1598 = vld [vmem:[%s1 + $0x438] sm:$0xff]
      %v1599 = vld [vmem:[%s1 + $0x440] sm:$0xff]
      %v1600 = vld [vmem:[%s1 + $0x448] sm:$0xff]
      %v1601 = vld [vmem:[%s1 + $0x450] sm:$0xff]
      %v1602 = vld [vmem:[%s1 + $0x458] sm:$0xff]
      %v1603 = vld [vmem:[%s1 + $0x460] sm:$0xff]
      %v1604 = vld [vmem:[%s1 + $0x468] sm:$0xff]
      %v1605 = vld [vmem:[%s1 + $0x470] sm:$0xff]
      %v1606 = vld [vmem:[%s1 + $0x478] sm:$0xff]
      %v1607 = vld [vmem:[%s1 + $0x480] sm:$0xff]
      %v1608 = vld [vmem:[%s1 + $0x488] sm:$0xff]
      %v1609 = vld [vmem:[%s1 + $0x490] sm:$0xff]
      %v1610 = vld [vmem:[%s1 + $0x498] sm:$0xff]
      %v1611 = vld [vmem:[%s1 + $0x4a0] sm:$0xff]
      %v1612 = vld [vmem:[%s1 + $0x4a8] sm:$0xff]
      %v1613 = vld [vmem:[%s1 + $0x4b0] sm:$0xff]
      %v1614 = vld [vmem:[%s1 + $0x4b8] sm:$0xff]
      %v1615 = vld [vmem:[%s1 + $0x4c0] sm:$0xff]
      %v1616 = vld [vmem:[%s1 + $0x4c8] sm:$0xff]
      %v1617 = vld [vmem:[%s1 + $0x4d0] sm:$0xff]
      %v1618 = vld [vmem:[%s1 + $0x4d8] sm:$0xff]
      %v1619 = vld [vmem:[%s1 + $0x4e0] sm:$0xff]
      %v1620 = vld [vmem:[%s1 + $0x4e8] sm:$0xff]
      %v1621 = vld [vmem:[%s1 + $0x4f0] sm:$0xff]
      %v1622 = vld [vmem:[%s1 + $0x4f8] sm:$0xff]
      %v1623 = vld [vmem:[%s1 + $0x500] sm:$0xff]
      %v1624 = vld [vmem:[%s1 + $0x508] sm:$0xff]
      %v1625 = vld [vmem:[%s1 + $0x510] sm:$0xff]
      %v1626 = vld [vmem:[%s1 + $0x518] sm:$0xff]
      %v1627 = vld [vmem:[%s1 + $0x520] sm:$0xff]
      %v1628 = vld [vmem:[%s1 + $0x528] sm:$0xff]
      %v1629 = vld [vmem:[%s1 + $0x530] sm:$0xff]
      %v1630 = vld [vmem:[%s1 + $0x538] sm:$0xff]
      %v1631 = vld [vmem:[%s1 + $0x540] sm:$0xff]
      %v1632 = vld [vmem:[%s1 + $0x548] sm:$0xff]
      %v1633 = vld [vmem:[%s1 + $0x550] sm:$0xff]
      %v1634 = vld [vmem:[%s1 + $0x558] sm:$0xff]
      %v1635 = vld [vmem:[%s1 + $0x560] sm:$0xff]
      %v1636 = vld [vmem:[%s1 + $0x568] sm:$0xff]
      %v1637 = vld [vmem:[%s1 + $0x570] sm:$0xff]
      %v1638 = vld [vmem:[%s1 + $0x578] sm:$0xff]
      %v1639 = vld [vmem:[%s1 + $0x580] sm:$0xff]
      %v1640 = vld [vmem:[%s1 + $0x588] sm:$0xff]
      %v1641 = vld [vmem:[%s1 + $0x590] sm:$0xff]
      %v1642 = vld [vmem:[%s1 + $0x598] sm:$0xff]
      %v1643 = vld [vmem:[%s1 + $0x5a0] sm:$0xff]
      %v1644 = vld [vmem:[%s1 + $0x5a8] sm:$0xff]
      %v1645 = vld [vmem:[%s1 + $0x5b0] sm:$0xff]
      %v1646 = vld [vmem:[%s1 + $0x5b8] sm:$0xff]
      %v1647 = vld [vmem:[%s1 + $0x5c0] sm:$0xff]
      %v1648 = vld [vmem:[%s1 + $0x5c8] sm:$0xff]
      %v1649 = vld [vmem:[%s1 + $0x5d0] sm:$0xff]
      %v1650 = vld [vmem:[%s1 + $0x5d8] sm:$0xff]
      %v1651 = vld [vmem:[%s1 + $0x5e0] sm:$0xff]
      %v1652 = vld [vmem:[%s1 + $0x5e8] sm:$0xff]
      %v1653 = vld [vmem:[%s1 + $0x5f0] sm:$0xff]
      %v1654 = vld [vmem:[%s1 + $0x5f8] sm:$0xff]
      %v1655 = vld [vmem:[%s1 + $0x600] sm:$0xff]
      %v1656 = vld [vmem:[%s1 + $0x608] sm:$0xff]
      %v1657 = vld [vmem:[%s1 + $0x610] sm:$0xff]
      %v1658 = vld [vmem:[%s1 + $0x618] sm:$0xff]
      %v1659 = vld [vmem:[%s1 + $0x620] sm:$0xff]
      %v1660 = vld [vmem:[%s1 + $0x628] sm:$0xff]
      %v1661 = vld [vmem:[%s1 + $0x630] sm:$0xff]
      %v1662 = vld [vmem:[%s1 + $0x638] sm:$0xff]
      %v1663 = vld [vmem:[%s1 + $0x640] sm:$0xff]
      %v1664 = vld [vmem:[%s1 + $0x648] sm:$0xff]
      %v1665 = vld [vmem:[%s1 + $0x650] sm:$0xff]
      %v1666 = vld [vmem:[%s1 + $0x658] sm:$0xff]
      %v1667 = vld [vmem:[%s1 + $0x660] sm:$0xff]
      %v1668 = vld [vmem:[%s1 + $0x668] sm:$0xff]
      %v1669 = vld [vmem:[%s1 + $0x670] sm:$0xff]
      %v1670 = vld [vmem:[%s1 + $0x678] sm:$0xff]
      %v1671 = vld [vmem:[%s1 + $0x680] sm:$0xff]
      %v1672 = vld [vmem:[%s1 + $0x688] sm:$0xff]
      %v1673 = vld [vmem:[%s1 + $0x690] sm:$0xff]
      %v1674 = vld [vmem:[%s1 + $0x698] sm:$0xff]
      %v1675 = vld [vmem:[%s1 + $0x6a0] sm:$0xff]
      %v1676 = vld [vmem:[%s1 + $0x6a8] sm:$0xff]
      %v1677 = vld [vmem:[%s1 + $0x6b0] sm:$0xff]
      %v1678 = vld [vmem:[%s1 + $0x6b8] sm:$0xff]
      %v1679 = vld [vmem:[%s1 + $0x6c0] sm:$0xff]
      %v1680 = vld [vmem:[%s1 + $0x6c8] sm:$0xff]
      %v1681 = vld [vmem:[%s1 + $0x6d0] sm:$0xff]
      %v1682 = vld [vmem:[%s1 + $0x6d8] sm:$0xff]
      %v1683 = vld [vmem:[%s1 + $0x6e0] sm:$0xff]
      %v1684 = vld [vmem:[%s1 + $0x6e8] sm:$0xff]
      %v1685 = vld [vmem:[%s1 + $0x6f0] sm:$0xff]
      %v1686 = vld [vmem:[%s1 + $0x6f8] sm:$0xff]
      %v1687 = vld [vmem:[%s1 + $0x700] sm:$0xff]
      %v1688 = vld [vmem:[%s1 + $0x708] sm:$0xff]
      %v1689 = vld [vmem:[%s1 + $0x710] sm:$0xff]
      %v1690 = vld [vmem:[%s1 + $0x718] sm:$0xff]
      %v1691 = vld [vmem:[%s1 + $0x720] sm:$0xff]
      %v1692 = vld [vmem:[%s1 + $0x728] sm:$0xff]
      %v1693 = vld [vmem:[%s1 + $0x730] sm:$0xff]
      %v1694 = vld [vmem:[%s1 + $0x738] sm:$0xff]
      %v1695 = vld [vmem:[%s1 + $0x740] sm:$0xff]
      %v1696 = vld [vmem:[%s1 + $0x748] sm:$0xff]
      %v1697 = vld [vmem:[%s1 + $0x750] sm:$0xff]
      %v1698 = vld [vmem:[%s1 + $0x758] sm:$0xff]
      %v1699 = vld [vmem:[%s1 + $0x760] sm:$0xff]
      %v1700 = vld [vmem:[%s1 + $0x768] sm:$0xff]
      %v1701 = vld [vmem:[%s1 + $0x770] sm:$0xff]
      %v1702 = vld [vmem:[%s1 + $0x778] sm:$0xff]
      %v1703 = vld [vmem:[%s1 + $0x780] sm:$0xff]
      %v1704 = vld [vmem:[%s1 + $0x788] sm:$0xff]
      %v1705 = vld [vmem:[%s1 + $0x790] sm:$0xff]
      %v1706 = vld [vmem:[%s1 + $0x798] sm:$0xff]
      %v1707 = vld [vmem:[%s1 + $0x7a0] sm:$0xff]
      %v1708 = vld [vmem:[%s1 + $0x7a8] sm:$0xff]
      %v1709 = vld [vmem:[%s1 + $0x7b0] sm:$0xff]
      %v1710 = vld [vmem:[%s1 + $0x7b8] sm:$0xff]
      %v1711 = vld [vmem:[%s1 + $0x7c0] sm:$0xff]
      %v1712 = vld [vmem:[%s1 + $0x7c8] sm:$0xff]
      %v1713 = vld [vmem:[%s1 + $0x7d0] sm:$0xff]
      %v1714 = vld [vmem:[%s1 + $0x7d8] sm:$0xff]
      %v1715 = vld [vmem:[%s1 + $0x7e0] sm:$0xff]
      %v1716 = vld [vmem:[%s1 + $0x7e8] sm:$0xff]
      %v1717 = vld [vmem:[%s1 + $0x7f0] sm:$0xff]
      %v1718 = vld [vmem:[%s1 + $0x7f8] sm:$0xff]
      %1719 = vmatprep.subr.mxu0 0.0
      %1720 = vmatpush1.msra.mxu0 %v1463
      %1721 = vmatprep.subr.mxu0 0.0
      %1722 = vmatpush1.msra.mxu0 %v1464
      %1723 = vmatprep.subr.mxu0 0.0
      %1724 = vmatpush1.msra.mxu0 %v1465
      %1725 = vmatprep.subr.mxu0 0.0
      %1726 = vmatpush1.msra.mxu0 %v1466
      %1727 = vmatprep.subr.mxu0 0.0
      %1728 = vmatpush1.msra.mxu0 %v1467
      %1729 = vmatprep.subr.mxu0 0.0
      %1730 = vmatpush1.msra.mxu0 %v1468
      %1731 = vmatprep.subr.mxu0 0.0
      %1732 = vmatpush1.msra.mxu0 %v1469
      %1733 = vmatprep.subr.mxu0 0.0
      %1734 = vmatpush1.msra.mxu0 %v1470
      %1735 = vmatprep.subr.mxu0 0.0
      %1736 = vmatpush1.msra.mxu0 %v1471
      %1737 = vmatprep.subr.mxu0 0.0
      %1738 = vmatpush1.msra.mxu0 %v1472
      %1739 = vmatprep.subr.mxu0 0.0
      %1740 = vmatpush1.msra.mxu0 %v1473
      %1741 = vmatprep.subr.mxu0 0.0
      %1742 = vmatpush1.msra.mxu0 %v1474
      %1743 = vmatprep.subr.mxu0 0.0
      %1744 = vmatpush1.msra.mxu0 %v1475
      %1745 = vmatprep.subr.mxu0 0.0
      %1746 = vmatpush1.msra.mxu0 %v1476
      %1747 = vmatprep.subr.mxu0 0.0
      %1748 = vmatpush1.msra.mxu0 %v1477
      %1749 = vmatprep.subr.mxu0 0.0
      %1750 = vmatpush1.msra.mxu0 %v1478
      %1751 = vmatprep.subr.mxu0 0.0
      %1752 = vmatpush1.msra.mxu0 %v1479
      %1753 = vmatprep.subr.mxu0 0.0
      %1754 = vmatpush1.msra.mxu0 %v1480
      %1755 = vmatprep.subr.mxu0 0.0
      %1756 = vmatpush1.msra.mxu0 %v1481
      %1757 = vmatprep.subr.mxu0 0.0
      %1758 = vmatpush1.msra.mxu0 %v1482
      %1759 = vmatprep.subr.mxu0 0.0
      %1760 = vmatpush1.msra.mxu0 %v1483
      %1761 = vmatprep.subr.mxu0 0.0
      %1762 = vmatpush1.msra.mxu0 %v1484
      %1763 = vmatprep.subr.mxu0 0.0
      %1764 = vmatpush1.msra.mxu0 %v1485
      %1765 = vmatprep.subr.mxu0 0.0
      %1766 = vmatpush1.msra.mxu0 %v1486
      %1767 = vmatprep.subr.mxu0 0.0
      %1768 = vmatpush1.msra.mxu0 %v1487
      %1769 = vmatprep.subr.mxu0 0.0
      %1770 = vmatpush1.msra.mxu0 %v1488
      %1771 = vmatprep.subr.mxu0 0.0
      %1772 = vmatpush1.msra.mxu0 %v1489
      %1773 = vmatprep.subr.mxu0 0.0
      %1774 = vmatpush1.msra.mxu0 %v1490
      %1775 = vmatprep.subr.mxu0 0.0
      %1776 = vmatpush1.msra.mxu0 %v1491
      %1777 = vmatprep.subr.mxu0 0.0
      %1778 = vmatpush1.msra.mxu0 %v1492
      %1779 = vmatprep.subr.mxu0 0.0
      %1780 = vmatpush1.msra.mxu0 %v1493
      %1781 = vmatprep.subr.mxu0 0.0
      %1782 = vmatpush1.msra.mxu0 %v1494
      %1783 = vmatprep.mubr.f32.mxu0 %v1368
      %1784 = vmatmul.mubr.f32.gmra.mrb[0].mxu0 %v1367
      %v1785 = vpop.f32.mrb[0].mxu0
      %v1786 = vadd.f32 0.0, %v1785
      %v1787 = vpop.f32.mrb[0].mxu0
      %1788 = vmatprep.mubr.f32.mxu0 %v1384
      %1789 = vmatmul.mubr.f32.gmra.mrb[0].mxu0 %v1383
      %v1790 = vpop.f32.mrb[0].mxu0
      %v1791 = vadd.f32 0.0, %v1790
      %v1792 = vpop.f32.mrb[0].mxu0
      %1793 = vmatprep.mubr.f32.mxu0 %v1400
      %1794 = vmatmul.mubr.f32.gmra.mrb[0].mxu0 %v1399
      %v1795 = vpop.f32.mrb[0].mxu0
      %v1796 = vadd.f32 0.0, %v1795
      %v1797 = vpop.f32.mrb[0].mxu0
      %1798 = vmatprep.mubr.f32.mxu0 %v1416
      %1799 = vmatmul.mubr.f32.gmra.mrb[0].mxu0 %v1415
      %v1800 = vpop.f32.mrb[0].mxu0
      %v1801 = vadd.f32 0.0, %v1800
      %v1802 = vpop.f32.mrb[0].mxu0
      %1803 = vmatprep.mubr.f32.mxu0 %v1432
      %1804 = vmatmul.mubr.f32.gmra.mrb[0].mxu0 %v1431
      %v1805 = vpop.f32.mrb[0].mxu0
      %v1806 = vadd.f32 0.0, %v1805
      %v1807 = vpop.f32.mrb[0].mxu0
      %1808 = vmatprep.mubr.f32.mxu0 %v1448
      %1809 = vmatmul.mubr.f32.gmra.mrb[0].mxu0 %v1447
      %v1810 = vpop.f32.mrb[0].mxu0
      %v1811 = vadd.f32 0.0, %v1810
      %v1812 = vpop.f32.mrb[0].mxu0
      %1813 = vdwg.mxu0
      %1814 = vmatprep.subr.mxu0 0.0
      %1815 = vmatpush1.msra.mxu0 %v1495
      %1816 = vmatprep.subr.mxu0 0.0
      %1817 = vmatpush1.msra.mxu0 %v1496
      %1818 = vmatprep.subr.mxu0 0.0
      %1819 = vmatpush1.msra.mxu0 %v1497
      %1820 = vmatprep.subr.mxu0 0.0
      %1821 = vmatpush1.msra.mxu0 %v1498
      %1822 = vmatprep.subr.mxu0 0.0
      %1823 = vmatpush1.msra.mxu0 %v1499
      %1824 = vmatprep.subr.mxu0 0.0
      %1825 = vmatpush1.msra.mxu0 %v1500
      %1826 = vmatprep.subr.mxu0 0.0
      %1827 = vmatpush1.msra.mxu0 %v1501
      %1828 = vmatprep.subr.mxu0 0.0
      %1829 = vmatpush1.msra.mxu0 %v1502
      %1830 = vmatprep.subr.mxu0 0.0
      %1831 = vmatpush1.msra.mxu0 %v1503
      %1832 = vmatprep.subr.mxu0 0.0
      %1833 = vmatpush1.msra.mxu0 %v1504
      %1834 = vmatprep.subr.mxu0 0.0
      %1835 = vmatpush1.msra.mxu0 %v1505
      %1836 = vmatprep.subr.mxu0 0.0
      %1837 = vmatpush1.msra.mxu0 %v1506
      %1838 = vmatprep.subr.mxu0 0.0
      %1839 = vmatpush1.msra.mxu0 %v1507
      %1840 = vmatprep.subr.mxu0 0.0
      %1841 = vmatpush1.msra.mxu0 %v1508
      %1842 = vmatprep.subr.mxu0 0.0
      %1843 = vmatpush1.msra.mxu0 %v1509
      %1844 = vmatprep.subr.mxu0 0.0
      %1845 = vmatpush1.msra.mxu0 %v1510
      %1846 = vmatprep.subr.mxu0 0.0
      %1847 = vmatpush1.msra.mxu0 %v1511
      %1848 = vmatprep.subr.mxu0 0.0
      %1849 = vmatpush1.msra.mxu0 %v1512
      %1850 = vmatprep.subr.mxu0 0.0
      %1851 = vmatpush1.msra.mxu0 %v1513
      %1852 = vmatprep.subr.mxu0 0.0
      %1853 = vmatpush1.msra.mxu0 %v1514
      %1854 = vmatprep.subr.mxu0 0.0
      %1855 = vmatpush1.msra.mxu0 %v1515
      %1856 = vmatprep.subr.mxu0 0.0
      %1857 = vmatpush1.msra.mxu0 %v1516
      %1858 = vmatprep.subr.mxu0 0.0
      %1859 = vmatpush1.msra.mxu0 %v1517
      %1860 = vmatprep.subr.mxu0 0.0
      %1861 = vmatpush1.msra.mxu0 %v1518
      %1862 = vmatprep.subr.mxu0 0.0
      %1863 = vmatpush1.msra.mxu0 %v1519
      %1864 = vmatprep.subr.mxu0 0.0
      %1865 = vmatpush1.msra.mxu0 %v1520
      %1866 = vmatprep.subr.mxu0 0.0
      %1867 = vmatpush1.msra.mxu0 %v1521
      %1868 = vmatprep.subr.mxu0 0.0
      %1869 = vmatpush1.msra.mxu0 %v1522
      %1870 = vmatprep.subr.mxu0 0.0
      %1871 = vmatpush1.msra.mxu0 %v1523
      %1872 = vmatprep.subr.mxu0 0.0
      %1873 = vmatpush1.msra.mxu0 %v1524
      %1874 = vmatprep.subr.mxu0 0.0
      %1875 = vmatpush1.msra.mxu0 %v1525
      %1876 = vmatprep.subr.mxu0 0.0
      %1877 = vmatpush1.msra.mxu0 %v1526
      %1878 = vmatprep.mubr.f32.mxu0 %v1370
      %1879 = vmatmul.mubr.f32.gmra.mrb[0].mxu0 %v1369
      %v1880 = vpop.f32.mrb[0].mxu0
      %v1881 = vadd.f32 %v1786, %v1880
      %v1882 = vpop.f32.mrb[0].mxu0
      %1883 = vmatprep.mubr.f32.mxu0 %v1386
      %1884 = vmatmul.mubr.f32.gmra.mrb[0].mxu0 %v1385
      %v1885 = vpop.f32.mrb[0].mxu0
      %v1886 = vadd.f32 %v1791, %v1885
      %v1887 = vpop.f32.mrb[0].mxu0
      %1888 = vmatprep.mubr.f32.mxu0 %v1402
      %1889 = vmatmul.mubr.f32.gmra.mrb[0].mxu0 %v1401
      %v1890 = vpop.f32.mrb[0].mxu0
      %v1891 = vadd.f32 %v1796, %v1890
      %v1892 = vpop.f32.mrb[0].mxu0
      %1893 = vmatprep.mubr.f32.mxu0 %v1418
      %1894 = vmatmul.mubr.f32.gmra.mrb[0].mxu0 %v1417
      %v1895 = vpop.f32.mrb[0].mxu0
      %v1896 = vadd.f32 %v1801, %v1895
      %v1897 = vpop.f32.mrb[0].mxu0
      %1898 = vmatprep.mubr.f32.mxu0 %v1434
      %1899 = vmatmul.mubr.f32.gmra.mrb[0].mxu0 %v1433
      %v1900 = vpop.f32.mrb[0].mxu0
      %v1901 = vadd.f32 %v1806, %v1900
      %v1902 = vpop.f32.mrb[0].mxu0
      %1903 = vmatprep.mubr.f32.mxu0 %v1450
      %1904 = vmatmul.mubr.f32.gmra.mrb[0].mxu0 %v1449
      %v1905 = vpop.f32.mrb[0].mxu0
      %v1906 = vadd.f32 %v1811, %v1905
      %v1907 = vpop.f32.mrb[0].mxu0
      %1908 = vdwg.mxu0
      %1909 = vmatprep.subr.mxu0 0.0
      %1910 = vmatpush1.msra.mxu0 %v1527
      %1911 = vmatprep.subr.mxu0 0.0
      %1912 = vmatpush1.msra.mxu0 %v1528
      %1913 = vmatprep.subr.mxu0 0.0
      %1914 = vmatpush1.msra.mxu0 %v1529
      %1915 = vmatprep.subr.mxu0 0.0
      %1916 = vmatpush1.msra.mxu0 %v1530
      %1917 = vmatprep.subr.mxu0 0.0
      %1918 = vmatpush1.msra.mxu0 %v1531
      %1919 = vmatprep.subr.mxu0 0.0
      %1920 = vmatpush1.msra.mxu0 %v1532
      %1921 = vmatprep.subr.mxu0 0.0
      %1922 = vmatpush1.msra.mxu0 %v1533
      %1923 = vmatprep.subr.mxu0 0.0
      %1924 = vmatpush1.msra.mxu0 %v1534
      %1925 = vmatprep.subr.mxu0 0.0
      %1926 = vmatpush1.msra.mxu0 %v1535
      %1927 = vmatprep.subr.mxu0 0.0
      %1928 = vmatpush1.msra.mxu0 %v1536
      %1929 = vmatprep.subr.mxu0 0.0
      %1930 = vmatpush1.msra.mxu0 %v1537
      %1931 = vmatprep.subr.mxu0 0.0
      %1932 = vmatpush1.msra.mxu0 %v1538
      %1933 = vmatprep.subr.mxu0 0.0
      %1934 = vmatpush1.msra.mxu0 %v1539
      %1935 = vmatprep.subr.mxu0 0.0
      %1936 = vmatpush1.msra.mxu0 %v1540
      %1937 = vmatprep.subr.mxu0 0.0
      %1938 = vmatpush1.msra.mxu0 %v1541
      %1939 = vmatprep.subr.mxu0 0.0
      %1940 = vmatpush1.msra.mxu0 %v1542
      %1941 = vmatprep.subr.mxu0 0.0
      %1942 = vmatpush1.msra.mxu0 %v1543
      %1943 = vmatprep.subr.mxu0 0.0
      %1944 = vmatpush1.msra.mxu0 %v1544
      %1945 = vmatprep.subr.mxu0 0.0
      %1946 = vmatpush1.msra.mxu0 %v1545
      %1947 = vmatprep.subr.mxu0 0.0
      %1948 = vmatpush1.msra.mxu0 %v1546
      %1949 = vmatprep.subr.mxu0 0.0
      %1950 = vmatpush1.msra.mxu0 %v1547
      %1951 = vmatprep.subr.mxu0 0.0
      %1952 = vmatpush1.msra.mxu0 %v1548
      %1953 = vmatprep.subr.mxu0 0.0
      %1954 = vmatpush1.msra.mxu0 %v1549
      %1955 = vmatprep.subr.mxu0 0.0
      %1956 = vmatpush1.msra.mxu0 %v1550
      %1957 = vmatprep.subr.mxu0 0.0
      %1958 = vmatpush1.msra.mxu0 %v1551
      %1959 = vmatprep.subr.mxu0 0.0
      %1960 = vmatpush1.msra.mxu0 %v1552
      %1961 = vmatprep.subr.mxu0 0.0
      %1962 = vmatpush1.msra.mxu0 %v1553
      %1963 = vmatprep.subr.mxu0 0.0
      %1964 = vmatpush1.msra.mxu0 %v1554
      %1965 = vmatprep.subr.mxu0 0.0
      %1966 = vmatpush1.msra.mxu0 %v1555
      %1967 = vmatprep.subr.mxu0 0.0
      %1968 = vmatpush1.msra.mxu0 %v1556
      %1969 = vmatprep.subr.mxu0 0.0
      %1970 = vmatpush1.msra.mxu0 %v1557
      %1971 = vmatprep.subr.mxu0 0.0
      %1972 = vmatpush1.msra.mxu0 %v1558
      %1973 = vmatprep.mubr.f32.mxu0 %v1372
      %1974 = vmatmul.mubr.f32.gmra.mrb[0].mxu0 %v1371
      %v1975 = vpop.f32.mrb[0].mxu0
      %v1976 = vadd.f32 %v1881, %v1975
      %v1977 = vpop.f32.mrb[0].mxu0
      %1978 = vmatprep.mubr.f32.mxu0 %v1388
      %1979 = vmatmul.mubr.f32.gmra.mrb[0].mxu0 %v1387
      %v1980 = vpop.f32.mrb[0].mxu0
      %v1981 = vadd.f32 %v1886, %v1980
      %v1982 = vpop.f32.mrb[0].mxu0
      %1983 = vmatprep.mubr.f32.mxu0 %v1404
      %1984 = vmatmul.mubr.f32.gmra.mrb[0].mxu0 %v1403
      %v1985 = vpop.f32.mrb[0].mxu0
      %v1986 = vadd.f32 %v1891, %v1985
      %v1987 = vpop.f32.mrb[0].mxu0
      %1988 = vmatprep.mubr.f32.mxu0 %v1420
      %1989 = vmatmul.mubr.f32.gmra.mrb[0].mxu0 %v1419
      %v1990 = vpop.f32.mrb[0].mxu0
      %v1991 = vadd.f32 %v1896, %v1990
      %v1992 = vpop.f32.mrb[0].mxu0
      %1993 = vmatprep.mubr.f32.mxu0 %v1436
      %1994 = vmatmul.mubr.f32.gmra.mrb[0].mxu0 %v1435
      %v1995 = vpop.f32.mrb[0].mxu0
      %v1996 = vadd.f32 %v1901, %v1995
      %v1997 = vpop.f32.mrb[0].mxu0
      %1998 = vmatprep.mubr.f32.mxu0 %v1452
      %1999 = vmatmul.mubr.f32.gmra.mrb[0].mxu0 %v1451
      %v2000 = vpop.f32.mrb[0].mxu0
      %v2001 = vadd.f32 %v1906, %v2000
      %v2002 = vpop.f32.mrb[0].mxu0
      %2003 = vdwg.mxu0
      %2004 = vmatprep.subr.mxu0 0.0
      %2005 = vmatpush1.msra.mxu0 %v1559
      %2006 = vmatprep.subr.mxu0 0.0
      %2007 = vmatpush1.msra.mxu0 %v1560
      %2008 = vmatprep.subr.mxu0 0.0
      %2009 = vmatpush1.msra.mxu0 %v1561
      %2010 = vmatprep.subr.mxu0 0.0
      %2011 = vmatpush1.msra.mxu0 %v1562
      %2012 = vmatprep.subr.mxu0 0.0
      %2013 = vmatpush1.msra.mxu0 %v1563
      %2014 = vmatprep.subr.mxu0 0.0
      %2015 = vmatpush1.msra.mxu0 %v1564
      %2016 = vmatprep.subr.mxu0 0.0
      %2017 = vmatpush1.msra.mxu0 %v1565
      %2018 = vmatprep.subr.mxu0 0.0
      %2019 = vmatpush1.msra.mxu0 %v1566
      %2020 = vmatprep.subr.mxu0 0.0
      %2021 = vmatpush1.msra.mxu0 %v1567
      %2022 = vmatprep.subr.mxu0 0.0
      %2023 = vmatpush1.msra.mxu0 %v1568
      %2024 = vmatprep.subr.mxu0 0.0
      %2025 = vmatpush1.msra.mxu0 %v1569
      %2026 = vmatprep.subr.mxu0 0.0
      %2027 = vmatpush1.msra.mxu0 %v1570
      %2028 = vmatprep.subr.mxu0 0.0
      %2029 = vmatpush1.msra.mxu0 %v1571
      %2030 = vmatprep.subr.mxu0 0.0
      %2031 = vmatpush1.msra.mxu0 %v1572
      %2032 = vmatprep.subr.mxu0 0.0
      %2033 = vmatpush1.msra.mxu0 %v1573
      %2034 = vmatprep.subr.mxu0 0.0
      %2035 = vmatpush1.msra.mxu0 %v1574
      %2036 = vmatprep.subr.mxu0 0.0
      %2037 = vmatpush1.msra.mxu0 %v1575
      %2038 = vmatprep.subr.mxu0 0.0
      %2039 = vmatpush1.msra.mxu0 %v1576
      %2040 = vmatprep.subr.mxu0 0.0
      %2041 = vmatpush1.msra.mxu0 %v1577
      %2042 = vmatprep.subr.mxu0 0.0
      %2043 = vmatpush1.msra.mxu0 %v1578
      %2044 = vmatprep.subr.mxu0 0.0
      %2045 = vmatpush1.msra.mxu0 %v1579
      %2046 = vmatprep.subr.mxu0 0.0
      %2047 = vmatpush1.msra.mxu0 %v1580
      %2048 = vmatprep.subr.mxu0 0.0
      %2049 = vmatpush1.msra.mxu0 %v1581
      %2050 = vmatprep.subr.mxu0 0.0
      %2051 = vmatpush1.msra.mxu0 %v1582
      %2052 = vmatprep.subr.mxu0 0.0
      %2053 = vmatpush1.msra.mxu0 %v1583
      %2054 = vmatprep.subr.mxu0 0.0
      %2055 = vmatpush1.msra.mxu0 %v1584
      %2056 = vmatprep.subr.mxu0 0.0
      %2057 = vmatpush1.msra.mxu0 %v1585
      %2058 = vmatprep.subr.mxu0 0.0
      %2059 = vmatpush1.msra.mxu0 %v1586
      %2060 = vmatprep.subr.mxu0 0.0
      %2061 = vmatpush1.msra.mxu0 %v1587
      %2062 = vmatprep.subr.mxu0 0.0
      %2063 = vmatpush1.msra.mxu0 %v1588
      %2064 = vmatprep.subr.mxu0 0.0
      %2065 = vmatpush1.msra.mxu0 %v1589
      %2066 = vmatprep.subr.mxu0 0.0
      %2067 = vmatpush1.msra.mxu0 %v1590
      %2068 = vmatprep.mubr.f32.mxu0 %v1374
      %2069 = vmatmul.mubr.f32.gmra.mrb[0].mxu0 %v1373
      %v2070 = vpop.f32.mrb[0].mxu0
      %v2071 = vadd.f32 %v1976, %v2070
      %v2072 = vpop.f32.mrb[0].mxu0
      %2073 = vmatprep.mubr.f32.mxu0 %v1390
      %2074 = vmatmul.mubr.f32.gmra.mrb[0].mxu0 %v1389
      %v2075 = vpop.f32.mrb[0].mxu0
      %v2076 = vadd.f32 %v1981, %v2075
      %v2077 = vpop.f32.mrb[0].mxu0
      %2078 = vmatprep.mubr.f32.mxu0 %v1406
      %2079 = vmatmul.mubr.f32.gmra.mrb[0].mxu0 %v1405
      %v2080 = vpop.f32.mrb[0].mxu0
      %v2081 = vadd.f32 %v1986, %v2080
      %v2082 = vpop.f32.mrb[0].mxu0
      %2083 = vmatprep.mubr.f32.mxu0 %v1422
      %2084 = vmatmul.mubr.f32.gmra.mrb[0].mxu0 %v1421
      %v2085 = vpop.f32.mrb[0].mxu0
      %v2086 = vadd.f32 %v1991, %v2085
      %v2087 = vpop.f32.mrb[0].mxu0
      %2088 = vmatprep.mubr.f32.mxu0 %v1438
      %2089 = vmatmul.mubr.f32.gmra.mrb[0].mxu0 %v1437
      %v2090 = vpop.f32.mrb[0].mxu0
      %v2091 = vadd.f32 %v1996, %v2090
      %v2092 = vpop.f32.mrb[0].mxu0
      %2093 = vmatprep.mubr.f32.mxu0 %v1454
      %2094 = vmatmul.mubr.f32.gmra.mrb[0].mxu0 %v1453
      %v2095 = vpop.f32.mrb[0].mxu0
      %v2096 = vadd.f32 %v2001, %v2095
      %v2097 = vpop.f32.mrb[0].mxu0
      %2098 = vdwg.mxu0
      %2099 = vmatprep.subr.mxu0 0.0
      %2100 = vmatpush1.msra.mxu0 %v1591
      %2101 = vmatprep.subr.mxu0 0.0
      %2102 = vmatpush1.msra.mxu0 %v1592
      %2103 = vmatprep.subr.mxu0 0.0
      %2104 = vmatpush1.msra.mxu0 %v1593
      %2105 = vmatprep.subr.mxu0 0.0
      %2106 = vmatpush1.msra.mxu0 %v1594
      %2107 = vmatprep.subr.mxu0 0.0
      %2108 = vmatpush1.msra.mxu0 %v1595
      %2109 = vmatprep.subr.mxu0 0.0
      %2110 = vmatpush1.msra.mxu0 %v1596
      %2111 = vmatprep.subr.mxu0 0.0
      %2112 = vmatpush1.msra.mxu0 %v1597
      %2113 = vmatprep.subr.mxu0 0.0
      %2114 = vmatpush1.msra.mxu0 %v1598
      %2115 = vmatprep.subr.mxu0 0.0
      %2116 = vmatpush1.msra.mxu0 %v1599
      %2117 = vmatprep.subr.mxu0 0.0
      %2118 = vmatpush1.msra.mxu0 %v1600
      %2119 = vmatprep.subr.mxu0 0.0
      %2120 = vmatpush1.msra.mxu0 %v1601
      %2121 = vmatprep.subr.mxu0 0.0
      %2122 = vmatpush1.msra.mxu0 %v1602
      %2123 = vmatprep.subr.mxu0 0.0
      %2124 = vmatpush1.msra.mxu0 %v1603
      %2125 = vmatprep.subr.mxu0 0.0
      %2126 = vmatpush1.msra.mxu0 %v1604
      %2127 = vmatprep.subr.mxu0 0.0
      %2128 = vmatpush1.msra.mxu0 %v1605
      %2129 = vmatprep.subr.mxu0 0.0
      %2130 = vmatpush1.msra.mxu0 %v1606
      %2131 = vmatprep.subr.mxu0 0.0
      %2132 = vmatpush1.msra.mxu0 %v1607
      %2133 = vmatprep.subr.mxu0 0.0
      %2134 = vmatpush1.msra.mxu0 %v1608
      %2135 = vmatprep.subr.mxu0 0.0
      %2136 = vmatpush1.msra.mxu0 %v1609
      %2137 = vmatprep.subr.mxu0 0.0
      %2138 = vmatpush1.msra.mxu0 %v1610
      %2139 = vmatprep.subr.mxu0 0.0
      %2140 = vmatpush1.msra.mxu0 %v1611
      %2141 = vmatprep.subr.mxu0 0.0
      %2142 = vmatpush1.msra.mxu0 %v1612
      %2143 = vmatprep.subr.mxu0 0.0
      %2144 = vmatpush1.msra.mxu0 %v1613
      %2145 = vmatprep.subr.mxu0 0.0
      %2146 = vmatpush1.msra.mxu0 %v1614
      %2147 = vmatprep.subr.mxu0 0.0
      %2148 = vmatpush1.msra.mxu0 %v1615
      %2149 = vmatprep.subr.mxu0 0.0
      %2150 = vmatpush1.msra.mxu0 %v1616
      %2151 = vmatprep.subr.mxu0 0.0
      %2152 = vmatpush1.msra.mxu0 %v1617
      %2153 = vmatprep.subr.mxu0 0.0
      %2154 = vmatpush1.msra.mxu0 %v1618
      %2155 = vmatprep.subr.mxu0 0.0
      %2156 = vmatpush1.msra.mxu0 %v1619
      %2157 = vmatprep.subr.mxu0 0.0
      %2158 = vmatpush1.msra.mxu0 %v1620
      %2159 = vmatprep.subr.mxu0 0.0
      %2160 = vmatpush1.msra.mxu0 %v1621
      %2161 = vmatprep.subr.mxu0 0.0
      %2162 = vmatpush1.msra.mxu0 %v1622
      %2163 = vmatprep.mubr.f32.mxu0 %v1376
      %2164 = vmatmul.mubr.f32.gmra.mrb[0].mxu0 %v1375
      %v2165 = vpop.f32.mrb[0].mxu0
      %v2166 = vadd.f32 %v2071, %v2165
      %v2167 = vpop.f32.mrb[0].mxu0
      %2168 = vmatprep.mubr.f32.mxu0 %v1392
      %2169 = vmatmul.mubr.f32.gmra.mrb[0].mxu0 %v1391
      %v2170 = vpop.f32.mrb[0].mxu0
      %v2171 = vadd.f32 %v2076, %v2170
      %v2172 = vpop.f32.mrb[0].mxu0
      %2173 = vmatprep.mubr.f32.mxu0 %v1408
      %2174 = vmatmul.mubr.f32.gmra.mrb[0].mxu0 %v1407
      %v2175 = vpop.f32.mrb[0].mxu0
      %v2176 = vadd.f32 %v2081, %v2175
      %v2177 = vpop.f32.mrb[0].mxu0
      %2178 = vmatprep.mubr.f32.mxu0 %v1424
      %2179 = vmatmul.mubr.f32.gmra.mrb[0].mxu0 %v1423
      %v2180 = vpop.f32.mrb[0].mxu0
      %v2181 = vadd.f32 %v2086, %v2180
      %v2182 = vpop.f32.mrb[0].mxu0
      %2183 = vmatprep.mubr.f32.mxu0 %v1440
      %2184 = vmatmul.mubr.f32.gmra.mrb[0].mxu0 %v1439
      %v2185 = vpop.f32.mrb[0].mxu0
      %v2186 = vadd.f32 %v2091, %v2185
      %v2187 = vpop.f32.mrb[0].mxu0
      %2188 = vmatprep.mubr.f32.mxu0 %v1456
      %2189 = vmatmul.mubr.f32.gmra.mrb[0].mxu0 %v1455
      %v2190 = vpop.f32.mrb[0].mxu0
      %v2191 = vadd.f32 %v2096, %v2190
      %v2192 = vpop.f32.mrb[0].mxu0
      %2193 = vdwg.mxu0
      %2194 = vmatprep.subr.mxu0 0.0
      %2195 = vmatpush1.msra.mxu0 %v1623
      %2196 = vmatprep.subr.mxu0 0.0
      %2197 = vmatpush1.msra.mxu0 %v1624
      %2198 = vmatprep.subr.mxu0 0.0
      %2199 = vmatpush1.msra.mxu0 %v1625
      %2200 = vmatprep.subr.mxu0 0.0
      %2201 = vmatpush1.msra.mxu0 %v1626
      %2202 = vmatprep.subr.mxu0 0.0
      %2203 = vmatpush1.msra.mxu0 %v1627
      %2204 = vmatprep.subr.mxu0 0.0
      %2205 = vmatpush1.msra.mxu0 %v1628
      %2206 = vmatprep.subr.mxu0 0.0
      %2207 = vmatpush1.msra.mxu0 %v1629
      %2208 = vmatprep.subr.mxu0 0.0
      %2209 = vmatpush1.msra.mxu0 %v1630
      %2210 = vmatprep.subr.mxu0 0.0
      %2211 = vmatpush1.msra.mxu0 %v1631
      %2212 = vmatprep.subr.mxu0 0.0
      %2213 = vmatpush1.msra.mxu0 %v1632
      %2214 = vmatprep.subr.mxu0 0.0
      %2215 = vmatpush1.msra.mxu0 %v1633
      %2216 = vmatprep.subr.mxu0 0.0
      %2217 = vmatpush1.msra.mxu0 %v1634
      %2218 = vmatprep.subr.mxu0 0.0
      %2219 = vmatpush1.msra.mxu0 %v1635
      %2220 = vmatprep.subr.mxu0 0.0
      %2221 = vmatpush1.msra.mxu0 %v1636
      %2222 = vmatprep.subr.mxu0 0.0
      %2223 = vmatpush1.msra.mxu0 %v1637
      %2224 = vmatprep.subr.mxu0 0.0
      %2225 = vmatpush1.msra.mxu0 %v1638
      %2226 = vmatprep.subr.mxu0 0.0
      %2227 = vmatpush1.msra.mxu0 %v1639
      %2228 = vmatprep.subr.mxu0 0.0
      %2229 = vmatpush1.msra.mxu0 %v1640
      %2230 = vmatprep.subr.mxu0 0.0
      %2231 = vmatpush1.msra.mxu0 %v1641
      %2232 = vmatprep.subr.mxu0 0.0
      %2233 = vmatpush1.msra.mxu0 %v1642
      %2234 = vmatprep.subr.mxu0 0.0
      %2235 = vmatpush1.msra.mxu0 %v1643
      %2236 = vmatprep.subr.mxu0 0.0
      %2237 = vmatpush1.msra.mxu0 %v1644
      %2238 = vmatprep.subr.mxu0 0.0
      %2239 = vmatpush1.msra.mxu0 %v1645
      %2240 = vmatprep.subr.mxu0 0.0
      %2241 = vmatpush1.msra.mxu0 %v1646
      %2242 = vmatprep.subr.mxu0 0.0
      %2243 = vmatpush1.msra.mxu0 %v1647
      %2244 = vmatprep.subr.mxu0 0.0
      %2245 = vmatpush1.msra.mxu0 %v1648
      %2246 = vmatprep.subr.mxu0 0.0
      %2247 = vmatpush1.msra.mxu0 %v1649
      %2248 = vmatprep.subr.mxu0 0.0
      %2249 = vmatpush1.msra.mxu0 %v1650
      %2250 = vmatprep.subr.mxu0 0.0
      %2251 = vmatpush1.msra.mxu0 %v1651
      %2252 = vmatprep.subr.mxu0 0.0
      %2253 = vmatpush1.msra.mxu0 %v1652
      %2254 = vmatprep.subr.mxu0 0.0
      %2255 = vmatpush1.msra.mxu0 %v1653
      %2256 = vmatprep.subr.mxu0 0.0
      %2257 = vmatpush1.msra.mxu0 %v1654
      %2258 = vmatprep.mubr.f32.mxu0 %v1378
      %2259 = vmatmul.mubr.f32.gmra.mrb[0].mxu0 %v1377
      %v2260 = vpop.f32.mrb[0].mxu0
      %v2261 = vadd.f32 %v2166, %v2260
      %v2262 = vpop.f32.mrb[0].mxu0
      %2263 = vmatprep.mubr.f32.mxu0 %v1394
      %2264 = vmatmul.mubr.f32.gmra.mrb[0].mxu0 %v1393
      %v2265 = vpop.f32.mrb[0].mxu0
      %v2266 = vadd.f32 %v2171, %v2265
      %v2267 = vpop.f32.mrb[0].mxu0
      %2268 = vmatprep.mubr.f32.mxu0 %v1410
      %2269 = vmatmul.mubr.f32.gmra.mrb[0].mxu0 %v1409
      %v2270 = vpop.f32.mrb[0].mxu0
      %v2271 = vadd.f32 %v2176, %v2270
      %v2272 = vpop.f32.mrb[0].mxu0
      %2273 = vmatprep.mubr.f32.mxu0 %v1426
      %2274 = vmatmul.mubr.f32.gmra.mrb[0].mxu0 %v1425
      %v2275 = vpop.f32.mrb[0].mxu0
      %v2276 = vadd.f32 %v2181, %v2275
      %v2277 = vpop.f32.mrb[0].mxu0
      %2278 = vmatprep.mubr.f32.mxu0 %v1442
      %2279 = vmatmul.mubr.f32.gmra.mrb[0].mxu0 %v1441
      %v2280 = vpop.f32.mrb[0].mxu0
      %v2281 = vadd.f32 %v2186, %v2280
      %v2282 = vpop.f32.mrb[0].mxu0
      %2283 = vmatprep.mubr.f32.mxu0 %v1458
      %2284 = vmatmul.mubr.f32.gmra.mrb[0].mxu0 %v1457
      %v2285 = vpop.f32.mrb[0].mxu0
      %v2286 = vadd.f32 %v2191, %v2285
      %v2287 = vpop.f32.mrb[0].mxu0
      %2288 = vdwg.mxu0
      %2289 = vmatprep.subr.mxu0 0.0
      %2290 = vmatpush1.msra.mxu0 %v1655
      %2291 = vmatprep.subr.mxu0 0.0
      %2292 = vmatpush1.msra.mxu0 %v1656
      %2293 = vmatprep.subr.mxu0 0.0
      %2294 = vmatpush1.msra.mxu0 %v1657
      %2295 = vmatprep.subr.mxu0 0.0
      %2296 = vmatpush1.msra.mxu0 %v1658
      %2297 = vmatprep.subr.mxu0 0.0
      %2298 = vmatpush1.msra.mxu0 %v1659
      %2299 = vmatprep.subr.mxu0 0.0
      %2300 = vmatpush1.msra.mxu0 %v1660
      %2301 = vmatprep.subr.mxu0 0.0
      %2302 = vmatpush1.msra.mxu0 %v1661
      %2303 = vmatprep.subr.mxu0 0.0
      %2304 = vmatpush1.msra.mxu0 %v1662
      %2305 = vmatprep.subr.mxu0 0.0
      %2306 = vmatpush1.msra.mxu0 %v1663
      %2307 = vmatprep.subr.mxu0 0.0
      %2308 = vmatpush1.msra.mxu0 %v1664
      %2309 = vmatprep.subr.mxu0 0.0
      %2310 = vmatpush1.msra.mxu0 %v1665
      %2311 = vmatprep.subr.mxu0 0.0
      %2312 = vmatpush1.msra.mxu0 %v1666
      %2313 = vmatprep.subr.mxu0 0.0
      %2314 = vmatpush1.msra.mxu0 %v1667
      %2315 = vmatprep.subr.mxu0 0.0
      %2316 = vmatpush1.msra.mxu0 %v1668
      %2317 = vmatprep.subr.mxu0 0.0
      %2318 = vmatpush1.msra.mxu0 %v1669
      %2319 = vmatprep.subr.mxu0 0.0
      %2320 = vmatpush1.msra.mxu0 %v1670
      %2321 = vmatprep.subr.mxu0 0.0
      %2322 = vmatpush1.msra.mxu0 %v1671
      %2323 = vmatprep.subr.mxu0 0.0
      %2324 = vmatpush1.msra.mxu0 %v1672
      %2325 = vmatprep.subr.mxu0 0.0
      %2326 = vmatpush1.msra.mxu0 %v1673
      %2327 = vmatprep.subr.mxu0 0.0
      %2328 = vmatpush1.msra.mxu0 %v1674
      %2329 = vmatprep.subr.mxu0 0.0
      %2330 = vmatpush1.msra.mxu0 %v1675
      %2331 = vmatprep.subr.mxu0 0.0
      %2332 = vmatpush1.msra.mxu0 %v1676
      %2333 = vmatprep.subr.mxu0 0.0
      %2334 = vmatpush1.msra.mxu0 %v1677
      %2335 = vmatprep.subr.mxu0 0.0
      %2336 = vmatpush1.msra.mxu0 %v1678
      %2337 = vmatprep.subr.mxu0 0.0
      %2338 = vmatpush1.msra.mxu0 %v1679
      %2339 = vmatprep.subr.mxu0 0.0
      %2340 = vmatpush1.msra.mxu0 %v1680
      %2341 = vmatprep.subr.mxu0 0.0
      %2342 = vmatpush1.msra.mxu0 %v1681
      %2343 = vmatprep.subr.mxu0 0.0
      %2344 = vmatpush1.msra.mxu0 %v1682
      %2345 = vmatprep.subr.mxu0 0.0
      %2346 = vmatpush1.msra.mxu0 %v1683
      %2347 = vmatprep.subr.mxu0 0.0
      %2348 = vmatpush1.msra.mxu0 %v1684
      %2349 = vmatprep.subr.mxu0 0.0
      %2350 = vmatpush1.msra.mxu0 %v1685
      %2351 = vmatprep.subr.mxu0 0.0
      %2352 = vmatpush1.msra.mxu0 %v1686
      %2353 = vmatprep.mubr.f32.mxu0 %v1380
      %2354 = vmatmul.mubr.f32.gmra.mrb[0].mxu0 %v1379
      %v2355 = vpop.f32.mrb[0].mxu0
      %v2356 = vadd.f32 %v2261, %v2355
      %v2357 = vpop.f32.mrb[0].mxu0
      %2358 = vmatprep.mubr.f32.mxu0 %v1396
      %2359 = vmatmul.mubr.f32.gmra.mrb[0].mxu0 %v1395
      %v2360 = vpop.f32.mrb[0].mxu0
      %v2361 = vadd.f32 %v2266, %v2360
      %v2362 = vpop.f32.mrb[0].mxu0
      %2363 = vmatprep.mubr.f32.mxu0 %v1412
      %2364 = vmatmul.mubr.f32.gmra.mrb[0].mxu0 %v1411
      %v2365 = vpop.f32.mrb[0].mxu0
      %v2366 = vadd.f32 %v2271, %v2365
      %v2367 = vpop.f32.mrb[0].mxu0
      %2368 = vmatprep.mubr.f32.mxu0 %v1428
      %2369 = vmatmul.mubr.f32.gmra.mrb[0].mxu0 %v1427
      %v2370 = vpop.f32.mrb[0].mxu0
      %v2371 = vadd.f32 %v2276, %v2370
      %v2372 = vpop.f32.mrb[0].mxu0
      %2373 = vmatprep.mubr.f32.mxu0 %v1444
      %2374 = vmatmul.mubr.f32.gmra.mrb[0].mxu0 %v1443
      %v2375 = vpop.f32.mrb[0].mxu0
      %v2376 = vadd.f32 %v2281, %v2375
      %v2377 = vpop.f32.mrb[0].mxu0
      %2378 = vmatprep.mubr.f32.mxu0 %v1460
      %2379 = vmatmul.mubr.f32.gmra.mrb[0].mxu0 %v1459
      %v2380 = vpop.f32.mrb[0].mxu0
      %v2381 = vadd.f32 %v2286, %v2380
      %v2382 = vpop.f32.mrb[0].mxu0
      %2383 = vdwg.mxu0
      %2384 = vmatprep.subr.mxu0 0.0
      %2385 = vmatpush1.msra.mxu0 %v1687
      %2386 = vmatprep.subr.mxu0 0.0
      %2387 = vmatpush1.msra.mxu0 %v1688
      %2388 = vmatprep.subr.mxu0 0.0
      %2389 = vmatpush1.msra.mxu0 %v1689
      %2390 = vmatprep.subr.mxu0 0.0
      %2391 = vmatpush1.msra.mxu0 %v1690
      %2392 = vmatprep.subr.mxu0 0.0
      %2393 = vmatpush1.msra.mxu0 %v1691
      %2394 = vmatprep.subr.mxu0 0.0
      %2395 = vmatpush1.msra.mxu0 %v1692
      %2396 = vmatprep.subr.mxu0 0.0
      %2397 = vmatpush1.msra.mxu0 %v1693
      %2398 = vmatprep.subr.mxu0 0.0
      %2399 = vmatpush1.msra.mxu0 %v1694
      %2400 = vmatprep.subr.mxu0 0.0
      %2401 = vmatpush1.msra.mxu0 %v1695
      %2402 = vmatprep.subr.mxu0 0.0
      %2403 = vmatpush1.msra.mxu0 %v1696
      %2404 = vmatprep.subr.mxu0 0.0
      %2405 = vmatpush1.msra.mxu0 %v1697
      %2406 = vmatprep.subr.mxu0 0.0
      %2407 = vmatpush1.msra.mxu0 %v1698
      %2408 = vmatprep.subr.mxu0 0.0
      %2409 = vmatpush1.msra.mxu0 %v1699
      %2410 = vmatprep.subr.mxu0 0.0
      %2411 = vmatpush1.msra.mxu0 %v1700
      %2412 = vmatprep.subr.mxu0 0.0
      %2413 = vmatpush1.msra.mxu0 %v1701
      %2414 = vmatprep.subr.mxu0 0.0
      %2415 = vmatpush1.msra.mxu0 %v1702
      %2416 = vmatprep.subr.mxu0 0.0
      %2417 = vmatpush1.msra.mxu0 %v1703
      %2418 = vmatprep.subr.mxu0 0.0
      %2419 = vmatpush1.msra.mxu0 %v1704
      %2420 = vmatprep.subr.mxu0 0.0
      %2421 = vmatpush1.msra.mxu0 %v1705
      %2422 = vmatprep.subr.mxu0 0.0
      %2423 = vmatpush1.msra.mxu0 %v1706
      %2424 = vmatprep.subr.mxu0 0.0
      %2425 = vmatpush1.msra.mxu0 %v1707
      %2426 = vmatprep.subr.mxu0 0.0
      %2427 = vmatpush1.msra.mxu0 %v1708
      %2428 = vmatprep.subr.mxu0 0.0
      %2429 = vmatpush1.msra.mxu0 %v1709
      %2430 = vmatprep.subr.mxu0 0.0
      %2431 = vmatpush1.msra.mxu0 %v1710
      %2432 = vmatprep.subr.mxu0 0.0
      %2433 = vmatpush1.msra.mxu0 %v1711
      %2434 = vmatprep.subr.mxu0 0.0
      %2435 = vmatpush1.msra.mxu0 %v1712
      %2436 = vmatprep.subr.mxu0 0.0
      %2437 = vmatpush1.msra.mxu0 %v1713
      %2438 = vmatprep.subr.mxu0 0.0
      %2439 = vmatpush1.msra.mxu0 %v1714
      %2440 = vmatprep.subr.mxu0 0.0
      %2441 = vmatpush1.msra.mxu0 %v1715
      %2442 = vmatprep.subr.mxu0 0.0
      %2443 = vmatpush1.msra.mxu0 %v1716
      %2444 = vmatprep.subr.mxu0 0.0
      %2445 = vmatpush1.msra.mxu0 %v1717
      %2446 = vmatprep.subr.mxu0 0.0
      %2447 = vmatpush1.msra.mxu0 %v1718
      %2448 = vmatprep.mubr.f32.mxu0 %v1382
      %2449 = vmatmul.mubr.f32.gmra.mrb[0].mxu0 %v1381
      %v2450 = vpop.f32.mrb[0].mxu0
      %v2451 = vadd.f32 %v2356, %v2450
      %v2452 = vpop.f32.mrb[0].mxu0
      %2453 = vmatprep.mubr.f32.mxu0 %v1398
      %2454 = vmatmul.mubr.f32.gmra.mrb[0].mxu0 %v1397
      %v2455 = vpop.f32.mrb[0].mxu0
      %v2456 = vadd.f32 %v2361, %v2455
      %v2457 = vpop.f32.mrb[0].mxu0
      %2458 = vmatprep.mubr.f32.mxu0 %v1414
      %2459 = vmatmul.mubr.f32.gmra.mrb[0].mxu0 %v1413
      %v2460 = vpop.f32.mrb[0].mxu0
      %v2461 = vadd.f32 %v2366, %v2460
      %v2462 = vpop.f32.mrb[0].mxu0
      %2463 = vmatprep.mubr.f32.mxu0 %v1430
      %2464 = vmatmul.mubr.f32.gmra.mrb[0].mxu0 %v1429
      %v2465 = vpop.f32.mrb[0].mxu0
      %v2466 = vadd.f32 %v2371, %v2465
      %v2467 = vpop.f32.mrb[0].mxu0
      %2468 = vmatprep.mubr.f32.mxu0 %v1446
      %2469 = vmatmul.mubr.f32.gmra.mrb[0].mxu0 %v1445
      %v2470 = vpop.f32.mrb[0].mxu0
      %v2471 = vadd.f32 %v2376, %v2470
      %v2472 = vpop.f32.mrb[0].mxu0
      %2473 = vmatprep.mubr.f32.mxu0 %v1462
      %2474 = vmatmul.mubr.f32.gmra.mrb[0].mxu0 %v1461
      %v2475 = vpop.f32.mrb[0].mxu0
      %v2476 = vadd.f32 %v2381, %v2475
      %v2477 = vpop.f32.mrb[0].mxu0
      %2478 = vdwg.mxu0
      %v2479 = vlaneseq
      %v2480 = vshrl.u32 %v2479, 7
      %vm2481 = vcmp.eq.s32.totalorder %v2480, 0
      %vm2482 = vcmp.eq.s32.totalorder %v2480, 7
      %v2483 = vld [vmem:[%s5] sm:$0xff]
      %v2484 = vld [vmem:[%s5 + $0x8] sm:$0xff]
      %v2485 = vld [vmem:[%s5 + $0x10] sm:$0xff]
      %v2486 = vld [vmem:[%s5 + $0x18] sm:$0xff]
      %v2487 = vld [vmem:[%s5 + $0x20] sm:$0xff]
      %v2488 = vld [vmem:[%s5 + $0x28] sm:$0xff]
      %2489 = vxpose.xlu0.b32.start [1/16] %v2451, 128
      %2490 = vxpose.xlu0.b32.cont [2/16] %v2456, 128
      %2491 = vxpose.xlu0.b32.cont [3/16] %v2461, 128
      %2492 = vxpose.xlu0.b32.cont [4/16] %v2466, 128
      %2493 = vxpose.xlu0.b32.cont [5/16] %v2471, 128
      %2494 = vxpose.xlu0.b32.cont [6/16] %v2476, 128
      %2495 = vxpose.xlu0.b32.cont [7/16] 0.0, 128
      %2496 = vxpose.xlu0.b32.cont [8/16] 0.0, 128
      %2497 = vxpose.xlu0.b32.cont [9/16] 0.0, 128
      %2498 = vxpose.xlu0.b32.cont [10/16] 0.0, 128
      %2499 = vxpose.xlu0.b32.cont [11/16] 0.0, 128
      %2500 = vxpose.xlu0.b32.cont [12/16] 0.0, 128
      %2501 = vxpose.xlu0.b32.cont [13/16] 0.0, 128
      %2502 = vxpose.xlu0.b32.cont [14/16] 0.0, 128
      %2503 = vxpose.xlu0.b32.cont [15/16] 0.0, 128
      %2504 = vxpose.xlu0.b32.end [16/16] 0.0, 128
      %v2505 = vpop.trf.xlu0
      %v2506 = vpop.trf.xlu0
      %v2507 = vpop.trf.xlu0
      %v2508 = vpop.trf.xlu0
      %v2509 = vpop.trf.xlu0
      %v2510 = vpop.trf.xlu0
      %v2511 = vpop.trf.xlu0
      %v2512 = vpop.trf.xlu0
      %v2513 = vpop.trf.xlu0
      %v2514 = vpop.trf.xlu0
      %v2515 = vpop.trf.xlu0
      %v2516 = vpop.trf.xlu0
      %v2517 = vpop.trf.xlu0
      %v2518 = vpop.trf.xlu0
      %v2519 = vpop.trf.xlu0
      %v2520 = vpop.trf.xlu0
      %vm2521 = vcmask 392192
      %v2523 = vsel %vm2521, %v2505, 0
      %2525 = vmatprep.subr.mxu0 0.0
      %2526 = vmatpush1.msra.mxu0 %v2483
      %2527 = vmatprep.subr.mxu0 0.0
      %2528 = vmatpush1.msra.mxu0 %v2484
      %2529 = vmatprep.subr.mxu0 0.0
      %2530 = vmatpush1.msra.mxu0 %v2485
      %2531 = vmatprep.subr.mxu0 0.0
      %2532 = vmatpush1.msra.mxu0 %v2486
      %2533 = vmatprep.subr.mxu0 0.0
      %2534 = vmatpush1.msra.mxu0 %v2487
      %2535 = vmatprep.subr.mxu0 0.0
      %2536 = vmatpush1.msra.mxu0 %v2488
      %2537 = vmatprep.subr.mxu0 0.0
      %2538 = vmatpush1.msra.mxu0 0.0
      %2539 = vmatprep.subr.mxu0 0.0
      %2540 = vmatpush1.msra.mxu0 0.0
      %2541 = vmatprep.subr.mxu0 0.0
      %2542 = vmatpush1.msra.mxu0 0.0
      %2543 = vmatprep.subr.mxu0 0.0
      %2544 = vmatpush1.msra.mxu0 0.0
      %2545 = vmatprep.subr.mxu0 0.0
      %2546 = vmatpush1.msra.mxu0 0.0
      %2547 = vmatprep.subr.mxu0 0.0
      %2548 = vmatpush1.msra.mxu0 0.0
      %2549 = vmatprep.subr.mxu0 0.0
      %2550 = vmatpush1.msra.mxu0 0.0
      %2551 = vmatprep.subr.mxu0 0.0
      %2552 = vmatpush1.msra.mxu0 0.0
      %2553 = vmatprep.subr.mxu0 0.0
      %2554 = vmatpush1.msra.mxu0 0.0
      %2555 = vmatprep.subr.mxu0 0.0
      %2556 = vmatpush1.msra.mxu0 0.0
      %2557 = vmatprep.subr.mxu0 0.0
      %2558 = vmatpush1.msra.mxu0 0.0
      %2559 = vmatprep.subr.mxu0 0.0
      %2560 = vmatpush1.msra.mxu0 0.0
      %2561 = vmatprep.subr.mxu0 0.0
      %2562 = vmatpush1.msra.mxu0 0.0
      %2563 = vmatprep.subr.mxu0 0.0
      %2564 = vmatpush1.msra.mxu0 0.0
      %2565 = vmatprep.subr.mxu0 0.0
      %2566 = vmatpush1.msra.mxu0 0.0
      %2567 = vmatprep.subr.mxu0 0.0
      %2568 = vmatpush1.msra.mxu0 0.0
      %2569 = vmatprep.subr.mxu0 0.0
      %2570 = vmatpush1.msra.mxu0 0.0
      %2571 = vmatprep.subr.mxu0 0.0
      %2572 = vmatpush1.msra.mxu0 0.0
      %2573 = vmatprep.subr.mxu0 0.0
      %2574 = vmatpush1.msra.mxu0 0.0
      %2575 = vmatprep.subr.mxu0 0.0
      %2576 = vmatpush1.msra.mxu0 0.0
      %2577 = vmatprep.subr.mxu0 0.0
      %2578 = vmatpush1.msra.mxu0 0.0
      %2579 = vmatprep.subr.mxu0 0.0
      %2580 = vmatpush1.msra.mxu0 0.0
      %2581 = vmatprep.subr.mxu0 0.0
      %2582 = vmatpush1.msra.mxu0 0.0
      %2583 = vmatprep.subr.mxu0 0.0
      %2584 = vmatpush1.msra.mxu0 0.0
      %2585 = vmatprep.subr.mxu0 0.0
      %2586 = vmatpush1.msra.mxu0 0.0
      %2587 = vmatprep.subr.mxu0 0.0
      %2588 = vmatpush1.msra.mxu0 0.0
      %2589 = vmatprep.mubr.f32.mxu0 0.0
      %2590 = vmatmul.mubr.f32.gmra.mrb[0].mxu0 %v2523
      %v2591 = vpop.f32.mrb[0].mxu0
      %v2592 = vadd.f32 0.0, %v2591
      %v2593 = vpop.f32.mrb[0].mxu0
      %2594 = vdwg.mxu0
      %s2595 = scalar_lea.vmem %s5, 48
      %v2596 = vld [vmem:[%s2595] sm:$0xff]
      %v2597 = vld [vmem:[%s2595 + $0x8] sm:$0xff]
      %v2598 = vld [vmem:[%s2595 + $0x10] sm:$0xff]
      %v2599 = vld [vmem:[%s2595 + $0x18] sm:$0xff]
      %v2600 = vld [vmem:[%s2595 + $0x20] sm:$0xff]
      %v2601 = vld [vmem:[%s2595 + $0x28] sm:$0xff]
      %2602 = vmatprep.subr.mxu0 0.0
      %2603 = vmatpush1.msra.mxu0 %v2596
      %2604 = vmatprep.subr.mxu0 0.0
      %2605 = vmatpush1.msra.mxu0 %v2597
      %2606 = vmatprep.subr.mxu0 0.0
      %2607 = vmatpush1.msra.mxu0 %v2598
      %2608 = vmatprep.subr.mxu0 0.0
      %2609 = vmatpush1.msra.mxu0 %v2599
      %2610 = vmatprep.subr.mxu0 0.0
      %2611 = vmatpush1.msra.mxu0 %v2600
      %2612 = vmatprep.subr.mxu0 0.0
      %2613 = vmatpush1.msra.mxu0 %v2601
      %2614 = vmatprep.subr.mxu0 0.0
      %2615 = vmatpush1.msra.mxu0 0.0
      %2616 = vmatprep.subr.mxu0 0.0
      %2617 = vmatpush1.msra.mxu0 0.0
      %2618 = vmatprep.subr.mxu0 0.0
      %2619 = vmatpush1.msra.mxu0 0.0
      %2620 = vmatprep.subr.mxu0 0.0
      %2621 = vmatpush1.msra.mxu0 0.0
      %2622 = vmatprep.subr.mxu0 0.0
      %2623 = vmatpush1.msra.mxu0 0.0
      %2624 = vmatprep.subr.mxu0 0.0
      %2625 = vmatpush1.msra.mxu0 0.0
      %2626 = vmatprep.subr.mxu0 0.0
      %2627 = vmatpush1.msra.mxu0 0.0
      %2628 = vmatprep.subr.mxu0 0.0
      %2629 = vmatpush1.msra.mxu0 0.0
      %2630 = vmatprep.subr.mxu0 0.0
      %2631 = vmatpush1.msra.mxu0 0.0
      %2632 = vmatprep.subr.mxu0 0.0
      %2633 = vmatpush1.msra.mxu0 0.0
      %2634 = vmatprep.subr.mxu0 0.0
      %2635 = vmatpush1.msra.mxu0 0.0
      %2636 = vmatprep.subr.mxu0 0.0
      %2637 = vmatpush1.msra.mxu0 0.0
      %2638 = vmatprep.subr.mxu0 0.0
      %2639 = vmatpush1.msra.mxu0 0.0
      %2640 = vmatprep.subr.mxu0 0.0
      %2641 = vmatpush1.msra.mxu0 0.0
      %2642 = vmatprep.subr.mxu0 0.0
      %2643 = vmatpush1.msra.mxu0 0.0
      %2644 = vmatprep.subr.mxu0 0.0
      %2645 = vmatpush1.msra.mxu0 0.0
      %2646 = vmatprep.subr.mxu0 0.0
      %2647 = vmatpush1.msra.mxu0 0.0
      %2648 = vmatprep.subr.mxu0 0.0
      %2649 = vmatpush1.msra.mxu0 0.0
      %2650 = vmatprep.subr.mxu0 0.0
      %2651 = vmatpush1.msra.mxu0 0.0
      %2652 = vmatprep.subr.mxu0 0.0
      %2653 = vmatpush1.msra.mxu0 0.0
      %2654 = vmatprep.subr.mxu0 0.0
      %2655 = vmatpush1.msra.mxu0 0.0
      %2656 = vmatprep.subr.mxu0 0.0
      %2657 = vmatpush1.msra.mxu0 0.0
      %2658 = vmatprep.subr.mxu0 0.0
      %2659 = vmatpush1.msra.mxu0 0.0
      %2660 = vmatprep.subr.mxu0 0.0
      %2661 = vmatpush1.msra.mxu0 0.0
      %2662 = vmatprep.subr.mxu0 0.0
      %2663 = vmatpush1.msra.mxu0 0.0
      %2664 = vmatprep.subr.mxu0 0.0
      %2665 = vmatpush1.msra.mxu0 0.0
      %2666 = vmatprep.mubr.f32.mxu0 0.0
      %2667 = vmatmul.mubr.f32.gmra.mrb[0].mxu0 %v2523
      %v2668 = vpop.f32.mrb[0].mxu0
      %v2669 = vadd.f32 0.0, %v2668
      %v2670 = vpop.f32.mrb[0].mxu0
      %2671 = vdwg.mxu0
      %s2672 = scalar_lea.vmem %s5, 96
      %v2673 = vld [vmem:[%s2672] sm:$0xff]
      %v2674 = vld [vmem:[%s2672 + $0x8] sm:$0xff]
      %v2675 = vld [vmem:[%s2672 + $0x10] sm:$0xff]
      %v2676 = vld [vmem:[%s2672 + $0x18] sm:$0xff]
      %v2677 = vld [vmem:[%s2672 + $0x20] sm:$0xff]
      %v2678 = vld [vmem:[%s2672 + $0x28] sm:$0xff]
      %2679 = vmatprep.subr.mxu0 0.0
      %2680 = vmatpush1.msra.mxu0 %v2673
      %2681 = vmatprep.subr.mxu0 0.0
      %2682 = vmatpush1.msra.mxu0 %v2674
      %2683 = vmatprep.subr.mxu0 0.0
      %2684 = vmatpush1.msra.mxu0 %v2675
      %2685 = vmatprep.subr.mxu0 0.0
      %2686 = vmatpush1.msra.mxu0 %v2676
      %2687 = vmatprep.subr.mxu0 0.0
      %2688 = vmatpush1.msra.mxu0 %v2677
      %2689 = vmatprep.subr.mxu0 0.0
      %2690 = vmatpush1.msra.mxu0 %v2678
      %2691 = vmatprep.subr.mxu0 0.0
      %2692 = vmatpush1.msra.mxu0 0.0
      %2693 = vmatprep.subr.mxu0 0.0
      %2694 = vmatpush1.msra.mxu0 0.0
      %2695 = vmatprep.subr.mxu0 0.0
      %2696 = vmatpush1.msra.mxu0 0.0
      %2697 = vmatprep.subr.mxu0 0.0
      %2698 = vmatpush1.msra.mxu0 0.0
      %2699 = vmatprep.subr.mxu0 0.0
      %2700 = vmatpush1.msra.mxu0 0.0
      %2701 = vmatprep.subr.mxu0 0.0
      %2702 = vmatpush1.msra.mxu0 0.0
      %2703 = vmatprep.subr.mxu0 0.0
      %2704 = vmatpush1.msra.mxu0 0.0
      %2705 = vmatprep.subr.mxu0 0.0
      %2706 = vmatpush1.msra.mxu0 0.0
      %2707 = vmatprep.subr.mxu0 0.0
      %2708 = vmatpush1.msra.mxu0 0.0
      %2709 = vmatprep.subr.mxu0 0.0
      %2710 = vmatpush1.msra.mxu0 0.0
      %2711 = vmatprep.subr.mxu0 0.0
      %2712 = vmatpush1.msra.mxu0 0.0
      %2713 = vmatprep.subr.mxu0 0.0
      %2714 = vmatpush1.msra.mxu0 0.0
      %2715 = vmatprep.subr.mxu0 0.0
      %2716 = vmatpush1.msra.mxu0 0.0
      %2717 = vmatprep.subr.mxu0 0.0
      %2718 = vmatpush1.msra.mxu0 0.0
      %2719 = vmatprep.subr.mxu0 0.0
      %2720 = vmatpush1.msra.mxu0 0.0
      %2721 = vmatprep.subr.mxu0 0.0
      %2722 = vmatpush1.msra.mxu0 0.0
      %2723 = vmatprep.subr.mxu0 0.0
      %2724 = vmatpush1.msra.mxu0 0.0
      %2725 = vmatprep.subr.mxu0 0.0
      %2726 = vmatpush1.msra.mxu0 0.0
      %2727 = vmatprep.subr.mxu0 0.0
      %2728 = vmatpush1.msra.mxu0 0.0
      %2729 = vmatprep.subr.mxu0 0.0
      %2730 = vmatpush1.msra.mxu0 0.0
      %2731 = vmatprep.subr.mxu0 0.0
      %2732 = vmatpush1.msra.mxu0 0.0
      %2733 = vmatprep.subr.mxu0 0.0
      %2734 = vmatpush1.msra.mxu0 0.0
      %2735 = vmatprep.subr.mxu0 0.0
      %2736 = vmatpush1.msra.mxu0 0.0
      %2737 = vmatprep.subr.mxu0 0.0
      %2738 = vmatpush1.msra.mxu0 0.0
      %2739 = vmatprep.subr.mxu0 0.0
      %2740 = vmatpush1.msra.mxu0 0.0
      %2741 = vmatprep.subr.mxu0 0.0
      %2742 = vmatpush1.msra.mxu0 0.0
      %2743 = vmatprep.mubr.f32.mxu0 0.0
      %2744 = vmatmul.mubr.f32.gmra.mrb[0].mxu0 %v2523
      %v2745 = vpop.f32.mrb[0].mxu0
      %v2746 = vadd.f32 0.0, %v2745
      %v2747 = vpop.f32.mrb[0].mxu0
      %2748 = vdwg.mxu0
      %v2749 = vrot.slane %v2592, 7
      %v2750 = vsel %vm2481, 0.0, %v2749
      %v2751 = vadd.f32 %v2750, %v2669
      %v2752 = vrot.slane %v2746, 1
      %v2753 = vsel %vm2482, 0.0, %v2752
      %v2754 = vadd.f32 %v2751, %v2753
      %v2755 = vld [vmem:[%s6] sm:$0x1]
      %v2757 = vlaneseq
      %v2758 = vshrl.u32 %v2757, 7
      %v2759 = vsub.s32 0, %v2758
      %v2760 = vrot.slane %v2755, %v2759
      %v2762 = vadd.f32 %v2754, %v2760
      %v2763 = vmax.f32 %v2762, 0.0
      %v2764 = vld [vmem:[%s9] sm:$0x1]
      %v2766 = vlaneseq
      %v2767 = vshrl.u32 %v2766, 7
      %v2768 = vsub.s32 0, %v2767
      %v2769 = vrot.slane %v2764, %v2768
      %v2771 = vmul.f32 %v2763, %v2769
      %v2772 = vld [vmem:[%s10] sm:$0x1]
      %v2774 = vlaneseq
      %v2775 = vshrl.u32 %v2774, 7
      %v2776 = vsub.s32 0, %v2775
      %v2777 = vrot.slane %v2772, %v2776
      %v2779 = vadd.f32 %v2771, %v2777
      %v2780 = vrot.slane %v2779, 7
      %v2781 = vsel %vm2481, 0.0, %v2780
      %v2782 = vrot.slane %v2779, 1
      %v2783 = vsel %vm2482, 0.0, %v2782
      %2785 = vrot.lane.b32.xlu0 %v2779, 32
      %v2786 = vpop.permute.xlu0 %2785
      %2789 = vrot.lane.b32.xlu0 %v2783, 64
      %v2790 = vpop.permute.xlu0 %2789
      %vm2792 = vcmask 261120
      %v2793 = vsel %vm2792, %v2781, %v2786
      %vm2794 = vcmask 523264
      %v2795 = vsel %vm2794, %v2793, %v2790
      %v2796 = vld [vmem:[%s7] sm:$0xff]
      %v2797 = vld [vmem:[%s7 + $0x8] sm:$0xff]
      %v2798 = vld [vmem:[%s7 + $0x10] sm:$0xff]
      %v2799 = vld [vmem:[%s7 + $0x18] sm:$0xff]
      %v2800 = vld [vmem:[%s7 + $0x20] sm:$0xff]
      %v2801 = vld [vmem:[%s7 + $0x28] sm:$0xff]
      %v2802 = vld [vmem:[%s7 + $0x30] sm:$0xff]
      %v2803 = vld [vmem:[%s7 + $0x38] sm:$0xff]
      %v2804 = vld [vmem:[%s7 + $0x40] sm:$0xff]
      %v2805 = vld [vmem:[%s7 + $0x48] sm:$0xff]
      %v2806 = vld [vmem:[%s7 + $0x50] sm:$0xff]
      %v2807 = vld [vmem:[%s7 + $0x58] sm:$0xff]
      %v2808 = vld [vmem:[%s8] sm:$0x1]
      %v2810 = vlaneseq
      %v2811 = vshrl.u32 %v2810, 7
      %v2812 = vsub.s32 0, %v2811
      %v2813 = vrot.slane %v2808, %v2812
      %vm2815 = vcmask 785408
      %v2817 = vsel %vm2815, %v2795, 0
      %2819 = vmatprep.subr.mxu0 0.0
      %2820 = vmatpush1.msra.mxu0 %v2796
      %2821 = vmatprep.subr.mxu0 0.0
      %2822 = vmatpush1.msra.mxu0 %v2797
      %2823 = vmatprep.subr.mxu0 0.0
      %2824 = vmatpush1.msra.mxu0 %v2798
      %2825 = vmatprep.subr.mxu0 0.0
      %2826 = vmatpush1.msra.mxu0 %v2799
      %2827 = vmatprep.subr.mxu0 0.0
      %2828 = vmatpush1.msra.mxu0 %v2800
      %2829 = vmatprep.subr.mxu0 0.0
      %2830 = vmatpush1.msra.mxu0 %v2801
      %2831 = vmatprep.subr.mxu0 0.0
      %2832 = vmatpush1.msra.mxu0 %v2802
      %2833 = vmatprep.subr.mxu0 0.0
      %2834 = vmatpush1.msra.mxu0 %v2803
      %2835 = vmatprep.subr.mxu0 0.0
      %2836 = vmatpush1.msra.mxu0 %v2804
      %2837 = vmatprep.subr.mxu0 0.0
      %2838 = vmatpush1.msra.mxu0 %v2805
      %2839 = vmatprep.subr.mxu0 0.0
      %2840 = vmatpush1.msra.mxu0 %v2806
      %2841 = vmatprep.subr.mxu0 0.0
      %2842 = vmatpush1.msra.mxu0 %v2807
      %2843 = vmatprep.subr.mxu0 0.0
      %2844 = vmatpush1.msra.mxu0 0.0
      %2845 = vmatprep.subr.mxu0 0.0
      %2846 = vmatpush1.msra.mxu0 0.0
      %2847 = vmatprep.subr.mxu0 0.0
      %2848 = vmatpush1.msra.mxu0 0.0
      %2849 = vmatprep.subr.mxu0 0.0
      %2850 = vmatpush1.msra.mxu0 0.0
      %2851 = vmatprep.subr.mxu0 0.0
      %2852 = vmatpush1.msra.mxu0 0.0
      %2853 = vmatprep.subr.mxu0 0.0
      %2854 = vmatpush1.msra.mxu0 0.0
      %2855 = vmatprep.subr.mxu0 0.0
      %2856 = vmatpush1.msra.mxu0 0.0
      %2857 = vmatprep.subr.mxu0 0.0
      %2858 = vmatpush1.msra.mxu0 0.0
      %2859 = vmatprep.subr.mxu0 0.0
      %2860 = vmatpush1.msra.mxu0 0.0
      %2861 = vmatprep.subr.mxu0 0.0
      %2862 = vmatpush1.msra.mxu0 0.0
      %2863 = vmatprep.subr.mxu0 0.0
      %2864 = vmatpush1.msra.mxu0 0.0
      %2865 = vmatprep.subr.mxu0 0.0
      %2866 = vmatpush1.msra.mxu0 0.0
      %2867 = vmatprep.subr.mxu0 0.0
      %2868 = vmatpush1.msra.mxu0 0.0
      %2869 = vmatprep.subr.mxu0 0.0
      %2870 = vmatpush1.msra.mxu0 0.0
      %2871 = vmatprep.subr.mxu0 0.0
      %2872 = vmatpush1.msra.mxu0 0.0
      %2873 = vmatprep.subr.mxu0 0.0
      %2874 = vmatpush1.msra.mxu0 0.0
      %2875 = vmatprep.subr.mxu0 0.0
      %2876 = vmatpush1.msra.mxu0 0.0
      %2877 = vmatprep.subr.mxu0 0.0
      %2878 = vmatpush1.msra.mxu0 0.0
      %2879 = vmatprep.subr.mxu0 0.0
      %2880 = vmatpush1.msra.mxu0 0.0
      %2881 = vmatprep.subr.mxu0 0.0
      %2882 = vmatpush1.msra.mxu0 0.0
      %2883 = vmatprep.mubr.f32.mxu0 0.0
      %2884 = vmatmul.mubr.f32.gmra.mrb[0].mxu0 %v2817
      %v2885 = vpop.f32.mrb[0].mxu0
      %v2886 = vadd.f32 %v2813, %v2885
      %v2887 = vpop.f32.mrb[0].mxu0
      %2888 = vdwg.mxu0
      %v2889 = vmax.f32 %v2886, 0.0
      %s2890 = scalar_lea.vmem %s9, 1
      %v2891 = vld [vmem:[%s2890] sm:$0x1]
      %v2893 = vlaneseq
      %v2894 = vshrl.u32 %v2893, 7
      %v2895 = vsub.s32 0, %v2894
      %v2896 = vrot.slane %v2891, %v2895
      %v2898 = vmul.f32 %v2889, %v2896
      %s2899 = scalar_lea.vmem %s10, 1
      %v2900 = vld [vmem:[%s2899] sm:$0x1]
      %v2902 = vlaneseq
      %v2903 = vshrl.u32 %v2902, 7
      %v2904 = vsub.s32 0, %v2903
      %v2905 = vrot.slane %v2900, %v2904
      %v2907 = vadd.f32 %v2898, %v2905
      %v2908 = vrot.slane %v2907, 7
      %v2909 = vsel %vm2481, 0.0, %v2908
      %v2910 = vrot.slane %v2907, 1
      %v2911 = vsel %vm2482, 0.0, %v2910
      %2913 = vrot.lane.b32.xlu0 %v2907, 32
      %v2914 = vpop.permute.xlu0 %2913
      %2917 = vrot.lane.b32.xlu0 %v2911, 64
      %v2918 = vpop.permute.xlu0 %2917
      %v2920 = vsel %vm2792, %v2909, %v2914
      %v2921 = vsel %vm2794, %v2920, %v2918
      %s2922 = scalar_lea.vmem %s7, 96
      %v2923 = vld [vmem:[%s2922] sm:$0xff]
      %v2924 = vld [vmem:[%s2922 + $0x8] sm:$0xff]
      %v2925 = vld [vmem:[%s2922 + $0x10] sm:$0xff]
      %v2926 = vld [vmem:[%s2922 + $0x18] sm:$0xff]
      %v2927 = vld [vmem:[%s2922 + $0x20] sm:$0xff]
      %v2928 = vld [vmem:[%s2922 + $0x28] sm:$0xff]
      %v2929 = vld [vmem:[%s2922 + $0x30] sm:$0xff]
      %v2930 = vld [vmem:[%s2922 + $0x38] sm:$0xff]
      %v2931 = vld [vmem:[%s2922 + $0x40] sm:$0xff]
      %v2932 = vld [vmem:[%s2922 + $0x48] sm:$0xff]
      %v2933 = vld [vmem:[%s2922 + $0x50] sm:$0xff]
      %v2934 = vld [vmem:[%s2922 + $0x58] sm:$0xff]
      %s2935 = scalar_lea.vmem %s8, 1
      %v2936 = vld [vmem:[%s2935] sm:$0x1]
      %v2938 = vlaneseq
      %v2939 = vshrl.u32 %v2938, 7
      %v2940 = vsub.s32 0, %v2939
      %v2941 = vrot.slane %v2936, %v2940
      %v2944 = vsel %vm2815, %v2921, 0
      %2946 = vmatprep.subr.mxu0 0.0
      %2947 = vmatpush1.msra.mxu0 %v2923
      %2948 = vmatprep.subr.mxu0 0.0
      %2949 = vmatpush1.msra.mxu0 %v2924
      %2950 = vmatprep.subr.mxu0 0.0
      %2951 = vmatpush1.msra.mxu0 %v2925
      %2952 = vmatprep.subr.mxu0 0.0
      %2953 = vmatpush1.msra.mxu0 %v2926
      %2954 = vmatprep.subr.mxu0 0.0
      %2955 = vmatpush1.msra.mxu0 %v2927
      %2956 = vmatprep.subr.mxu0 0.0
      %2957 = vmatpush1.msra.mxu0 %v2928
      %2958 = vmatprep.subr.mxu0 0.0
      %2959 = vmatpush1.msra.mxu0 %v2929
      %2960 = vmatprep.subr.mxu0 0.0
      %2961 = vmatpush1.msra.mxu0 %v2930
      %2962 = vmatprep.subr.mxu0 0.0
      %2963 = vmatpush1.msra.mxu0 %v2931
      %2964 = vmatprep.subr.mxu0 0.0
      %2965 = vmatpush1.msra.mxu0 %v2932
      %2966 = vmatprep.subr.mxu0 0.0
      %2967 = vmatpush1.msra.mxu0 %v2933
      %2968 = vmatprep.subr.mxu0 0.0
      %2969 = vmatpush1.msra.mxu0 %v2934
      %2970 = vmatprep.subr.mxu0 0.0
      %2971 = vmatpush1.msra.mxu0 0.0
      %2972 = vmatprep.subr.mxu0 0.0
      %2973 = vmatpush1.msra.mxu0 0.0
      %2974 = vmatprep.subr.mxu0 0.0
      %2975 = vmatpush1.msra.mxu0 0.0
      %2976 = vmatprep.subr.mxu0 0.0
      %2977 = vmatpush1.msra.mxu0 0.0
      %2978 = vmatprep.subr.mxu0 0.0
      %2979 = vmatpush1.msra.mxu0 0.0
      %2980 = vmatprep.subr.mxu0 0.0
      %2981 = vmatpush1.msra.mxu0 0.0
      %2982 = vmatprep.subr.mxu0 0.0
      %2983 = vmatpush1.msra.mxu0 0.0
      %2984 = vmatprep.subr.mxu0 0.0
      %2985 = vmatpush1.msra.mxu0 0.0
      %2986 = vmatprep.subr.mxu0 0.0
      %2987 = vmatpush1.msra.mxu0 0.0
      %2988 = vmatprep.subr.mxu0 0.0
      %2989 = vmatpush1.msra.mxu0 0.0
      %2990 = vmatprep.subr.mxu0 0.0
      %2991 = vmatpush1.msra.mxu0 0.0
      %2992 = vmatprep.subr.mxu0 0.0
      %2993 = vmatpush1.msra.mxu0 0.0
      %2994 = vmatprep.subr.mxu0 0.0
      %2995 = vmatpush1.msra.mxu0 0.0
      %2996 = vmatprep.subr.mxu0 0.0
      %2997 = vmatpush1.msra.mxu0 0.0
      %2998 = vmatprep.subr.mxu0 0.0
      %2999 = vmatpush1.msra.mxu0 0.0
      %3000 = vmatprep.subr.mxu0 0.0
      %3001 = vmatpush1.msra.mxu0 0.0
      %3002 = vmatprep.subr.mxu0 0.0
      %3003 = vmatpush1.msra.mxu0 0.0
      %3004 = vmatprep.subr.mxu0 0.0
      %3005 = vmatpush1.msra.mxu0 0.0
      %3006 = vmatprep.subr.mxu0 0.0
      %3007 = vmatpush1.msra.mxu0 0.0
      %3008 = vmatprep.subr.mxu0 0.0
      %3009 = vmatpush1.msra.mxu0 0.0
      %3010 = vmatprep.mubr.f32.mxu0 0.0
      %3011 = vmatmul.mubr.f32.gmra.mrb[0].mxu0 %v2944
      %v3012 = vpop.f32.mrb[0].mxu0
      %v3013 = vadd.f32 %v2941, %v3012
      %v3014 = vpop.f32.mrb[0].mxu0
      %3015 = vdwg.mxu0
      %v3016 = vmax.f32 %v3013, 0.0
      %s3017 = scalar_lea.vmem %s9, 2
      %v3018 = vld [vmem:[%s3017] sm:$0x1]
      %v3020 = vlaneseq
      %v3021 = vshrl.u32 %v3020, 7
      %v3022 = vsub.s32 0, %v3021
      %v3023 = vrot.slane %v3018, %v3022
      %v3025 = vmul.f32 %v3016, %v3023
      %s3026 = scalar_lea.vmem %s10, 2
      %v3027 = vld [vmem:[%s3026] sm:$0x1]
      %v3029 = vlaneseq
      %v3030 = vshrl.u32 %v3029, 7
      %v3031 = vsub.s32 0, %v3030
      %v3032 = vrot.slane %v3027, %v3031
      %v3034 = vadd.f32 %v3025, %v3032
      %v3035 = vrot.slane %v3034, 7
      %v3036 = vsel %vm2481, 0.0, %v3035
      %v3037 = vrot.slane %v3034, 1
      %v3038 = vsel %vm2482, 0.0, %v3037
      %3040 = vrot.lane.b32.xlu0 %v3034, 32
      %v3041 = vpop.permute.xlu0 %3040
      %3044 = vrot.lane.b32.xlu0 %v3038, 64
      %v3045 = vpop.permute.xlu0 %3044
      %v3047 = vsel %vm2792, %v3036, %v3041
      %v3048 = vsel %vm2794, %v3047, %v3045
      %s3049 = scalar_lea.vmem %s7, 192
      %v3050 = vld [vmem:[%s3049] sm:$0xff]
      %v3051 = vld [vmem:[%s3049 + $0x8] sm:$0xff]
      %v3052 = vld [vmem:[%s3049 + $0x10] sm:$0xff]
      %v3053 = vld [vmem:[%s3049 + $0x18] sm:$0xff]
      %v3054 = vld [vmem:[%s3049 + $0x20] sm:$0xff]
      %v3055 = vld [vmem:[%s3049 + $0x28] sm:$0xff]
      %v3056 = vld [vmem:[%s3049 + $0x30] sm:$0xff]
      %v3057 = vld [vmem:[%s3049 + $0x38] sm:$0xff]
      %v3058 = vld [vmem:[%s3049 + $0x40] sm:$0xff]
      %v3059 = vld [vmem:[%s3049 + $0x48] sm:$0xff]
      %v3060 = vld [vmem:[%s3049 + $0x50] sm:$0xff]
      %v3061 = vld [vmem:[%s3049 + $0x58] sm:$0xff]
      %s3062 = scalar_lea.vmem %s8, 2
      %v3063 = vld [vmem:[%s3062] sm:$0x1]
      %v3065 = vlaneseq
      %v3066 = vshrl.u32 %v3065, 7
      %v3067 = vsub.s32 0, %v3066
      %v3068 = vrot.slane %v3063, %v3067
      %v3071 = vsel %vm2815, %v3048, 0
      %3073 = vmatprep.subr.mxu0 0.0
      %3074 = vmatpush1.msra.mxu0 %v3050
      %3075 = vmatprep.subr.mxu0 0.0
      %3076 = vmatpush1.msra.mxu0 %v3051
      %3077 = vmatprep.subr.mxu0 0.0
      %3078 = vmatpush1.msra.mxu0 %v3052
      %3079 = vmatprep.subr.mxu0 0.0
      %3080 = vmatpush1.msra.mxu0 %v3053
      %3081 = vmatprep.subr.mxu0 0.0
      %3082 = vmatpush1.msra.mxu0 %v3054
      %3083 = vmatprep.subr.mxu0 0.0
      %3084 = vmatpush1.msra.mxu0 %v3055
      %3085 = vmatprep.subr.mxu0 0.0
      %3086 = vmatpush1.msra.mxu0 %v3056
      %3087 = vmatprep.subr.mxu0 0.0
      %3088 = vmatpush1.msra.mxu0 %v3057
      %3089 = vmatprep.subr.mxu0 0.0
      %3090 = vmatpush1.msra.mxu0 %v3058
      %3091 = vmatprep.subr.mxu0 0.0
      %3092 = vmatpush1.msra.mxu0 %v3059
      %3093 = vmatprep.subr.mxu0 0.0
      %3094 = vmatpush1.msra.mxu0 %v3060
      %3095 = vmatprep.subr.mxu0 0.0
      %3096 = vmatpush1.msra.mxu0 %v3061
      %3097 = vmatprep.subr.mxu0 0.0
      %3098 = vmatpush1.msra.mxu0 0.0
      %3099 = vmatprep.subr.mxu0 0.0
      %3100 = vmatpush1.msra.mxu0 0.0
      %3101 = vmatprep.subr.mxu0 0.0
      %3102 = vmatpush1.msra.mxu0 0.0
      %3103 = vmatprep.subr.mxu0 0.0
      %3104 = vmatpush1.msra.mxu0 0.0
      %3105 = vmatprep.subr.mxu0 0.0
      %3106 = vmatpush1.msra.mxu0 0.0
      %3107 = vmatprep.subr.mxu0 0.0
      %3108 = vmatpush1.msra.mxu0 0.0
      %3109 = vmatprep.subr.mxu0 0.0
      %3110 = vmatpush1.msra.mxu0 0.0
      %3111 = vmatprep.subr.mxu0 0.0
      %3112 = vmatpush1.msra.mxu0 0.0
      %3113 = vmatprep.subr.mxu0 0.0
      %3114 = vmatpush1.msra.mxu0 0.0
      %3115 = vmatprep.subr.mxu0 0.0
      %3116 = vmatpush1.msra.mxu0 0.0
      %3117 = vmatprep.subr.mxu0 0.0
      %3118 = vmatpush1.msra.mxu0 0.0
      %3119 = vmatprep.subr.mxu0 0.0
      %3120 = vmatpush1.msra.mxu0 0.0
      %3121 = vmatprep.subr.mxu0 0.0
      %3122 = vmatpush1.msra.mxu0 0.0
      %3123 = vmatprep.subr.mxu0 0.0
      %3124 = vmatpush1.msra.mxu0 0.0
      %3125 = vmatprep.subr.mxu0 0.0
      %3126 = vmatpush1.msra.mxu0 0.0
      %3127 = vmatprep.subr.mxu0 0.0
      %3128 = vmatpush1.msra.mxu0 0.0
      %3129 = vmatprep.subr.mxu0 0.0
      %3130 = vmatpush1.msra.mxu0 0.0
      %3131 = vmatprep.subr.mxu0 0.0
      %3132 = vmatpush1.msra.mxu0 0.0
      %3133 = vmatprep.subr.mxu0 0.0
      %3134 = vmatpush1.msra.mxu0 0.0
      %3135 = vmatprep.subr.mxu0 0.0
      %3136 = vmatpush1.msra.mxu0 0.0
      %3137 = vmatprep.mubr.f32.mxu0 0.0
      %3138 = vmatmul.mubr.f32.gmra.mrb[0].mxu0 %v3071
      %v3139 = vpop.f32.mrb[0].mxu0
      %v3140 = vadd.f32 %v3068, %v3139
      %v3141 = vpop.f32.mrb[0].mxu0
      %3142 = vdwg.mxu0
      %v3143 = vmax.f32 %v3140, 0.0
      %s3144 = scalar_lea.vmem %s9, 3
      %v3145 = vld [vmem:[%s3144] sm:$0x1]
      %v3147 = vlaneseq
      %v3148 = vshrl.u32 %v3147, 7
      %v3149 = vsub.s32 0, %v3148
      %v3150 = vrot.slane %v3145, %v3149
      %v3152 = vmul.f32 %v3143, %v3150
      %s3153 = scalar_lea.vmem %s10, 3
      %v3154 = vld [vmem:[%s3153] sm:$0x1]
      %v3156 = vlaneseq
      %v3157 = vshrl.u32 %v3156, 7
      %v3158 = vsub.s32 0, %v3157
      %v3159 = vrot.slane %v3154, %v3158
      %v3161 = vadd.f32 %v3152, %v3159
      %v3162 = vsel %vm2792, %v3161, 0.0
      %v3163 = vrot.slane %v3162, 4
      %v3164 = vadd.f32 %v3162, %v3163
      %v3165 = vrot.slane %v3164, 2
      %v3166 = vadd.f32 %v3164, %v3165
      %v3167 = vrot.slane %v3166, 1
      %v3168 = vadd.f32 %v3166, %v3167
      %v3169 = vrcp.pop 8.0
      %v3170 = vmul.f32 %v3168, %v3169
      %v3171 = vld [vmem:[%s11] sm:$0x1]
      %v3172 = vmul.f32 %v3170, %v3171
      %vm3173 = vcmask 253952
      %v3174 = vsel %vm3173, %v3172, 0.0
      %3175 = vadd.xlane.f32.xlu0 %v3174
      %v3176 = vpop.xlane.xlu0 %3175
      %v3177 = vld [vmem:[#allocation2] sm:$0x1]
      %v3178 = vadd.f32 %v3176, %v3177
      %vm3179 = vcmask 0
      %3180 = vst.msk [vmem:[%s440] sm:$0x1] %vm3179, %v3178
      %p3181 = scmp.lt.s32.totalorder %s26, 1
      %s3182 = scalar_select %p3181, %s26, 1
      %s3183 = scalar_lea.vmem %s13, %s3182
      // Predicated region
      $region73: #{frame_model_forward.1} parent=71 // pred_check
        %p3184 = pneg %p322
      $region74: #{frame_model_forward.1} parent=71 // pred_check_branch
        %3186 = sbr.rel (%p3184) target = $region76
      $region75: #{frame_model_forward.1} parent=71 // pred_region
        _
      $region76: #{frame_model_forward.1} parent=71 // pred_fallthru
        _
    $region72: #{frame_model_forward.1} parent=5 // pred_fallthru
      _
    %p3187 = scmp.le.s32.totalorder 2, %s21
    // Predicated region
    $region77: #{frame_model_forward.1} parent=5 // pred_check
      %p3188 = pneg %p3187
    $region78: #{frame_model_forward.1} parent=5 // pred_check_branch
      %3190 = sbr.rel (%p3188) target = $region80
    $region79: #{frame_model_forward.1} parent=5 // pred_region
      %s3191 = ssub.s32 %s21, 2
      // Predicated region
      $region81: #{frame_model_forward.1} parent=79 // pred_check
        %p3192 = pneg %p328
      $region82: #{frame_model_forward.1} parent=79 // pred_check_branch
        %3194 = sbr.rel (%p3192) target = $region84
      $region83: #{frame_model_forward.1} parent=79 // pred_region
        %p3195 = scmp.lt.s32.totalorder %s27, 1
        %s3196 = scalar_select %p3195, %s27, 1
        %s3197 = scalar_lea.vmem %s13, %s3196
      $region84: #{frame_model_forward.1} parent=79 // pred_fallthru
        _
    $region80: #{frame_model_forward.1} parent=5 // pred_fallthru
      _
  $region6: #{frame_model_forward.1} parent=0 // loop_footer
    %s25 = sadd.s32 1, %s21
  $region7: #{frame_model_forward.1} parent=0 // loop_footer_branch
    %20 = sbr.rel target = $region3
  $region8: #{frame_model_forward.1} parent=0 // loop_exit
    _

</llo_original>
